<compile_context>
chip_gen: v5e
topology: v5e:2x2
jax: 0.10.0
libtpu: 0.0.40
codegen_flags: <defaults>
</compile_context>

<pallas_src>
import functools

import jax
import jax.numpy as jnp
from jax.experimental import pallas as pl
from jax.experimental.pallas import tpu as pltpu


def dualgate_kernel(x0_ref, a_gamma_ref, a_hat_ref, deg_ref,
                    enc_skip_w_ref, enc_b_ref,
                    gcn_w_ref, gcn_b_ref, dec_w_ref, dec_b_ref,
                    out_ref, *, nlayers, p, nhid, n_valid):
    f32 = jnp.float32
    bf16 = jnp.bfloat16

    x0 = x0_ref[...]            # [Np, Fp]  bf16
    a_gamma = a_gamma_ref[...]  # [Np, Np]  bf16 (exact small integer counts)
    a_hat = a_hat_ref[...]      # [Np, Np]  bf16 normalized GCN adjacency
    deg = deg_ref[...]          # [Np, 1]   f32  out-degree (bincount(src))

    hp = gcn_w_ref.shape[1]     # padded hidden width (multiple of 128)
    n = x0.shape[0]             # padded node count Np

    # --- fused encoder + skip: one MXU pass over the concatenated [Fp, 2*Hp] weight ---
    es = jnp.dot(x0, enc_skip_w_ref[...], preferred_element_type=f32)   # [Np, 2*Hp]
    x = jnp.maximum(es[:, :hp] + enc_b_ref[...], 0.0)                    # relu(enc)
    x_skip = es[:, hp:]                                                  # skip_fc (no bias)

    # row mask: padded rows became relu(enc_b) != 0 -> zero them so the global mean,
    # gamma terms and the layer recurrence are unaffected by padding.
    if n_valid < n:
        row_ids = jax.lax.broadcasted_iota(jnp.int32, (n, 1), 0)
        row_mask = (row_ids < n_valid).astype(f32)                       # [Np, 1]
        x = x * row_mask
    else:
        row_mask = None

    inv_n = 1.0 / n_valid                                                # true-N mean
    # lane-select mask for the sq stash: hoisted out of the layer loop (no CSE in JAX)
    col_ids = jax.lax.broadcasted_iota(jnp.int32, (n, hp), 1)
    lane_mask = col_ids == nhid
    # exact f32 divide on a [Np,1] column: negligible cost, better reference parity
    inv_deg = 1.0 / (deg + 1e-10)

    for _ in range(nlayers):   # static unroll (nlayers is small)
        x_bf = x.astype(bf16)

        # --- GCNConv + relu: x_agg = relu(A_hat @ (x @ W_gcn) + b_gcn) ---
        xw = jnp.dot(x_bf, gcn_w_ref[...], preferred_element_type=f32)
        x_agg = jnp.maximum(
            jnp.dot(a_hat, xw.astype(bf16), preferred_element_type=f32)
            + gcn_b_ref[...], 0.0)
        if row_mask is not None:
            x_agg = x_agg * row_mask   # keep padded rows of x exactly zero next layer

        # --- gamma_smooth (p=2), expanded densely:
        #     deg_i*||x_i||^2 + sum_j A_ij*||x_j||^2 - 2 x_i.(A x)_i
        # fused MXU pass: stash sq into padded lane `nhid` of x (that column of x is 0).
        sq = jnp.sum(x * x, axis=-1, keepdims=True)            # [Np, 1] f32
        if nhid < hp:
            rhs = jnp.where(lane_mask, sq.astype(bf16), x_bf)
            ag = jnp.dot(a_gamma, rhs, preferred_element_type=f32)    # [Np, Hp]
            asq = ag[:, nhid:nhid + 1]                                # a_gamma @ sq
            cross = jnp.sum(x * ag, axis=-1, keepdims=True)           # x[:, nhid] == 0
        else:
            ag = jnp.dot(a_gamma, x_bf, preferred_element_type=f32)
            asq = jnp.dot(a_gamma, sq.astype(bf16), preferred_element_type=f32)
            cross = jnp.sum(x * ag, axis=-1, keepdims=True)
        num = jnp.maximum(deg * sq + asq - 2.0 * cross, 0.0)    # clamp fp cancellation
        gamma_smooth = jnp.tanh(num * inv_deg)                  # [Np, 1]

        # --- gamma_squash (global, p): 1 - tanh(sum_k |x_ik - mean_k|^p) ---
        gmean = jnp.sum(x, axis=0, keepdims=True) * inv_n       # [1, Hp] (true-N mean)
        absd = jnp.abs(x - gmean)
        if p == 2.5:
            powd = absd * absd * jnp.sqrt(absd)                 # 1 transcendental
        elif p == 2.0:
            powd = absd * absd
        else:
            powd = absd ** p
        d = jnp.sum(powd, axis=-1, keepdims=True)               # [Np, 1]
        gamma_squash = 1.0 - jnp.tanh(d)

        # --- dual gate combination: (x + gs*x_agg + gq*x_skip) / (1 + gs + gq) ---
        inv_denom = 1.0 / (1.0 + gamma_smooth + gamma_squash)   # exact [Np,1] divide
        x = (x + gamma_smooth * x_agg + gamma_squash * x_skip) * inv_denom

    # dec: out = x @ W_dec + b_dec  (lane-dense [Np, Cp] output, sliced in the wrapper)
    out_ref[...] = jnp.dot(x.astype(bf16), dec_w_ref[...],
                           preferred_element_type=f32) + dec_b_ref[...]


def _round_up(v, m):
    return (v + m - 1) // m * m


def _vmem_physical_bytes():
    try:
        cap = getattr(pltpu.get_tpu_info(), "vmem_capacity_bytes", None)
        if cap:
            return int(cap)
    except Exception:
        pass
    return 64 << 20   # conservative fallback: v7x per-TensorCore VMEM


def build_dense_graph(src, dst, n, n_pad):
    """Dense adjacencies + out-degree (plain-JAX glue).

    NOTE(perf): these scatter-adds build f32 [Np,Np] arrays in HBM via XLA scatter and
    dominate wall clock for large E/N — cache the returned arrays across forward passes
    when the graph is fixed (or build via sort/segment-sum if edge lists change).
    bf16 edge counts in a_gamma are exact up to 256 parallel edges per (i, j) pair.
    """
    f32 = jnp.float32
    # edge-count adjacency [row=src, col=dst] for gamma_smooth; out-degree = bincount(src)
    a_gamma = jnp.zeros((n_pad, n_pad), f32).at[src, dst].add(1.0)
    deg = jnp.zeros((n_pad,), f32).at[src].add(1.0).reshape(n_pad, 1)

    # PyG gcn_norm: add self-loops, degree at target, sym-normalize, aggregate at target.
    sl = jnp.arange(n, dtype=src.dtype)
    src_sl = jnp.concatenate([src, sl])
    dst_sl = jnp.concatenate([dst, sl])
    deg_hat = jnp.zeros((n_pad,), f32).at[dst_sl].add(1.0)
    dinv = jnp.where(deg_hat > 0, jax.lax.rsqrt(jnp.maximum(deg_hat, 1.0)), 0.0)
    a_hat = jnp.zeros((n_pad, n_pad), f32).at[dst_sl, src_sl].add(
        dinv[src_sl] * dinv[dst_sl])
    return a_gamma.astype(jnp.bfloat16), a_hat.astype(jnp.bfloat16), deg


def dualgate_gnn(x0, src, dst, params, *, nlayers=2, p=2.5):
    """Forward pass of DualGate_GNN (GCN conv, eval mode)."""
    N, nfeat = x0.shape
    nhid = params["enc_w"].shape[1]
    nclass = params["dec_w"].shape[1]
    f32, bf16 = jnp.float32, jnp.bfloat16

    Np = _round_up(N, 128)      # lane-dense adjacencies, full MXU K dim
    Fp = _round_up(nfeat, 128)
    Hp = _round_up(nhid, 128)
    Cp = _round_up(nclass, 128)

    # ---- glue: dense adjacencies & degree (cacheable across calls) ----
    a_gamma, a_hat, deg = build_dense_graph(src, dst, N, Np)

    def pad2(a, r, c):
        return jnp.pad(a, ((0, r - a.shape[0]), (0, c - a.shape[1])))

    # zero-pad to 128 multiples; MXU inputs stored bf16, biases stay f32
    x0p = pad2(x0.astype(f32), Np, Fp).astype(bf16)
    enc_w = pad2(params["enc_w"].astype(f32), Fp, Hp)
    skip_w = pad2(params["skip_w"].astype(f32), Fp, Hp)
    enc_skip_w = jnp.concatenate([enc_w, skip_w], axis=1).astype(bf16)   # [Fp, 2*Hp]
    gcn_w = pad2(params["gcn_w"].astype(f32), Hp, Hp).astype(bf16)
    dec_w = pad2(params["dec_w"].astype(f32), Hp, Cp).astype(bf16)
    enc_b = pad2(params["enc_b"].reshape(1, -1).astype(f32), 1, Hp)
    gcn_b = pad2(params["gcn_b"].reshape(1, -1).astype(f32), 1, Hp)
    dec_b = pad2(params["dec_b"].reshape(1, -1).astype(f32), 1, Cp)

    operands = (x0p, a_gamma, a_hat, deg,
                enc_skip_w, enc_b, gcn_w, gcn_b, dec_w, dec_b)

    # ---- VMEM budget: gridless whole-array blocks are single-buffered; count the live
    #      f32 intermediates (x, x_skip, es, x_agg, ag, xw, powd, ...) explicitly. ----
    in_bytes = sum(int(o.size) * o.dtype.itemsize for o in operands)
    out_bytes = Np * Cp * 4
    interm_bytes = 8 * Np * Hp * 4 + Np * (2 * Hp) * 4
    need = in_bytes + out_bytes + interm_bytes + (4 << 20)      # + compiler headroom
    phys = _vmem_physical_bytes()
    cap = phys - phys // 8      # 56 MiB on v7x (64 MiB), 112 MiB on v5e/v6e (128 MiB)
    if need > cap:
        raise ValueError(
            f"DualGate dense working set {need / 2**20:.1f} MiB exceeds VMEM budget "
            f"{cap / 2**20:.1f} MiB; the row-tiled grid (see TODO) is required at this N.")
    vmem_limit = int(min(max(need, 16 << 20), cap))

    # advisory cost estimate so XLA schedules the kernel vs. the dense scatter glue
    flops = (2 * Np * Fp * (2 * Hp)                       # fused enc + skip
             + nlayers * (2 * Np * Hp * Hp                # x @ W_gcn
                          + 4 * Np * Np * Hp)             # a_hat@xw + a_gamma@rhs
             + 2 * Np * Hp * Cp)                          # dec
    transcendentals = nlayers * (Np * Hp + 2 * Np)        # sqrt(|d|) + two tanh columns
    cost = pl.CostEstimate(flops=flops, transcendentals=transcendentals,
                           bytes_accessed=in_bytes + out_bytes)

    vm = pl.BlockSpec(memory_space=pltpu.MemorySpace.VMEM)
    kernel = functools.partial(dualgate_kernel, nlayers=nlayers, p=float(p),
                               nhid=nhid, n_valid=N)

    out = pl.pallas_call(
        kernel,
        out_shape=jax.ShapeDtypeStruct((Np, Cp), f32),
        in_specs=[vm] * len(operands),
        out_specs=vm,
        compiler_params=pltpu.CompilerParams(vmem_limit_bytes=vmem_limit),
        cost_estimate=cost,
    )(*operands)
    return out[:N, :nclass]


if __name__ == "__main__":
    N, NFEAT, NHID, NCLASS, E = 64, 16, 32, 8, 256
    NLAYERS, P = 2, 2.5

    key = jax.random.PRNGKey(0)
    ks = jax.random.split(key, 10)

    # node features and a deterministic random edge list (directed edges, as in edge_index)
    x0 = jax.random.normal(ks[0], (N, NFEAT), jnp.float32)
    src = jax.random.randint(ks[1], (E,), 0, N, dtype=jnp.int32)
    dst = jax.random.randint(ks[2], (E,), 0, N, dtype=jnp.int32)

    # deterministic synthetic parameters (Linear weights stored [in, out])
    params = {
        "enc_w":  0.1 * jax.random.normal(ks[3], (NFEAT, NHID), jnp.float32),
        "enc_b":  0.1 * jax.random.normal(ks[4], (NHID,), jnp.float32),
        "skip_w": 0.1 * jax.random.normal(ks[5], (NFEAT, NHID), jnp.float32),
        "gcn_w":  0.1 * jax.random.normal(ks[6], (NHID, NHID), jnp.float32),
        "gcn_b":  0.1 * jax.random.normal(ks[7], (NHID,), jnp.float32),
        "dec_w":  0.1 * jax.random.normal(ks[8], (NHID, NCLASS), jnp.float32),
        "dec_b":  0.1 * jax.random.normal(ks[9], (NCLASS,), jnp.float32),
    }

    out = dualgate_gnn(x0, src, dst, params, nlayers=NLAYERS, p=P)
    jax.block_until_ready(out)
    assert out.shape == (N, NCLASS) and out.dtype == jnp.float32
    assert bool(jnp.all(jnp.isfinite(out)))
    print("KERNEL_OK")
</pallas_src>

<mosaic_0001>
module attributes {stable_mosaic.version = 11 : i64} {
  func.func @dualgate_kernel(%arg0: memref<128x128xbf16, #tpu.memory_space<vmem>>, %arg1: memref<128x128xbf16, #tpu.memory_space<vmem>>, %arg2: memref<128x128xbf16, #tpu.memory_space<vmem>>, %arg3: memref<128x1xf32, #tpu.memory_space<vmem>>, %arg4: memref<128x256xbf16, #tpu.memory_space<vmem>>, %arg5: memref<1x128xf32, #tpu.memory_space<vmem>>, %arg6: memref<128x128xbf16, #tpu.memory_space<vmem>>, %arg7: memref<1x128xf32, #tpu.memory_space<vmem>>, %arg8: memref<128x128xbf16, #tpu.memory_space<vmem>>, %arg9: memref<1x128xf32, #tpu.memory_space<vmem>>, %arg10: memref<128x128xf32, #tpu.memory_space<vmem>>) attributes {dimension_semantics = [], scalar_prefetch = 0 : i64, scratch_operands = 0 : i64, tpu.core_type = #tpu.core_type<tc>} {
    %c0 = arith.constant 0 : index
    %c0_0 = arith.constant 0 : index
    %0 = vector.load %arg0[%c0, %c0_0] : memref<128x128xbf16, #tpu.memory_space<vmem>>, vector<128x128xbf16>
    %c0_1 = arith.constant 0 : index
    %c0_2 = arith.constant 0 : index
    %1 = vector.load %arg1[%c0_1, %c0_2] : memref<128x128xbf16, #tpu.memory_space<vmem>>, vector<128x128xbf16>
    %c0_3 = arith.constant 0 : index
    %c0_4 = arith.constant 0 : index
    %2 = vector.load %arg2[%c0_3, %c0_4] : memref<128x128xbf16, #tpu.memory_space<vmem>>, vector<128x128xbf16>
    %c0_5 = arith.constant 0 : index
    %c0_6 = arith.constant 0 : index
    %3 = vector.load %arg3[%c0_5, %c0_6] : memref<128x1xf32, #tpu.memory_space<vmem>>, vector<128x1xf32>
    %c0_7 = arith.constant 0 : index
    %c0_8 = arith.constant 0 : index
    %4 = vector.load %arg4[%c0_7, %c0_8] : memref<128x256xbf16, #tpu.memory_space<vmem>>, vector<128x256xbf16>
    %cst = arith.constant dense<0.000000e+00> : vector<128x256xf32>
    %5 = tpu.matmul %0, %4, %cst {dimension_numbers = #tpu.dot_dimension_numbers<[1], [0], [0], [1], [0, 0, 1, 1], [], []>} : vector<128x128xbf16>, vector<128x256xbf16>, vector<128x256xf32> -> vector<128x256xf32>
    %6 = vector.extract_strided_slice %5 {offsets = [0, 0], sizes = [128, 128], strides = [1, 1]} : vector<128x256xf32> to vector<128x128xf32>
    %c0_9 = arith.constant 0 : index
    %c0_10 = arith.constant 0 : index
    %7 = vector.load %arg5[%c0_9, %c0_10] : memref<1x128xf32, #tpu.memory_space<vmem>>, vector<1x128xf32>
    %8 = vector.broadcast %7 : vector<1x128xf32> to vector<128x128xf32>
    %9 = arith.addf %6, %8 : vector<128x128xf32>
    %cst_11 = arith.constant 0.000000e+00 : f32
    %10 = vector.broadcast %cst_11 : f32 to vector<128x128xf32>
    %11 = arith.maximumf %9, %10 : vector<128x128xf32>
    %12 = vector.extract_strided_slice %5 {offsets = [0, 128], sizes = [128, 128], strides = [1, 1]} : vector<128x256xf32> to vector<128x128xf32>
    %13 = tpu.iota {dimensions = array<i32: 0>} : vector<128x1xi32>
    %c64_i32 = arith.constant 64 : i32
    %14 = vector.broadcast %c64_i32 : i32 to vector<128x1xi32>
    %15 = arith.cmpi slt, %13, %14 : vector<128x1xi32>
    %16 = arith.extui %15 : vector<128x1xi1> to vector<128x1xi32>
    %17 = arith.sitofp %16 : vector<128x1xi32> to vector<128x1xf32>
    %18 = vector.broadcast %17 : vector<128x1xf32> to vector<128x128xf32>
    %19 = arith.mulf %11, %18 : vector<128x128xf32>
    %20 = tpu.iota {dimensions = array<i32: 1>} : vector<128x128xi32>
    %c32_i32 = arith.constant 32 : i32
    %21 = vector.broadcast %c32_i32 : i32 to vector<128x128xi32>
    %22 = arith.cmpi eq, %20, %21 : vector<128x128xi32>
    %cst_12 = arith.constant 1.000000e-10 : f32
    %23 = vector.broadcast %cst_12 : f32 to vector<128x1xf32>
    %24 = arith.addf %3, %23 : vector<128x1xf32>
    %cst_13 = arith.constant 1.000000e+00 : f32
    %25 = vector.broadcast %cst_13 : f32 to vector<128x1xf32>
    %26 = arith.divf %25, %24 : vector<128x1xf32>
    %27 = arith.truncf %19 : vector<128x128xf32> to vector<128x128xbf16>
    %c0_14 = arith.constant 0 : index
    %c0_15 = arith.constant 0 : index
    %28 = vector.load %arg6[%c0_14, %c0_15] : memref<128x128xbf16, #tpu.memory_space<vmem>>, vector<128x128xbf16>
    %cst_16 = arith.constant dense<0.000000e+00> : vector<128x128xf32>
    %29 = tpu.matmul %27, %28, %cst_16 {dimension_numbers = #tpu.dot_dimension_numbers<[1], [0], [0], [1], [0, 0, 1, 1], [], []>} : vector<128x128xbf16>, vector<128x128xbf16>, vector<128x128xf32> -> vector<128x128xf32>
    %30 = arith.truncf %29 : vector<128x128xf32> to vector<128x128xbf16>
    %cst_17 = arith.constant dense<0.000000e+00> : vector<128x128xf32>
    %31 = tpu.matmul %2, %30, %cst_17 {dimension_numbers = #tpu.dot_dimension_numbers<[1], [0], [0], [1], [0, 0, 1, 1], [], []>} : vector<128x128xbf16>, vector<128x128xbf16>, vector<128x128xf32> -> vector<128x128xf32>
    %c0_18 = arith.constant 0 : index
    %c0_19 = arith.constant 0 : index
    %32 = vector.load %arg7[%c0_18, %c0_19] : memref<1x128xf32, #tpu.memory_space<vmem>>, vector<1x128xf32>
    %33 = vector.broadcast %32 : vector<1x128xf32> to vector<128x128xf32>
    %34 = arith.addf %31, %33 : vector<128x128xf32>
    %cst_20 = arith.constant 0.000000e+00 : f32
    %35 = vector.broadcast %cst_20 : f32 to vector<128x128xf32>
    %36 = arith.maximumf %34, %35 : vector<128x128xf32>
    %37 = vector.broadcast %17 : vector<128x1xf32> to vector<128x128xf32>
    %38 = arith.mulf %36, %37 : vector<128x128xf32>
    %39 = arith.mulf %19, %19 : vector<128x128xf32>
    %cst_21 = arith.constant dense<0.000000e+00> : vector<128xf32>
    %40 = vector.multi_reduction <add>, %39, %cst_21 [1] : vector<128x128xf32> to vector<128xf32>
    %41 = vector.shape_cast %40 : vector<128xf32> to vector<128x1xf32>
    %42 = arith.truncf %41 : vector<128x1xf32> to vector<128x1xbf16>
    %43 = vector.shape_cast %42 : vector<128x1xbf16> to vector<128x1xbf16>
    %44 = vector.broadcast %43 : vector<128x1xbf16> to vector<128x128xbf16>
    %45 = arith.select %22, %44, %27 : vector<128x128xi1>, vector<128x128xbf16>
    %cst_22 = arith.constant dense<0.000000e+00> : vector<128x128xf32>
    %46 = tpu.matmul %1, %45, %cst_22 {dimension_numbers = #tpu.dot_dimension_numbers<[1], [0], [0], [1], [0, 0, 1, 1], [], []>} : vector<128x128xbf16>, vector<128x128xbf16>, vector<128x128xf32> -> vector<128x128xf32>
    %47 = vector.extract_strided_slice %46 {offsets = [0, 32], sizes = [128, 1], strides = [1, 1]} : vector<128x128xf32> to vector<128x1xf32>
    %48 = arith.mulf %19, %46 : vector<128x128xf32>
    %cst_23 = arith.constant dense<0.000000e+00> : vector<128xf32>
    %49 = vector.multi_reduction <add>, %48, %cst_23 [1] : vector<128x128xf32> to vector<128xf32>
    %50 = vector.shape_cast %49 : vector<128xf32> to vector<128x1xf32>
    %51 = arith.mulf %3, %41 : vector<128x1xf32>
    %52 = arith.addf %51, %47 : vector<128x1xf32>
    %cst_24 = arith.constant 2.000000e+00 : f32
    %53 = vector.broadcast %cst_24 : f32 to vector<128x1xf32>
    %54 = arith.mulf %53, %50 : vector<128x1xf32>
    %55 = arith.subf %52, %54 : vector<128x1xf32>
    %cst_25 = arith.constant 0.000000e+00 : f32
    %56 = vector.broadcast %cst_25 : f32 to vector<128x1xf32>
    %57 = arith.maximumf %55, %56 : vector<128x1xf32>
    %58 = arith.mulf %57, %26 : vector<128x1xf32>
    %59 = math.tanh %58 : vector<128x1xf32>
    %cst_26 = arith.constant dense<0.000000e+00> : vector<128xf32>
    %60 = vector.multi_reduction <add>, %19, %cst_26 [0] : vector<128x128xf32> to vector<128xf32>
    %61 = vector.shape_cast %60 : vector<128xf32> to vector<1x128xf32>
    %cst_27 = arith.constant 1.562500e-02 : f32
    %62 = vector.broadcast %cst_27 : f32 to vector<1x128xf32>
    %63 = arith.mulf %61, %62 : vector<1x128xf32>
    %64 = vector.broadcast %63 : vector<1x128xf32> to vector<128x128xf32>
    %65 = arith.subf %19, %64 : vector<128x128xf32>
    %66 = math.absf %65 : vector<128x128xf32>
    %67 = arith.mulf %66, %66 : vector<128x128xf32>
    %68 = math.sqrt %66 : vector<128x128xf32>
    %69 = arith.mulf %67, %68 : vector<128x128xf32>
    %cst_28 = arith.constant dense<0.000000e+00> : vector<128xf32>
    %70 = vector.multi_reduction <add>, %69, %cst_28 [1] : vector<128x128xf32> to vector<128xf32>
    %71 = vector.shape_cast %70 : vector<128xf32> to vector<128x1xf32>
    %72 = math.tanh %71 : vector<128x1xf32>
    %cst_29 = arith.constant 1.000000e+00 : f32
    %73 = vector.broadcast %cst_29 : f32 to vector<128x1xf32>
    %74 = arith.subf %73, %72 : vector<128x1xf32>
    %cst_30 = arith.constant 1.000000e+00 : f32
    %75 = vector.broadcast %cst_30 : f32 to vector<128x1xf32>
    %76 = arith.addf %75, %59 : vector<128x1xf32>
    %77 = arith.addf %76, %74 : vector<128x1xf32>
    %cst_31 = arith.constant 1.000000e+00 : f32
    %78 = vector.broadcast %cst_31 : f32 to vector<128x1xf32>
    %79 = arith.divf %78, %77 : vector<128x1xf32>
    %80 = vector.broadcast %59 : vector<128x1xf32> to vector<128x128xf32>
    %81 = arith.mulf %80, %38 : vector<128x128xf32>
    %82 = arith.addf %19, %81 : vector<128x128xf32>
    %83 = vector.broadcast %74 : vector<128x1xf32> to vector<128x128xf32>
    %84 = arith.mulf %83, %12 : vector<128x128xf32>
    %85 = arith.addf %82, %84 : vector<128x128xf32>
    %86 = vector.broadcast %79 : vector<128x1xf32> to vector<128x128xf32>
    %87 = arith.mulf %85, %86 : vector<128x128xf32>
    %88 = arith.truncf %87 : vector<128x128xf32> to vector<128x128xbf16>
    %c0_32 = arith.constant 0 : index
    %c0_33 = arith.constant 0 : index
    %89 = vector.load %arg6[%c0_32, %c0_33] : memref<128x128xbf16, #tpu.memory_space<vmem>>, vector<128x128xbf16>
    %cst_34 = arith.constant dense<0.000000e+00> : vector<128x128xf32>
    %90 = tpu.matmul %88, %89, %cst_34 {dimension_numbers = #tpu.dot_dimension_numbers<[1], [0], [0], [1], [0, 0, 1, 1], [], []>} : vector<128x128xbf16>, vector<128x128xbf16>, vector<128x128xf32> -> vector<128x128xf32>
    %91 = arith.truncf %90 : vector<128x128xf32> to vector<128x128xbf16>
    %cst_35 = arith.constant dense<0.000000e+00> : vector<128x128xf32>
    %92 = tpu.matmul %2, %91, %cst_35 {dimension_numbers = #tpu.dot_dimension_numbers<[1], [0], [0], [1], [0, 0, 1, 1], [], []>} : vector<128x128xbf16>, vector<128x128xbf16>, vector<128x128xf32> -> vector<128x128xf32>
    %c0_36 = arith.constant 0 : index
    %c0_37 = arith.constant 0 : index
    %93 = vector.load %arg7[%c0_36, %c0_37] : memref<1x128xf32, #tpu.memory_space<vmem>>, vector<1x128xf32>
    %94 = vector.broadcast %93 : vector<1x128xf32> to vector<128x128xf32>
    %95 = arith.addf %92, %94 : vector<128x128xf32>
    %cst_38 = arith.constant 0.000000e+00 : f32
    %96 = vector.broadcast %cst_38 : f32 to vector<128x128xf32>
    %97 = arith.maximumf %95, %96 : vector<128x128xf32>
    %98 = vector.broadcast %17 : vector<128x1xf32> to vector<128x128xf32>
    %99 = arith.mulf %97, %98 : vector<128x128xf32>
    %100 = arith.mulf %87, %87 : vector<128x128xf32>
    %cst_39 = arith.constant dense<0.000000e+00> : vector<128xf32>
    %101 = vector.multi_reduction <add>, %100, %cst_39 [1] : vector<128x128xf32> to vector<128xf32>
    %102 = vector.shape_cast %101 : vector<128xf32> to vector<128x1xf32>
    %103 = arith.truncf %102 : vector<128x1xf32> to vector<128x1xbf16>
    %104 = vector.shape_cast %103 : vector<128x1xbf16> to vector<128x1xbf16>
    %105 = vector.broadcast %104 : vector<128x1xbf16> to vector<128x128xbf16>
    %106 = arith.select %22, %105, %88 : vector<128x128xi1>, vector<128x128xbf16>
    %cst_40 = arith.constant dense<0.000000e+00> : vector<128x128xf32>
    %107 = tpu.matmul %1, %106, %cst_40 {dimension_numbers = #tpu.dot_dimension_numbers<[1], [0], [0], [1], [0, 0, 1, 1], [], []>} : vector<128x128xbf16>, vector<128x128xbf16>, vector<128x128xf32> -> vector<128x128xf32>
    %108 = vector.extract_strided_slice %107 {offsets = [0, 32], sizes = [128, 1], strides = [1, 1]} : vector<128x128xf32> to vector<128x1xf32>
    %109 = arith.mulf %87, %107 : vector<128x128xf32>
    %cst_41 = arith.constant dense<0.000000e+00> : vector<128xf32>
    %110 = vector.multi_reduction <add>, %109, %cst_41 [1] : vector<128x128xf32> to vector<128xf32>
    %111 = vector.shape_cast %110 : vector<128xf32> to vector<128x1xf32>
    %112 = arith.mulf %3, %102 : vector<128x1xf32>
    %113 = arith.addf %112, %108 : vector<128x1xf32>
    %cst_42 = arith.constant 2.000000e+00 : f32
    %114 = vector.broadcast %cst_42 : f32 to vector<128x1xf32>
    %115 = arith.mulf %114, %111 : vector<128x1xf32>
    %116 = arith.subf %113, %115 : vector<128x1xf32>
    %cst_43 = arith.constant 0.000000e+00 : f32
    %117 = vector.broadcast %cst_43 : f32 to vector<128x1xf32>
    %118 = arith.maximumf %116, %117 : vector<128x1xf32>
    %119 = arith.mulf %118, %26 : vector<128x1xf32>
    %120 = math.tanh %119 : vector<128x1xf32>
    %cst_44 = arith.constant dense<0.000000e+00> : vector<128xf32>
    %121 = vector.multi_reduction <add>, %87, %cst_44 [0] : vector<128x128xf32> to vector<128xf32>
    %122 = vector.shape_cast %121 : vector<128xf32> to vector<1x128xf32>
    %cst_45 = arith.constant 1.562500e-02 : f32
    %123 = vector.broadcast %cst_45 : f32 to vector<1x128xf32>
    %124 = arith.mulf %122, %123 : vector<1x128xf32>
    %125 = vector.broadcast %124 : vector<1x128xf32> to vector<128x128xf32>
    %126 = arith.subf %87, %125 : vector<128x128xf32>
    %127 = math.absf %126 : vector<128x128xf32>
    %128 = arith.mulf %127, %127 : vector<128x128xf32>
    %129 = math.sqrt %127 : vector<128x128xf32>
    %130 = arith.mulf %128, %129 : vector<128x128xf32>
    %cst_46 = arith.constant dense<0.000000e+00> : vector<128xf32>
    %131 = vector.multi_reduction <add>, %130, %cst_46 [1] : vector<128x128xf32> to vector<128xf32>
    %132 = vector.shape_cast %131 : vector<128xf32> to vector<128x1xf32>
    %133 = math.tanh %132 : vector<128x1xf32>
    %cst_47 = arith.constant 1.000000e+00 : f32
    %134 = vector.broadcast %cst_47 : f32 to vector<128x1xf32>
    %135 = arith.subf %134, %133 : vector<128x1xf32>
    %cst_48 = arith.constant 1.000000e+00 : f32
    %136 = vector.broadcast %cst_48 : f32 to vector<128x1xf32>
    %137 = arith.addf %136, %120 : vector<128x1xf32>
    %138 = arith.addf %137, %135 : vector<128x1xf32>
    %cst_49 = arith.constant 1.000000e+00 : f32
    %139 = vector.broadcast %cst_49 : f32 to vector<128x1xf32>
    %140 = arith.divf %139, %138 : vector<128x1xf32>
    %141 = vector.broadcast %120 : vector<128x1xf32> to vector<128x128xf32>
    %142 = arith.mulf %141, %99 : vector<128x128xf32>
    %143 = arith.addf %87, %142 : vector<128x128xf32>
    %144 = vector.broadcast %135 : vector<128x1xf32> to vector<128x128xf32>
    %145 = arith.mulf %144, %12 : vector<128x128xf32>
    %146 = arith.addf %143, %145 : vector<128x128xf32>
    %147 = vector.broadcast %140 : vector<128x1xf32> to vector<128x128xf32>
    %148 = arith.mulf %146, %147 : vector<128x128xf32>
    %149 = arith.truncf %148 : vector<128x128xf32> to vector<128x128xbf16>
    %c0_50 = arith.constant 0 : index
    %c0_51 = arith.constant 0 : index
    %150 = vector.load %arg8[%c0_50, %c0_51] : memref<128x128xbf16, #tpu.memory_space<vmem>>, vector<128x128xbf16>
    %cst_52 = arith.constant dense<0.000000e+00> : vector<128x128xf32>
    %151 = tpu.matmul %149, %150, %cst_52 {dimension_numbers = #tpu.dot_dimension_numbers<[1], [0], [0], [1], [0, 0, 1, 1], [], []>} : vector<128x128xbf16>, vector<128x128xbf16>, vector<128x128xf32> -> vector<128x128xf32>
    %c0_53 = arith.constant 0 : index
    %c0_54 = arith.constant 0 : index
    %152 = vector.load %arg9[%c0_53, %c0_54] : memref<1x128xf32, #tpu.memory_space<vmem>>, vector<1x128xf32>
    %153 = vector.broadcast %152 : vector<1x128xf32> to vector<128x128xf32>
    %154 = arith.addf %151, %153 : vector<128x128xf32>
    %c0_55 = arith.constant 0 : index
    %c0_56 = arith.constant 0 : index
    %155 = vector.load %arg10[%c0_55, %c0_56] : memref<128x128xf32, #tpu.memory_space<vmem>>, vector<128x128xf32>
    tpu.vector_store %arg10[%c0_55, %c0_56], %154 {strides = array<i32>} : memref<128x128xf32, #tpu.memory_space<vmem>>, vector<128x128xf32>,
    return
  }
}

</mosaic_0001>

<llo_original>
// kernel: tpu_custom_call.1
$region0: #{tpu_custom_call.1}
  #allocation0 [shape = 'u32[]', space=smem, size = 0x4, offset = 0x4, fixed_abs, tag = 'smem constant byte address 0x4 - core index']
  #allocation1 [shape = 'u32[72,128]{1,0:T(1,128)}', space=vmem, size = 0x9000, scoped, tag = 'internal scratch']
  %s0 = inlined_call_operand.hbm [shape: bf16[128,128], index: 0, kind: input, shape index: {}]
  %s1 = inlined_call_operand.hbm [shape: bf16[128,128], index: 1, kind: input, shape index: {}]
  %s2 = inlined_call_operand.hbm [shape: bf16[128,128], index: 2, kind: input, shape index: {}]
  %s3 = inlined_call_operand.vmem [shape: f32[128,1], index: 3, kind: input, shape index: {}]
  %s4 = inlined_call_operand.vmem [shape: bf16[128,256], index: 4, kind: input, shape index: {}]
  %s5 = inlined_call_operand.vmem [shape: f32[1,128], index: 5, kind: input, shape index: {}]
  %s6 = inlined_call_operand.hbm [shape: bf16[128,128], index: 6, kind: input, shape index: {}]
  %s7 = inlined_call_operand.vmem [shape: f32[1,128], index: 7, kind: input, shape index: {}]
  %s8 = inlined_call_operand.hbm [shape: bf16[128,128], index: 8, kind: input, shape index: {}]
  %s9 = inlined_call_operand.vmem [shape: f32[1,128], index: 9, kind: input, shape index: {}]
  %s10 = inlined_call_operand.hbm [shape: f32[128,128], index: 10, kind: output, shape index: {}]
  %s11 = sld [smem:[#allocation0]]
  $region70: #{tpu_custom_call.1} parent=0
    _
  %s13 = ssub.s32 1, %s11
  %s14 = scalar_select 0, %s13, %s11
  $region1: #{tpu_custom_call.1} parent=0
    #allocation2 [shape = 'u8[32768]{0}', space=vmem, size = 0x8000, scoped, tag = 'input window, operand 0, single buffered']
    #allocation3 [shape = 's32[1]{0}', space=sflag, size = 0x4, scoped, tag = 'scoped memory for tpu_custom_call.1']
    #allocation4 [shape = 's32[1]{0}', space=sflag, size = 0x4, scoped, tag = 'scoped memory for tpu_custom_call.1']
    #allocation5 [shape = 'u8[32768]{0}', space=vmem, size = 0x8000, scoped, tag = 'input window, operand 1, single buffered']
    #allocation6 [shape = 's32[1]{0}', space=sflag, size = 0x4, scoped, tag = 'scoped memory for tpu_custom_call.1']
    #allocation7 [shape = 'u8[32768]{0}', space=vmem, size = 0x8000, scoped, tag = 'input window, operand 2, single buffered']
    #allocation8 [shape = 'u8[32768]{0}', space=vmem, size = 0x8000, scoped, tag = 'input window, operand 6, single buffered']
    #allocation9 [shape = 's32[1]{0}', space=sflag, size = 0x4, scoped, tag = 'scoped memory for tpu_custom_call.1']
    #allocation10 [shape = 'u8[32768]{0}', space=vmem, size = 0x8000, scoped, tag = 'input window, operand 8, single buffered']
    #allocation11 [shape = 'u8[65536]{0}', space=vmem, size = 0x10000, scoped, tag = 'output window, operand 0, single buffered']
    %15 = vsyncpa [#allocation3], 0
    %16 = vsyncpa [#allocation6], 0
    %17 = vsyncpa [#allocation9], 0
    %18 = vsyncpa [#allocation4], 0
    // Predicated region
    $region2: #{tpu_custom_call.1} parent=1 // pred_check
      _
    $region3: #{tpu_custom_call.1} parent=1 // pred_check_branch
      %20 = sbr.rel (0) target = $region5
    $region4: #{tpu_custom_call.1} parent=1 // pred_region
      %22 = vsyncadd [#allocation3], 0
      %s23 = sshll.u32 %s0, 4
      %s24 = int_to_ptr.hbm [resolvable:$true] %s23
      %s25 = sshll.u32 [#allocation2], 4
      %s26 = int_to_ptr.vmem [resolvable:$true] %s25
      %31 = dma.hbm_to_vmem [thread:$0]  %s24, 1024, %s26, [#allocation3], 64, 64, 4
    $region5: #{tpu_custom_call.1} parent=1 // pred_fallthru
      _
    // Predicated region
    $region6: #{tpu_custom_call.1} parent=1 // pred_check
      _
    $region7: #{tpu_custom_call.1} parent=1 // pred_check_branch
      %33 = sbr.rel (0) target = $region9
    $region8: #{tpu_custom_call.1} parent=1 // pred_region
      %35 = vsyncadd [#allocation6], 0
      %s36 = sshll.u32 %s1, 4
      %s37 = int_to_ptr.hbm [resolvable:$true] %s36
      %s38 = sshll.u32 [#allocation5], 4
      %s39 = int_to_ptr.vmem [resolvable:$true] %s38
      %44 = dma.hbm_to_vmem [thread:$0]  %s37, 1024, %s39, [#allocation6], 64, 64, 4
    $region9: #{tpu_custom_call.1} parent=1 // pred_fallthru
      _
    // Predicated region
    $region10: #{tpu_custom_call.1} parent=1 // pred_check
      _
    $region11: #{tpu_custom_call.1} parent=1 // pred_check_branch
      %46 = sbr.rel (0) target = $region13
    $region12: #{tpu_custom_call.1} parent=1 // pred_region
      %48 = vsyncadd [#allocation6], 0
      %s49 = sshll.u32 %s2, 4
      %s50 = int_to_ptr.hbm [resolvable:$true] %s49
      %s51 = sshll.u32 [#allocation7], 4
      %s52 = int_to_ptr.vmem [resolvable:$true] %s51
      %57 = dma.hbm_to_vmem [thread:$0]  %s50, 1024, %s52, [#allocation6], 64, 64, 4
    $region13: #{tpu_custom_call.1} parent=1 // pred_fallthru
      _
    // Predicated region
    $region14: #{tpu_custom_call.1} parent=1 // pred_check
      _
    $region15: #{tpu_custom_call.1} parent=1 // pred_check_branch
      %59 = sbr.rel (0) target = $region17
    $region16: #{tpu_custom_call.1} parent=1 // pred_region
      _
    $region17: #{tpu_custom_call.1} parent=1 // pred_fallthru
      _
    // Predicated region
    $region18: #{tpu_custom_call.1} parent=1 // pred_check
      _
    $region19: #{tpu_custom_call.1} parent=1 // pred_check_branch
      %61 = sbr.rel (0) target = $region21
    $region20: #{tpu_custom_call.1} parent=1 // pred_region
      _
    $region21: #{tpu_custom_call.1} parent=1 // pred_fallthru
      _
    // Predicated region
    $region22: #{tpu_custom_call.1} parent=1 // pred_check
      _
    $region23: #{tpu_custom_call.1} parent=1 // pred_check_branch
      %63 = sbr.rel (0) target = $region25
    $region24: #{tpu_custom_call.1} parent=1 // pred_region
      _
    $region25: #{tpu_custom_call.1} parent=1 // pred_fallthru
      _
    // Predicated region
    $region26: #{tpu_custom_call.1} parent=1 // pred_check
      _
    $region27: #{tpu_custom_call.1} parent=1 // pred_check_branch
      %65 = sbr.rel (0) target = $region29
    $region28: #{tpu_custom_call.1} parent=1 // pred_region
      %67 = vsyncadd [#allocation9], 0
      %s68 = sshll.u32 %s6, 4
      %s69 = int_to_ptr.hbm [resolvable:$true] %s68
      %s70 = sshll.u32 [#allocation8], 4
      %s71 = int_to_ptr.vmem [resolvable:$true] %s70
      %76 = dma.hbm_to_vmem [thread:$0]  %s69, 1024, %s71, [#allocation9], 64, 64, 4
    $region29: #{tpu_custom_call.1} parent=1 // pred_fallthru
      _
    // Predicated region
    $region30: #{tpu_custom_call.1} parent=1 // pred_check
      _
    $region31: #{tpu_custom_call.1} parent=1 // pred_check_branch
      %78 = sbr.rel (0) target = $region33
    $region32: #{tpu_custom_call.1} parent=1 // pred_region
      _
    $region33: #{tpu_custom_call.1} parent=1 // pred_fallthru
      _
    // Predicated region
    $region34: #{tpu_custom_call.1} parent=1 // pred_check
      _
    $region35: #{tpu_custom_call.1} parent=1 // pred_check_branch
      %80 = sbr.rel (0) target = $region37
    $region36: #{tpu_custom_call.1} parent=1 // pred_region
      %82 = vsyncadd [#allocation9], 0
      %s83 = sshll.u32 %s8, 4
      %s84 = int_to_ptr.hbm [resolvable:$true] %s83
      %s85 = sshll.u32 [#allocation10], 4
      %s86 = int_to_ptr.vmem [resolvable:$true] %s85
      %91 = dma.hbm_to_vmem [thread:$0]  %s84, 1024, %s86, [#allocation9], 64, 64, 4
    $region37: #{tpu_custom_call.1} parent=1 // pred_fallthru
      _
    // Predicated region
    $region38: #{tpu_custom_call.1} parent=1 // pred_check
      _
    $region39: #{tpu_custom_call.1} parent=1 // pred_check_branch
      %93 = sbr.rel (0) target = $region41
    $region40: #{tpu_custom_call.1} parent=1 // pred_region
      _
    $region41: #{tpu_custom_call.1} parent=1 // pred_fallthru
      _
    // Predicated region
    $region42: #{tpu_custom_call.1} parent=1 // pred_check
      _
    $region43: #{tpu_custom_call.1} parent=1 // pred_check_branch
      %95 = sbr.rel (0) target = $region45
    $region44: #{tpu_custom_call.1} parent=1 // pred_region
      %97 = dma.done [#allocation3], 1024
    $region45: #{tpu_custom_call.1} parent=1 // pred_fallthru
      _
    // Predicated region
    $region46: #{tpu_custom_call.1} parent=1 // pred_check
      _
    $region47: #{tpu_custom_call.1} parent=1 // pred_check_branch
      %99 = sbr.rel (0) target = $region49
    $region48: #{tpu_custom_call.1} parent=1 // pred_region
      %101 = dma.done [#allocation6], 1024
    $region49: #{tpu_custom_call.1} parent=1 // pred_fallthru
      _
    // Predicated region
    $region50: #{tpu_custom_call.1} parent=1 // pred_check
      _
    $region51: #{tpu_custom_call.1} parent=1 // pred_check_branch
      %103 = sbr.rel (0) target = $region53
    $region52: #{tpu_custom_call.1} parent=1 // pred_region
      %105 = dma.done [#allocation6], 1024
    $region53: #{tpu_custom_call.1} parent=1 // pred_fallthru
      _
    // Predicated region
    $region54: #{tpu_custom_call.1} parent=1 // pred_check
      _
    $region55: #{tpu_custom_call.1} parent=1 // pred_check_branch
      %107 = sbr.rel (0) target = $region57
    $region56: #{tpu_custom_call.1} parent=1 // pred_region
      %109 = dma.done [#allocation9], 1024
    $region57: #{tpu_custom_call.1} parent=1 // pred_fallthru
      _
    // Predicated region
    $region58: #{tpu_custom_call.1} parent=1 // pred_check
      _
    $region59: #{tpu_custom_call.1} parent=1 // pred_check_branch
      %111 = sbr.rel (0) target = $region61
    $region60: #{tpu_custom_call.1} parent=1 // pred_region
      %113 = dma.done [#allocation9], 1024
    $region61: #{tpu_custom_call.1} parent=1 // pred_fallthru
      _
    %v114 = vld [vmem:[#allocation2] sm:$0xf]
    %v115 = vld [vmem:[#allocation2 + $0x4] sm:$0xf]
    %v116 = vld [vmem:[#allocation2 + $0x8] sm:$0xf]
    %v117 = vld [vmem:[#allocation2 + $0xc] sm:$0xf]
    %v118 = vld [vmem:[#allocation2 + $0x10] sm:$0xf]
    %v119 = vld [vmem:[#allocation2 + $0x14] sm:$0xf]
    %v120 = vld [vmem:[#allocation2 + $0x18] sm:$0xf]
    %v121 = vld [vmem:[#allocation2 + $0x1c] sm:$0xf]
    %v122 = vld [vmem:[#allocation2 + $0x20] sm:$0xf]
    %v123 = vld [vmem:[#allocation2 + $0x24] sm:$0xf]
    %v124 = vld [vmem:[#allocation2 + $0x28] sm:$0xf]
    %v125 = vld [vmem:[#allocation2 + $0x2c] sm:$0xf]
    %v126 = vld [vmem:[#allocation2 + $0x30] sm:$0xf]
    %v127 = vld [vmem:[#allocation2 + $0x34] sm:$0xf]
    %v128 = vld [vmem:[#allocation2 + $0x38] sm:$0xf]
    %v129 = vld [vmem:[#allocation2 + $0x3c] sm:$0xf]
    %v130 = vld [vmem:[#allocation5] sm:$0xf]
    %v131 = vld [vmem:[#allocation5 + $0x4] sm:$0xf]
    %v132 = vld [vmem:[#allocation5 + $0x8] sm:$0xf]
    %v133 = vld [vmem:[#allocation5 + $0xc] sm:$0xf]
    %v134 = vld [vmem:[#allocation5 + $0x10] sm:$0xf]
    %v135 = vld [vmem:[#allocation5 + $0x14] sm:$0xf]
    %v136 = vld [vmem:[#allocation5 + $0x18] sm:$0xf]
    %v137 = vld [vmem:[#allocation5 + $0x1c] sm:$0xf]
    %v138 = vld [vmem:[#allocation5 + $0x20] sm:$0xf]
    %v139 = vld [vmem:[#allocation5 + $0x24] sm:$0xf]
    %v140 = vld [vmem:[#allocation5 + $0x28] sm:$0xf]
    %v141 = vld [vmem:[#allocation5 + $0x2c] sm:$0xf]
    %v142 = vld [vmem:[#allocation5 + $0x30] sm:$0xf]
    %v143 = vld [vmem:[#allocation5 + $0x34] sm:$0xf]
    %v144 = vld [vmem:[#allocation5 + $0x38] sm:$0xf]
    %v145 = vld [vmem:[#allocation5 + $0x3c] sm:$0xf]
    %v146 = vld [vmem:[#allocation7] sm:$0xf]
    %v147 = vld [vmem:[#allocation7 + $0x4] sm:$0xf]
    %v148 = vld [vmem:[#allocation7 + $0x8] sm:$0xf]
    %v149 = vld [vmem:[#allocation7 + $0xc] sm:$0xf]
    %v150 = vld [vmem:[#allocation7 + $0x10] sm:$0xf]
    %v151 = vld [vmem:[#allocation7 + $0x14] sm:$0xf]
    %v152 = vld [vmem:[#allocation7 + $0x18] sm:$0xf]
    %v153 = vld [vmem:[#allocation7 + $0x1c] sm:$0xf]
    %v154 = vld [vmem:[#allocation7 + $0x20] sm:$0xf]
    %v155 = vld [vmem:[#allocation7 + $0x24] sm:$0xf]
    %v156 = vld [vmem:[#allocation7 + $0x28] sm:$0xf]
    %v157 = vld [vmem:[#allocation7 + $0x2c] sm:$0xf]
    %v158 = vld [vmem:[#allocation7 + $0x30] sm:$0xf]
    %v159 = vld [vmem:[#allocation7 + $0x34] sm:$0xf]
    %v160 = vld [vmem:[#allocation7 + $0x38] sm:$0xf]
    %v161 = vld [vmem:[#allocation7 + $0x3c] sm:$0xf]
    %v162 = vld [vmem:[%s3] sm:$0xff]
    %v163 = vld [vmem:[%s3 + $0x8] sm:$0xff]
    %v164 = vld [vmem:[%s3 + $0x10] sm:$0xff]
    %v165 = vld [vmem:[%s3 + $0x18] sm:$0xff]
    %v166 = vld [vmem:[%s3 + $0x20] sm:$0xff]
    %v167 = vld [vmem:[%s3 + $0x28] sm:$0xff]
    %v168 = vld [vmem:[%s3 + $0x30] sm:$0xff]
    %v169 = vld [vmem:[%s3 + $0x38] sm:$0xff]
    %v170 = vld [vmem:[%s3 + $0x40] sm:$0xff]
    %v171 = vld [vmem:[%s3 + $0x48] sm:$0xff]
    %v172 = vld [vmem:[%s3 + $0x50] sm:$0xff]
    %v173 = vld [vmem:[%s3 + $0x58] sm:$0xff]
    %v174 = vld [vmem:[%s3 + $0x60] sm:$0xff]
    %v175 = vld [vmem:[%s3 + $0x68] sm:$0xff]
    %v176 = vld [vmem:[%s3 + $0x70] sm:$0xff]
    %v177 = vld [vmem:[%s3 + $0x78] sm:$0xff]
    %v178 = vld [vmem:[%s4] sm:$0xff]
    %v179 = vld [vmem:[%s4 + $0x8] sm:$0xff]
    %v180 = vld [vmem:[%s4 + $0x10] sm:$0xff]
    %v181 = vld [vmem:[%s4 + $0x18] sm:$0xff]
    %v182 = vld [vmem:[%s4 + $0x20] sm:$0xff]
    %v183 = vld [vmem:[%s4 + $0x28] sm:$0xff]
    %v184 = vld [vmem:[%s4 + $0x30] sm:$0xff]
    %v185 = vld [vmem:[%s4 + $0x38] sm:$0xff]
    %v186 = vld [vmem:[%s4 + $0x40] sm:$0xff]
    %v187 = vld [vmem:[%s4 + $0x48] sm:$0xff]
    %v188 = vld [vmem:[%s4 + $0x50] sm:$0xff]
    %v189 = vld [vmem:[%s4 + $0x58] sm:$0xff]
    %v190 = vld [vmem:[%s4 + $0x60] sm:$0xff]
    %v191 = vld [vmem:[%s4 + $0x68] sm:$0xff]
    %v192 = vld [vmem:[%s4 + $0x70] sm:$0xff]
    %v193 = vld [vmem:[%s4 + $0x78] sm:$0xff]
    %v210 = vunpack.c.l.b16 %v114
    %v211 = vunpack.c.l.b16 %v115
    %v212 = vunpack.c.l.b16 %v116
    %v213 = vunpack.c.l.b16 %v117
    %v214 = vunpack.c.l.b16 %v118
    %v215 = vunpack.c.l.b16 %v119
    %v216 = vunpack.c.l.b16 %v120
    %v217 = vunpack.c.l.b16 %v121
    %v218 = vunpack.c.l.b16 %v122
    %v219 = vunpack.c.l.b16 %v123
    %v220 = vunpack.c.l.b16 %v124
    %v221 = vunpack.c.l.b16 %v125
    %v222 = vunpack.c.l.b16 %v126
    %v223 = vunpack.c.l.b16 %v127
    %v224 = vunpack.c.l.b16 %v128
    %v225 = vunpack.c.l.b16 %v129
    %v226 = vpack.c.b16 %v211, %v210
    %v227 = vpack.c.b16 %v213, %v212
    %v228 = vpack.c.b16 %v215, %v214
    %v229 = vpack.c.b16 %v217, %v216
    %v230 = vpack.c.b16 %v219, %v218
    %v231 = vpack.c.b16 %v221, %v220
    %v232 = vpack.c.b16 %v223, %v222
    %v233 = vpack.c.b16 %v225, %v224
    %v258 = vunpack.c.l.b16 %v178
    %v259 = vunpack.c.h.b16 %v178
    %v260 = vunpack.c.l.b16 %v179
    %v261 = vunpack.c.h.b16 %v179
    %v262 = vunpack.c.l.b16 %v180
    %v263 = vunpack.c.h.b16 %v180
    %v264 = vunpack.c.l.b16 %v181
    %v265 = vunpack.c.h.b16 %v181
    %v266 = vunpack.c.l.b16 %v182
    %v267 = vunpack.c.h.b16 %v182
    %v268 = vunpack.c.l.b16 %v183
    %v269 = vunpack.c.h.b16 %v183
    %v270 = vunpack.c.l.b16 %v184
    %v271 = vunpack.c.h.b16 %v184
    %v272 = vunpack.c.l.b16 %v185
    %v273 = vunpack.c.h.b16 %v185
    %v274 = vunpack.c.l.b16 %v186
    %v275 = vunpack.c.h.b16 %v186
    %v276 = vunpack.c.l.b16 %v187
    %v277 = vunpack.c.h.b16 %v187
    %v278 = vunpack.c.l.b16 %v188
    %v279 = vunpack.c.h.b16 %v188
    %v280 = vunpack.c.l.b16 %v189
    %v281 = vunpack.c.h.b16 %v189
    %v282 = vunpack.c.l.b16 %v190
    %v283 = vunpack.c.h.b16 %v190
    %v284 = vunpack.c.l.b16 %v191
    %v285 = vunpack.c.h.b16 %v191
    %v286 = vunpack.c.l.b16 %v192
    %v287 = vunpack.c.h.b16 %v192
    %v288 = vunpack.c.l.b16 %v193
    %v289 = vunpack.c.h.b16 %v193
    %v290 = vpack.c.b16 %v260, %v258
    %v291 = vpack.c.b16 %v261, %v259
    %v292 = vpack.c.b16 %v264, %v262
    %v293 = vpack.c.b16 %v265, %v263
    %v294 = vpack.c.b16 %v268, %v266
    %v295 = vpack.c.b16 %v269, %v267
    %v296 = vpack.c.b16 %v272, %v270
    %v297 = vpack.c.b16 %v273, %v271
    %v298 = vpack.c.b16 %v276, %v274
    %v299 = vpack.c.b16 %v277, %v275
    %v300 = vpack.c.b16 %v280, %v278
    %v301 = vpack.c.b16 %v281, %v279
    %v302 = vpack.c.b16 %v284, %v282
    %v303 = vpack.c.b16 %v285, %v283
    %v304 = vpack.c.b16 %v288, %v286
    %v305 = vpack.c.b16 %v289, %v287
    %322 = vmatpush.bf16.msra.mxu0 %v304
    %323 = vmatpush.bf16.msra.mxu0 %v302
    %324 = vmatpush.bf16.msra.mxu0 %v300
    %325 = vmatpush.bf16.msra.mxu0 %v298
    %326 = vmatpush.bf16.msra.mxu0 %v296
    %327 = vmatpush.bf16.msra.mxu0 %v294
    %328 = vmatpush.bf16.msra.mxu0 %v292
    %329 = vmatpush.bf16.msra.mxu0 %v290
    %330 = vmatmul.bf16.gmra.mxu0 %v226
    %v331 = vpop.f32.mrf.mxu0
    %v332 = vadd.f32 0.0, %v331
    %v333 = vpop.f32.mrf.mxu0
    %v334 = vadd.f32 0.0, %v333
    %335 = vmatmul.bf16.gmra.mxu0 %v227
    %v336 = vpop.f32.mrf.mxu0
    %v337 = vadd.f32 0.0, %v336
    %v338 = vpop.f32.mrf.mxu0
    %v339 = vadd.f32 0.0, %v338
    %340 = vmatmul.bf16.gmra.mxu0 %v228
    %v341 = vpop.f32.mrf.mxu0
    %v342 = vadd.f32 0.0, %v341
    %v343 = vpop.f32.mrf.mxu0
    %v344 = vadd.f32 0.0, %v343
    %345 = vmatmul.bf16.gmra.mxu0 %v229
    %v346 = vpop.f32.mrf.mxu0
    %v347 = vadd.f32 0.0, %v346
    %v348 = vpop.f32.mrf.mxu0
    %v349 = vadd.f32 0.0, %v348
    %350 = vmatmul.bf16.gmra.mxu0 %v230
    %v351 = vpop.f32.mrf.mxu0
    %v352 = vadd.f32 0.0, %v351
    %v353 = vpop.f32.mrf.mxu0
    %v354 = vadd.f32 0.0, %v353
    %355 = vmatmul.bf16.gmra.mxu0 %v231
    %v356 = vpop.f32.mrf.mxu0
    %v357 = vadd.f32 0.0, %v356
    %v358 = vpop.f32.mrf.mxu0
    %v359 = vadd.f32 0.0, %v358
    %360 = vmatmul.bf16.gmra.mxu0 %v232
    %v361 = vpop.f32.mrf.mxu0
    %v362 = vadd.f32 0.0, %v361
    %v363 = vpop.f32.mrf.mxu0
    %v364 = vadd.f32 0.0, %v363
    %365 = vmatmul.bf16.gmra.mxu0 %v233
    %v366 = vpop.f32.mrf.mxu0
    %v367 = vadd.f32 0.0, %v366
    %v368 = vpop.f32.mrf.mxu0
    %v369 = vadd.f32 0.0, %v368
    %370 = vdwg.mxu0
    %371 = vmatpush.bf16.msra.mxu0 %v305
    %372 = vmatpush.bf16.msra.mxu0 %v303
    %373 = vmatpush.bf16.msra.mxu0 %v301
    %374 = vmatpush.bf16.msra.mxu0 %v299
    %375 = vmatpush.bf16.msra.mxu0 %v297
    %376 = vmatpush.bf16.msra.mxu0 %v295
    %377 = vmatpush.bf16.msra.mxu0 %v293
    %378 = vmatpush.bf16.msra.mxu0 %v291
    %379 = vmatmul.bf16.gmra.mxu0 %v226
    %v380 = vpop.f32.mrf.mxu0
    %v381 = vadd.f32 0.0, %v380
    %v382 = vpop.f32.mrf.mxu0
    %v383 = vadd.f32 0.0, %v382
    %384 = vmatmul.bf16.gmra.mxu0 %v227
    %v385 = vpop.f32.mrf.mxu0
    %v386 = vadd.f32 0.0, %v385
    %v387 = vpop.f32.mrf.mxu0
    %v388 = vadd.f32 0.0, %v387
    %389 = vmatmul.bf16.gmra.mxu0 %v228
    %v390 = vpop.f32.mrf.mxu0
    %v391 = vadd.f32 0.0, %v390
    %v392 = vpop.f32.mrf.mxu0
    %v393 = vadd.f32 0.0, %v392
    %394 = vmatmul.bf16.gmra.mxu0 %v229
    %v395 = vpop.f32.mrf.mxu0
    %v396 = vadd.f32 0.0, %v395
    %v397 = vpop.f32.mrf.mxu0
    %v398 = vadd.f32 0.0, %v397
    %399 = vmatmul.bf16.gmra.mxu0 %v230
    %v400 = vpop.f32.mrf.mxu0
    %v401 = vadd.f32 0.0, %v400
    %v402 = vpop.f32.mrf.mxu0
    %v403 = vadd.f32 0.0, %v402
    %404 = vmatmul.bf16.gmra.mxu0 %v231
    %v405 = vpop.f32.mrf.mxu0
    %v406 = vadd.f32 0.0, %v405
    %v407 = vpop.f32.mrf.mxu0
    %v408 = vadd.f32 0.0, %v407
    %409 = vmatmul.bf16.gmra.mxu0 %v232
    %v410 = vpop.f32.mrf.mxu0
    %v411 = vadd.f32 0.0, %v410
    %v412 = vpop.f32.mrf.mxu0
    %v413 = vadd.f32 0.0, %v412
    %414 = vmatmul.bf16.gmra.mxu0 %v233
    %v415 = vpop.f32.mrf.mxu0
    %v416 = vadd.f32 0.0, %v415
    %v417 = vpop.f32.mrf.mxu0
    %v418 = vadd.f32 0.0, %v417
    %419 = vdwg.mxu0
    %v420 = vld [vmem:[%s5] sm:$0x1]
    %v422 = vperm.slane %v420, 0
    %v424 = vadd.f32 %v332, %v422
    %v425 = vadd.f32 %v334, %v422
    %v426 = vadd.f32 %v337, %v422
    %v427 = vadd.f32 %v339, %v422
    %v428 = vadd.f32 %v342, %v422
    %v429 = vadd.f32 %v344, %v422
    %v430 = vadd.f32 %v347, %v422
    %v431 = vadd.f32 %v349, %v422
    %v432 = vadd.f32 %v352, %v422
    %v433 = vadd.f32 %v354, %v422
    %v434 = vadd.f32 %v357, %v422
    %v435 = vadd.f32 %v359, %v422
    %v436 = vadd.f32 %v362, %v422
    %v437 = vadd.f32 %v364, %v422
    %v438 = vadd.f32 %v367, %v422
    %v439 = vadd.f32 %v369, %v422
    %v440 = vmax.f32 %v424, 0.0
    %v441 = vmax.f32 %v425, 0.0
    %v442 = vmax.f32 %v426, 0.0
    %v443 = vmax.f32 %v427, 0.0
    %v444 = vmax.f32 %v428, 0.0
    %v445 = vmax.f32 %v429, 0.0
    %v446 = vmax.f32 %v430, 0.0
    %v447 = vmax.f32 %v431, 0.0
    %v448 = vmax.f32 %v432, 0.0
    %v449 = vmax.f32 %v433, 0.0
    %v450 = vmax.f32 %v434, 0.0
    %v451 = vmax.f32 %v435, 0.0
    %v452 = vmax.f32 %v436, 0.0
    %v453 = vmax.f32 %v437, 0.0
    %v454 = vmax.f32 %v438, 0.0
    %v455 = vmax.f32 %v439, 0.0
    %v456 = vlaneseq
    %v457 = vshrl.u32 %v456, 7
    %v458 = vadd.s32 %v457, 8
    %v459 = vadd.s32 %v457, 16
    %v460 = vadd.s32 %v457, 24
    %v461 = vadd.s32 %v457, 32
    %v462 = vadd.s32 %v457, 40
    %v463 = vadd.s32 %v457, 48
    %v464 = vadd.s32 %v457, 56
    %v465 = vadd.s32 %v457, 64
    %v466 = vadd.s32 %v457, 72
    %v467 = vadd.s32 %v457, 80
    %v468 = vadd.s32 %v457, 88
    %v469 = vadd.s32 %v457, 96
    %v470 = vadd.s32 %v457, 104
    %v471 = vadd.s32 %v457, 112
    %v472 = vadd.s32 %v457, 120
    %vm473 = vcmp.lt.s32.totalorder %v457, 64
    %vm474 = vcmp.lt.s32.totalorder %v458, 64
    %vm475 = vcmp.lt.s32.totalorder %v459, 64
    %vm476 = vcmp.lt.s32.totalorder %v460, 64
    %vm477 = vcmp.lt.s32.totalorder %v461, 64
    %vm478 = vcmp.lt.s32.totalorder %v462, 64
    %vm479 = vcmp.lt.s32.totalorder %v463, 64
    %vm480 = vcmp.lt.s32.totalorder %v464, 64
    %vm481 = vcmp.lt.s32.totalorder %v465, 64
    %vm482 = vcmp.lt.s32.totalorder %v466, 64
    %vm483 = vcmp.lt.s32.totalorder %v467, 64
    %vm484 = vcmp.lt.s32.totalorder %v468, 64
    %vm485 = vcmp.lt.s32.totalorder %v469, 64
    %vm486 = vcmp.lt.s32.totalorder %v470, 64
    %vm487 = vcmp.lt.s32.totalorder %v471, 64
    %vm488 = vcmp.lt.s32.totalorder %v472, 64
    %v489 = vsel %vm473, 1, 0
    %v490 = vsel %vm474, 1, 0
    %v491 = vsel %vm475, 1, 0
    %v492 = vsel %vm476, 1, 0
    %v493 = vsel %vm477, 1, 0
    %v494 = vsel %vm478, 1, 0
    %v495 = vsel %vm479, 1, 0
    %v496 = vsel %vm480, 1, 0
    %v497 = vsel %vm481, 1, 0
    %v498 = vsel %vm482, 1, 0
    %v499 = vsel %vm483, 1, 0
    %v500 = vsel %vm484, 1, 0
    %v501 = vsel %vm485, 1, 0
    %v502 = vsel %vm486, 1, 0
    %v503 = vsel %vm487, 1, 0
    %v504 = vsel %vm488, 1, 0
    %v505 = vcvt.s32.f32 %v489
    %v506 = vcvt.s32.f32 %v490
    %v507 = vcvt.s32.f32 %v491
    %v508 = vcvt.s32.f32 %v492
    %v509 = vcvt.s32.f32 %v493
    %v510 = vcvt.s32.f32 %v494
    %v511 = vcvt.s32.f32 %v495
    %v512 = vcvt.s32.f32 %v496
    %v513 = vcvt.s32.f32 %v497
    %v514 = vcvt.s32.f32 %v498
    %v515 = vcvt.s32.f32 %v499
    %v516 = vcvt.s32.f32 %v500
    %v517 = vcvt.s32.f32 %v501
    %v518 = vcvt.s32.f32 %v502
    %v519 = vcvt.s32.f32 %v503
    %v520 = vcvt.s32.f32 %v504
    %v521 = vmul.f32 %v440, %v505
    %v522 = vmul.f32 %v441, %v506
    %v523 = vmul.f32 %v442, %v507
    %v524 = vmul.f32 %v443, %v508
    %v525 = vmul.f32 %v444, %v509
    %v526 = vmul.f32 %v445, %v510
    %v527 = vmul.f32 %v446, %v511
    %v528 = vmul.f32 %v447, %v512
    %v529 = vmul.f32 %v448, %v513
    %v530 = vmul.f32 %v449, %v514
    %v531 = vmul.f32 %v450, %v515
    %v532 = vmul.f32 %v451, %v516
    %v533 = vmul.f32 %v452, %v517
    %v534 = vmul.f32 %v453, %v518
    %v535 = vmul.f32 %v454, %v519
    %v536 = vmul.f32 %v455, %v520
    %v537 = vlaneseq
    %v538 = vand.u32 %v537, 127
    %vm539 = vcmp.eq.s32.totalorder %v538, 32
    %v540 = vadd.f32 %v162, 1e-10
    %v541 = vadd.f32 %v163, 1e-10
    %v542 = vadd.f32 %v164, 1e-10
    %v543 = vadd.f32 %v165, 1e-10
    %v544 = vadd.f32 %v166, 1e-10
    %v545 = vadd.f32 %v167, 1e-10
    %v546 = vadd.f32 %v168, 1e-10
    %v547 = vadd.f32 %v169, 1e-10
    %v548 = vadd.f32 %v170, 1e-10
    %v549 = vadd.f32 %v171, 1e-10
    %v550 = vadd.f32 %v172, 1e-10
    %v551 = vadd.f32 %v173, 1e-10
    %v552 = vadd.f32 %v174, 1e-10
    %v553 = vadd.f32 %v175, 1e-10
    %v554 = vadd.f32 %v176, 1e-10
    %v555 = vadd.f32 %v177, 1e-10
    %v556 = vrcp.pop %v540
    %v557 = vmul.f32 %v540, %v556
    %v558 = vsub.f32 1.0, %v557
    %v559 = vmul.f32 %v556, %v558
    %v560 = vadd.f32 %v556, %v559
    %vm561 = vweird.f32 %v540
    %vm562 = vweird.f32 %v556
    %vm563 = vmor %vm561, %vm562
    %v564 = vsel %vm563, %v556, %v560
    %v565 = vand.u32 2147483647, %v540
    %vm566 = vcmp.eq.f32.partialorder %v565, 8.507059e+37
    %v567 = vand.u32 %v540, 2147483648
    %v568 = vor.u32 1.1754944e-38, %v567
    %v569 = vsel %vm566, %v568, %v564
    %v570 = vmul.f32 1.0, %v569
    %v571 = vrcp.pop %v541
    %v572 = vmul.f32 %v541, %v571
    %v573 = vsub.f32 1.0, %v572
    %v574 = vmul.f32 %v571, %v573
    %v575 = vadd.f32 %v571, %v574
    %vm576 = vweird.f32 %v541
    %vm577 = vweird.f32 %v571
    %vm578 = vmor %vm576, %vm577
    %v579 = vsel %vm578, %v571, %v575
    %v580 = vand.u32 2147483647, %v541
    %vm581 = vcmp.eq.f32.partialorder %v580, 8.507059e+37
    %v582 = vand.u32 %v541, 2147483648
    %v583 = vor.u32 1.1754944e-38, %v582
    %v584 = vsel %vm581, %v583, %v579
    %v585 = vmul.f32 1.0, %v584
    %v586 = vrcp.pop %v542
    %v587 = vmul.f32 %v542, %v586
    %v588 = vsub.f32 1.0, %v587
    %v589 = vmul.f32 %v586, %v588
    %v590 = vadd.f32 %v586, %v589
    %vm591 = vweird.f32 %v542
    %vm592 = vweird.f32 %v586
    %vm593 = vmor %vm591, %vm592
    %v594 = vsel %vm593, %v586, %v590
    %v595 = vand.u32 2147483647, %v542
    %vm596 = vcmp.eq.f32.partialorder %v595, 8.507059e+37
    %v597 = vand.u32 %v542, 2147483648
    %v598 = vor.u32 1.1754944e-38, %v597
    %v599 = vsel %vm596, %v598, %v594
    %v600 = vmul.f32 1.0, %v599
    %v601 = vrcp.pop %v543
    %v602 = vmul.f32 %v543, %v601
    %v603 = vsub.f32 1.0, %v602
    %v604 = vmul.f32 %v601, %v603
    %v605 = vadd.f32 %v601, %v604
    %vm606 = vweird.f32 %v543
    %vm607 = vweird.f32 %v601
    %vm608 = vmor %vm606, %vm607
    %v609 = vsel %vm608, %v601, %v605
    %v610 = vand.u32 2147483647, %v543
    %vm611 = vcmp.eq.f32.partialorder %v610, 8.507059e+37
    %v612 = vand.u32 %v543, 2147483648
    %v613 = vor.u32 1.1754944e-38, %v612
    %v614 = vsel %vm611, %v613, %v609
    %v615 = vmul.f32 1.0, %v614
    %v616 = vrcp.pop %v544
    %v617 = vmul.f32 %v544, %v616
    %v618 = vsub.f32 1.0, %v617
    %v619 = vmul.f32 %v616, %v618
    %v620 = vadd.f32 %v616, %v619
    %vm621 = vweird.f32 %v544
    %vm622 = vweird.f32 %v616
    %vm623 = vmor %vm621, %vm622
    %v624 = vsel %vm623, %v616, %v620
    %v625 = vand.u32 2147483647, %v544
    %vm626 = vcmp.eq.f32.partialorder %v625, 8.507059e+37
    %v627 = vand.u32 %v544, 2147483648
    %v628 = vor.u32 1.1754944e-38, %v627
    %v629 = vsel %vm626, %v628, %v624
    %v630 = vmul.f32 1.0, %v629
    %v631 = vrcp.pop %v545
    %v632 = vmul.f32 %v545, %v631
    %v633 = vsub.f32 1.0, %v632
    %v634 = vmul.f32 %v631, %v633
    %v635 = vadd.f32 %v631, %v634
    %vm636 = vweird.f32 %v545
    %vm637 = vweird.f32 %v631
    %vm638 = vmor %vm636, %vm637
    %v639 = vsel %vm638, %v631, %v635
    %v640 = vand.u32 2147483647, %v545
    %vm641 = vcmp.eq.f32.partialorder %v640, 8.507059e+37
    %v642 = vand.u32 %v545, 2147483648
    %v643 = vor.u32 1.1754944e-38, %v642
    %v644 = vsel %vm641, %v643, %v639
    %v645 = vmul.f32 1.0, %v644
    %v646 = vrcp.pop %v546
    %v647 = vmul.f32 %v546, %v646
    %v648 = vsub.f32 1.0, %v647
    %v649 = vmul.f32 %v646, %v648
    %v650 = vadd.f32 %v646, %v649
    %vm651 = vweird.f32 %v546
    %vm652 = vweird.f32 %v646
    %vm653 = vmor %vm651, %vm652
    %v654 = vsel %vm653, %v646, %v650
    %v655 = vand.u32 2147483647, %v546
    %vm656 = vcmp.eq.f32.partialorder %v655, 8.507059e+37
    %v657 = vand.u32 %v546, 2147483648
    %v658 = vor.u32 1.1754944e-38, %v657
    %v659 = vsel %vm656, %v658, %v654
    %v660 = vmul.f32 1.0, %v659
    %v661 = vrcp.pop %v547
    %v662 = vmul.f32 %v547, %v661
    %v663 = vsub.f32 1.0, %v662
    %v664 = vmul.f32 %v661, %v663
    %v665 = vadd.f32 %v661, %v664
    %vm666 = vweird.f32 %v547
    %vm667 = vweird.f32 %v661
    %vm668 = vmor %vm666, %vm667
    %v669 = vsel %vm668, %v661, %v665
    %v670 = vand.u32 2147483647, %v547
    %vm671 = vcmp.eq.f32.partialorder %v670, 8.507059e+37
    %v672 = vand.u32 %v547, 2147483648
    %v673 = vor.u32 1.1754944e-38, %v672
    %v674 = vsel %vm671, %v673, %v669
    %v675 = vmul.f32 1.0, %v674
    %v676 = vrcp.pop %v548
    %v677 = vmul.f32 %v548, %v676
    %v678 = vsub.f32 1.0, %v677
    %v679 = vmul.f32 %v676, %v678
    %v680 = vadd.f32 %v676, %v679
    %vm681 = vweird.f32 %v548
    %vm682 = vweird.f32 %v676
    %vm683 = vmor %vm681, %vm682
    %v684 = vsel %vm683, %v676, %v680
    %v685 = vand.u32 2147483647, %v548
    %vm686 = vcmp.eq.f32.partialorder %v685, 8.507059e+37
    %v687 = vand.u32 %v548, 2147483648
    %v688 = vor.u32 1.1754944e-38, %v687
    %v689 = vsel %vm686, %v688, %v684
    %v690 = vmul.f32 1.0, %v689
    %v691 = vrcp.pop %v549
    %v692 = vmul.f32 %v549, %v691
    %v693 = vsub.f32 1.0, %v692
    %v694 = vmul.f32 %v691, %v693
    %v695 = vadd.f32 %v691, %v694
    %vm696 = vweird.f32 %v549
    %vm697 = vweird.f32 %v691
    %vm698 = vmor %vm696, %vm697
    %v699 = vsel %vm698, %v691, %v695
    %v700 = vand.u32 2147483647, %v549
    %vm701 = vcmp.eq.f32.partialorder %v700, 8.507059e+37
    %v702 = vand.u32 %v549, 2147483648
    %v703 = vor.u32 1.1754944e-38, %v702
    %v704 = vsel %vm701, %v703, %v699
    %v705 = vmul.f32 1.0, %v704
    %v706 = vrcp.pop %v550
    %v707 = vmul.f32 %v550, %v706
    %v708 = vsub.f32 1.0, %v707
    %v709 = vmul.f32 %v706, %v708
    %v710 = vadd.f32 %v706, %v709
    %vm711 = vweird.f32 %v550
    %vm712 = vweird.f32 %v706
    %vm713 = vmor %vm711, %vm712
    %v714 = vsel %vm713, %v706, %v710
    %v715 = vand.u32 2147483647, %v550
    %vm716 = vcmp.eq.f32.partialorder %v715, 8.507059e+37
    %v717 = vand.u32 %v550, 2147483648
    %v718 = vor.u32 1.1754944e-38, %v717
    %v719 = vsel %vm716, %v718, %v714
    %v720 = vmul.f32 1.0, %v719
    %v721 = vrcp.pop %v551
    %v722 = vmul.f32 %v551, %v721
    %v723 = vsub.f32 1.0, %v722
    %v724 = vmul.f32 %v721, %v723
    %v725 = vadd.f32 %v721, %v724
    %vm726 = vweird.f32 %v551
    %vm727 = vweird.f32 %v721
    %vm728 = vmor %vm726, %vm727
    %v729 = vsel %vm728, %v721, %v725
    %v730 = vand.u32 2147483647, %v551
    %vm731 = vcmp.eq.f32.partialorder %v730, 8.507059e+37
    %v732 = vand.u32 %v551, 2147483648
    %v733 = vor.u32 1.1754944e-38, %v732
    %v734 = vsel %vm731, %v733, %v729
    %v735 = vmul.f32 1.0, %v734
    %v736 = vrcp.pop %v552
    %v737 = vmul.f32 %v552, %v736
    %v738 = vsub.f32 1.0, %v737
    %v739 = vmul.f32 %v736, %v738
    %v740 = vadd.f32 %v736, %v739
    %vm741 = vweird.f32 %v552
    %vm742 = vweird.f32 %v736
    %vm743 = vmor %vm741, %vm742
    %v744 = vsel %vm743, %v736, %v740
    %v745 = vand.u32 2147483647, %v552
    %vm746 = vcmp.eq.f32.partialorder %v745, 8.507059e+37
    %v747 = vand.u32 %v552, 2147483648
    %v748 = vor.u32 1.1754944e-38, %v747
    %v749 = vsel %vm746, %v748, %v744
    %v750 = vmul.f32 1.0, %v749
    %v751 = vrcp.pop %v553
    %v752 = vmul.f32 %v553, %v751
    %v753 = vsub.f32 1.0, %v752
    %v754 = vmul.f32 %v751, %v753
    %v755 = vadd.f32 %v751, %v754
    %vm756 = vweird.f32 %v553
    %vm757 = vweird.f32 %v751
    %vm758 = vmor %vm756, %vm757
    %v759 = vsel %vm758, %v751, %v755
    %v760 = vand.u32 2147483647, %v553
    %vm761 = vcmp.eq.f32.partialorder %v760, 8.507059e+37
    %v762 = vand.u32 %v553, 2147483648
    %v763 = vor.u32 1.1754944e-38, %v762
    %v764 = vsel %vm761, %v763, %v759
    %v765 = vmul.f32 1.0, %v764
    %v766 = vrcp.pop %v554
    %v767 = vmul.f32 %v554, %v766
    %v768 = vsub.f32 1.0, %v767
    %v769 = vmul.f32 %v766, %v768
    %v770 = vadd.f32 %v766, %v769
    %vm771 = vweird.f32 %v554
    %vm772 = vweird.f32 %v766
    %vm773 = vmor %vm771, %vm772
    %v774 = vsel %vm773, %v766, %v770
    %v775 = vand.u32 2147483647, %v554
    %vm776 = vcmp.eq.f32.partialorder %v775, 8.507059e+37
    %v777 = vand.u32 %v554, 2147483648
    %v778 = vor.u32 1.1754944e-38, %v777
    %v779 = vsel %vm776, %v778, %v774
    %v780 = vmul.f32 1.0, %v779
    %v781 = vrcp.pop %v555
    %v782 = vmul.f32 %v555, %v781
    %v783 = vsub.f32 1.0, %v782
    %v784 = vmul.f32 %v781, %v783
    %v785 = vadd.f32 %v781, %v784
    %vm786 = vweird.f32 %v555
    %vm787 = vweird.f32 %v781
    %vm788 = vmor %vm786, %vm787
    %v789 = vsel %vm788, %v781, %v785
    %v790 = vand.u32 2147483647, %v555
    %vm791 = vcmp.eq.f32.partialorder %v790, 8.507059e+37
    %v792 = vand.u32 %v555, 2147483648
    %v793 = vor.u32 1.1754944e-38, %v792
    %v794 = vsel %vm791, %v793, %v789
    %v795 = vmul.f32 1.0, %v794
    %v796 = vpack.c.bf16 %v521, %v521
    %v797 = vpack.c.bf16 %v522, %v522
    %v798 = vpack.c.bf16 %v523, %v523
    %v799 = vpack.c.bf16 %v524, %v524
    %v800 = vpack.c.bf16 %v525, %v525
    %v801 = vpack.c.bf16 %v526, %v526
    %v802 = vpack.c.bf16 %v527, %v527
    %v803 = vpack.c.bf16 %v528, %v528
    %v804 = vpack.c.bf16 %v529, %v529
    %v805 = vpack.c.bf16 %v530, %v530
    %v806 = vpack.c.bf16 %v531, %v531
    %v807 = vpack.c.bf16 %v532, %v532
    %v808 = vpack.c.bf16 %v533, %v533
    %v809 = vpack.c.bf16 %v534, %v534
    %v810 = vpack.c.bf16 %v535, %v535
    %v811 = vpack.c.bf16 %v536, %v536
    %v812 = vld [vmem:[#allocation8] sm:$0xf]
    %v813 = vld [vmem:[#allocation8 + $0x4] sm:$0xf]
    %v814 = vld [vmem:[#allocation8 + $0x8] sm:$0xf]
    %v815 = vld [vmem:[#allocation8 + $0xc] sm:$0xf]
    %v816 = vld [vmem:[#allocation8 + $0x10] sm:$0xf]
    %v817 = vld [vmem:[#allocation8 + $0x14] sm:$0xf]
    %v818 = vld [vmem:[#allocation8 + $0x18] sm:$0xf]
    %v819 = vld [vmem:[#allocation8 + $0x1c] sm:$0xf]
    %v820 = vld [vmem:[#allocation8 + $0x20] sm:$0xf]
    %v821 = vld [vmem:[#allocation8 + $0x24] sm:$0xf]
    %v822 = vld [vmem:[#allocation8 + $0x28] sm:$0xf]
    %v823 = vld [vmem:[#allocation8 + $0x2c] sm:$0xf]
    %v824 = vld [vmem:[#allocation8 + $0x30] sm:$0xf]
    %v825 = vld [vmem:[#allocation8 + $0x34] sm:$0xf]
    %v826 = vld [vmem:[#allocation8 + $0x38] sm:$0xf]
    %v827 = vld [vmem:[#allocation8 + $0x3c] sm:$0xf]
    %v844 = vunpack.c.l.b16 %v796
    %v845 = vunpack.c.l.b16 %v797
    %v846 = vunpack.c.l.b16 %v798
    %v847 = vunpack.c.l.b16 %v799
    %v848 = vunpack.c.l.b16 %v800
    %v849 = vunpack.c.l.b16 %v801
    %v850 = vunpack.c.l.b16 %v802
    %v851 = vunpack.c.l.b16 %v803
    %v852 = vunpack.c.l.b16 %v804
    %v853 = vunpack.c.l.b16 %v805
    %v854 = vunpack.c.l.b16 %v806
    %v855 = vunpack.c.l.b16 %v807
    %v856 = vunpack.c.l.b16 %v808
    %v857 = vunpack.c.l.b16 %v809
    %v858 = vunpack.c.l.b16 %v810
    %v859 = vunpack.c.l.b16 %v811
    %v860 = vpack.c.b16 %v845, %v844
    %v861 = vpack.c.b16 %v847, %v846
    %v862 = vpack.c.b16 %v849, %v848
    %v863 = vpack.c.b16 %v851, %v850
    %v864 = vpack.c.b16 %v853, %v852
    %v865 = vpack.c.b16 %v855, %v854
    %v866 = vpack.c.b16 %v857, %v856
    %v867 = vpack.c.b16 %v859, %v858
    %v892 = vunpack.c.l.b16 %v812
    %v893 = vunpack.c.l.b16 %v813
    %v894 = vunpack.c.l.b16 %v814
    %v895 = vunpack.c.l.b16 %v815
    %v896 = vunpack.c.l.b16 %v816
    %v897 = vunpack.c.l.b16 %v817
    %v898 = vunpack.c.l.b16 %v818
    %v899 = vunpack.c.l.b16 %v819
    %v900 = vunpack.c.l.b16 %v820
    %v901 = vunpack.c.l.b16 %v821
    %v902 = vunpack.c.l.b16 %v822
    %v903 = vunpack.c.l.b16 %v823
    %v904 = vunpack.c.l.b16 %v824
    %v905 = vunpack.c.l.b16 %v825
    %v906 = vunpack.c.l.b16 %v826
    %v907 = vunpack.c.l.b16 %v827
    %v908 = vpack.c.b16 %v893, %v892
    %v909 = vpack.c.b16 %v895, %v894
    %v910 = vpack.c.b16 %v897, %v896
    %v911 = vpack.c.b16 %v899, %v898
    %v912 = vpack.c.b16 %v901, %v900
    %v913 = vpack.c.b16 %v903, %v902
    %v914 = vpack.c.b16 %v905, %v904
    %v915 = vpack.c.b16 %v907, %v906
    %924 = vmatpush.bf16.msra.mxu0 %v915
    %925 = vmatpush.bf16.msra.mxu0 %v914
    %926 = vmatpush.bf16.msra.mxu0 %v913
    %927 = vmatpush.bf16.msra.mxu0 %v912
    %928 = vmatpush.bf16.msra.mxu0 %v911
    %929 = vmatpush.bf16.msra.mxu0 %v910
    %930 = vmatpush.bf16.msra.mxu0 %v909
    %931 = vmatpush.bf16.msra.mxu0 %v908
    %932 = vmatmul.bf16.gmra.mxu0 %v860
    %v933 = vpop.f32.mrf.mxu0
    %v934 = vadd.f32 0.0, %v933
    %v935 = vpop.f32.mrf.mxu0
    %v936 = vadd.f32 0.0, %v935
    %937 = vmatmul.bf16.gmra.mxu0 %v861
    %v938 = vpop.f32.mrf.mxu0
    %v939 = vadd.f32 0.0, %v938
    %v940 = vpop.f32.mrf.mxu0
    %v941 = vadd.f32 0.0, %v940
    %942 = vmatmul.bf16.gmra.mxu0 %v862
    %v943 = vpop.f32.mrf.mxu0
    %v944 = vadd.f32 0.0, %v943
    %v945 = vpop.f32.mrf.mxu0
    %v946 = vadd.f32 0.0, %v945
    %947 = vmatmul.bf16.gmra.mxu0 %v863
    %v948 = vpop.f32.mrf.mxu0
    %v949 = vadd.f32 0.0, %v948
    %v950 = vpop.f32.mrf.mxu0
    %v951 = vadd.f32 0.0, %v950
    %952 = vmatmul.bf16.gmra.mxu0 %v864
    %v953 = vpop.f32.mrf.mxu0
    %v954 = vadd.f32 0.0, %v953
    %v955 = vpop.f32.mrf.mxu0
    %v956 = vadd.f32 0.0, %v955
    %957 = vmatmul.bf16.gmra.mxu0 %v865
    %v958 = vpop.f32.mrf.mxu0
    %v959 = vadd.f32 0.0, %v958
    %v960 = vpop.f32.mrf.mxu0
    %v961 = vadd.f32 0.0, %v960
    %962 = vmatmul.bf16.gmra.mxu0 %v866
    %v963 = vpop.f32.mrf.mxu0
    %v964 = vadd.f32 0.0, %v963
    %v965 = vpop.f32.mrf.mxu0
    %v966 = vadd.f32 0.0, %v965
    %967 = vmatmul.bf16.gmra.mxu0 %v867
    %v968 = vpop.f32.mrf.mxu0
    %v969 = vadd.f32 0.0, %v968
    %v970 = vpop.f32.mrf.mxu0
    %v971 = vadd.f32 0.0, %v970
    %972 = vdwg.mxu0
    %v973 = vpack.c.bf16 %v936, %v934
    %v974 = vpack.c.bf16 %v941, %v939
    %v975 = vpack.c.bf16 %v946, %v944
    %v976 = vpack.c.bf16 %v951, %v949
    %v977 = vpack.c.bf16 %v956, %v954
    %v978 = vpack.c.bf16 %v961, %v959
    %v979 = vpack.c.bf16 %v966, %v964
    %v980 = vpack.c.bf16 %v971, %v969
    %v981 = vld [vmem:[%s7] sm:$0x1]
    %v983 = vperm.slane %v981, 0
    %v1001 = vunpack.c.l.b16 %v146
    %v1002 = vunpack.c.l.b16 %v147
    %v1003 = vunpack.c.l.b16 %v148
    %v1004 = vunpack.c.l.b16 %v149
    %v1005 = vunpack.c.l.b16 %v150
    %v1006 = vunpack.c.l.b16 %v151
    %v1007 = vunpack.c.l.b16 %v152
    %v1008 = vunpack.c.l.b16 %v153
    %v1009 = vunpack.c.l.b16 %v154
    %v1010 = vunpack.c.l.b16 %v155
    %v1011 = vunpack.c.l.b16 %v156
    %v1012 = vunpack.c.l.b16 %v157
    %v1013 = vunpack.c.l.b16 %v158
    %v1014 = vunpack.c.l.b16 %v159
    %v1015 = vunpack.c.l.b16 %v160
    %v1016 = vunpack.c.l.b16 %v161
    %v1017 = vpack.c.b16 %v1002, %v1001
    %v1018 = vpack.c.b16 %v1004, %v1003
    %v1019 = vpack.c.b16 %v1006, %v1005
    %v1020 = vpack.c.b16 %v1008, %v1007
    %v1021 = vpack.c.b16 %v1010, %v1009
    %v1022 = vpack.c.b16 %v1012, %v1011
    %v1023 = vpack.c.b16 %v1014, %v1013
    %v1024 = vpack.c.b16 %v1016, %v1015
    %1033 = vmatpush.bf16.msra.mxu0 %v980
    %1034 = vmatpush.bf16.msra.mxu0 %v979
    %1035 = vmatpush.bf16.msra.mxu0 %v978
    %1036 = vmatpush.bf16.msra.mxu0 %v977
    %1037 = vmatpush.bf16.msra.mxu0 %v976
    %1038 = vmatpush.bf16.msra.mxu0 %v975
    %1039 = vmatpush.bf16.msra.mxu0 %v974
    %1040 = vmatpush.bf16.msra.mxu0 %v973
    %1041 = vmatmul.bf16.gmra.mxu0 %v1017
    %v1042 = vpop.f32.mrf.mxu0
    %v1043 = vadd.f32 %v983, %v1042
    %v1044 = vpop.f32.mrf.mxu0
    %v1045 = vadd.f32 %v983, %v1044
    %1046 = vmatmul.bf16.gmra.mxu0 %v1018
    %v1047 = vpop.f32.mrf.mxu0
    %v1048 = vadd.f32 %v983, %v1047
    %v1049 = vpop.f32.mrf.mxu0
    %v1050 = vadd.f32 %v983, %v1049
    %1051 = vmatmul.bf16.gmra.mxu0 %v1019
    %v1052 = vpop.f32.mrf.mxu0
    %v1053 = vadd.f32 %v983, %v1052
    %v1054 = vpop.f32.mrf.mxu0
    %v1055 = vadd.f32 %v983, %v1054
    %1056 = vmatmul.bf16.gmra.mxu0 %v1020
    %v1057 = vpop.f32.mrf.mxu0
    %v1058 = vadd.f32 %v983, %v1057
    %v1059 = vpop.f32.mrf.mxu0
    %v1060 = vadd.f32 %v983, %v1059
    %1061 = vmatmul.bf16.gmra.mxu0 %v1021
    %v1062 = vpop.f32.mrf.mxu0
    %v1063 = vadd.f32 %v983, %v1062
    %v1064 = vpop.f32.mrf.mxu0
    %v1065 = vadd.f32 %v983, %v1064
    %1066 = vmatmul.bf16.gmra.mxu0 %v1022
    %v1067 = vpop.f32.mrf.mxu0
    %v1068 = vadd.f32 %v983, %v1067
    %v1069 = vpop.f32.mrf.mxu0
    %v1070 = vadd.f32 %v983, %v1069
    %1071 = vmatmul.bf16.gmra.mxu0 %v1023
    %v1072 = vpop.f32.mrf.mxu0
    %v1073 = vadd.f32 %v983, %v1072
    %v1074 = vpop.f32.mrf.mxu0
    %v1075 = vadd.f32 %v983, %v1074
    %1076 = vmatmul.bf16.gmra.mxu0 %v1024
    %v1077 = vpop.f32.mrf.mxu0
    %v1078 = vadd.f32 %v983, %v1077
    %v1079 = vpop.f32.mrf.mxu0
    %v1080 = vadd.f32 %v983, %v1079
    %1081 = vdwg.mxu0
    %v1082 = vmax.f32 %v1043, 0.0
    %v1083 = vmax.f32 %v1045, 0.0
    %v1084 = vmax.f32 %v1048, 0.0
    %v1085 = vmax.f32 %v1050, 0.0
    %v1086 = vmax.f32 %v1053, 0.0
    %v1087 = vmax.f32 %v1055, 0.0
    %v1088 = vmax.f32 %v1058, 0.0
    %v1089 = vmax.f32 %v1060, 0.0
    %v1090 = vmax.f32 %v1063, 0.0
    %v1091 = vmax.f32 %v1065, 0.0
    %v1092 = vmax.f32 %v1068, 0.0
    %v1093 = vmax.f32 %v1070, 0.0
    %v1094 = vmax.f32 %v1073, 0.0
    %v1095 = vmax.f32 %v1075, 0.0
    %v1096 = vmax.f32 %v1078, 0.0
    %v1097 = vmax.f32 %v1080, 0.0
    %v1098 = vmul.f32 %v1082, %v505
    %v1099 = vmul.f32 %v1083, %v506
    %v1100 = vmul.f32 %v1084, %v507
    %v1101 = vmul.f32 %v1085, %v508
    %v1102 = vmul.f32 %v1086, %v509
    %v1103 = vmul.f32 %v1087, %v510
    %v1104 = vmul.f32 %v1088, %v511
    %v1105 = vmul.f32 %v1089, %v512
    %v1106 = vmul.f32 %v1090, %v513
    %v1107 = vmul.f32 %v1091, %v514
    %v1108 = vmul.f32 %v1092, %v515
    %v1109 = vmul.f32 %v1093, %v516
    %v1110 = vmul.f32 %v1094, %v517
    %v1111 = vmul.f32 %v1095, %v518
    %v1112 = vmul.f32 %v1096, %v519
    %v1113 = vmul.f32 %v1097, %v520
    %v1114 = vmul.f32 %v521, %v521
    %v1115 = vmul.f32 %v522, %v522
    %v1116 = vmul.f32 %v523, %v523
    %v1117 = vmul.f32 %v524, %v524
    %v1118 = vmul.f32 %v525, %v525
    %v1119 = vmul.f32 %v526, %v526
    %v1120 = vmul.f32 %v527, %v527
    %v1121 = vmul.f32 %v528, %v528
    %v1122 = vmul.f32 %v529, %v529
    %v1123 = vmul.f32 %v530, %v530
    %v1124 = vmul.f32 %v531, %v531
    %v1125 = vmul.f32 %v532, %v532
    %v1126 = vmul.f32 %v533, %v533
    %v1127 = vmul.f32 %v534, %v534
    %v1128 = vmul.f32 %v535, %v535
    %v1129 = vmul.f32 %v536, %v536
    %1130 = vadd.xlane.f32.xlu0 %v1114
    %v1131 = vpop.xlane.xlu0 %1130
    %1132 = vadd.xlane.f32.xlu0 %v1115
    %v1133 = vpop.xlane.xlu0 %1132
    %1134 = vadd.xlane.f32.xlu0 %v1116
    %v1135 = vpop.xlane.xlu0 %1134
    %1136 = vadd.xlane.f32.xlu0 %v1117
    %v1137 = vpop.xlane.xlu0 %1136
    %1138 = vadd.xlane.f32.xlu0 %v1118
    %v1139 = vpop.xlane.xlu0 %1138
    %1140 = vadd.xlane.f32.xlu0 %v1119
    %v1141 = vpop.xlane.xlu0 %1140
    %1142 = vadd.xlane.f32.xlu0 %v1120
    %v1143 = vpop.xlane.xlu0 %1142
    %1144 = vadd.xlane.f32.xlu0 %v1121
    %v1145 = vpop.xlane.xlu0 %1144
    %1146 = vadd.xlane.f32.xlu0 %v1122
    %v1147 = vpop.xlane.xlu0 %1146
    %1148 = vadd.xlane.f32.xlu0 %v1123
    %v1149 = vpop.xlane.xlu0 %1148
    %1150 = vadd.xlane.f32.xlu0 %v1124
    %v1151 = vpop.xlane.xlu0 %1150
    %1152 = vadd.xlane.f32.xlu0 %v1125
    %v1153 = vpop.xlane.xlu0 %1152
    %1154 = vadd.xlane.f32.xlu0 %v1126
    %v1155 = vpop.xlane.xlu0 %1154
    %1156 = vadd.xlane.f32.xlu0 %v1127
    %v1157 = vpop.xlane.xlu0 %1156
    %1158 = vadd.xlane.f32.xlu0 %v1128
    %v1159 = vpop.xlane.xlu0 %1158
    %1160 = vadd.xlane.f32.xlu0 %v1129
    %v1161 = vpop.xlane.xlu0 %1160
    %v1162 = vpack.c.bf16 %v1131, %v1131
    %v1163 = vpack.c.bf16 %v1133, %v1133
    %v1164 = vpack.c.bf16 %v1135, %v1135
    %v1165 = vpack.c.bf16 %v1137, %v1137
    %v1166 = vpack.c.bf16 %v1139, %v1139
    %v1167 = vpack.c.bf16 %v1141, %v1141
    %v1168 = vpack.c.bf16 %v1143, %v1143
    %v1169 = vpack.c.bf16 %v1145, %v1145
    %v1170 = vpack.c.bf16 %v1147, %v1147
    %v1171 = vpack.c.bf16 %v1149, %v1149
    %v1172 = vpack.c.bf16 %v1151, %v1151
    %v1173 = vpack.c.bf16 %v1153, %v1153
    %v1174 = vpack.c.bf16 %v1155, %v1155
    %v1175 = vpack.c.bf16 %v1157, %v1157
    %v1176 = vpack.c.bf16 %v1159, %v1159
    %v1177 = vpack.c.bf16 %v1161, %v1161
    %vm1178 = vmpackc.low %vm539, %vm539
    %v1179 = vsel %vm1178, %v1162, %v796
    %v1180 = vsel %vm1178, %v1163, %v797
    %v1181 = vsel %vm1178, %v1164, %v798
    %v1182 = vsel %vm1178, %v1165, %v799
    %v1183 = vsel %vm1178, %v1166, %v800
    %v1184 = vsel %vm1178, %v1167, %v801
    %v1185 = vsel %vm1178, %v1168, %v802
    %v1186 = vsel %vm1178, %v1169, %v803
    %v1187 = vsel %vm1178, %v1170, %v804
    %v1188 = vsel %vm1178, %v1171, %v805
    %v1189 = vsel %vm1178, %v1172, %v806
    %v1190 = vsel %vm1178, %v1173, %v807
    %v1191 = vsel %vm1178, %v1174, %v808
    %v1192 = vsel %vm1178, %v1175, %v809
    %v1193 = vsel %vm1178, %v1176, %v810
    %v1194 = vsel %vm1178, %v1177, %v811
    %v1211 = vunpack.c.l.b16 %v130
    %v1212 = vunpack.c.l.b16 %v131
    %v1213 = vunpack.c.l.b16 %v132
    %v1214 = vunpack.c.l.b16 %v133
    %v1215 = vunpack.c.l.b16 %v134
    %v1216 = vunpack.c.l.b16 %v135
    %v1217 = vunpack.c.l.b16 %v136
    %v1218 = vunpack.c.l.b16 %v137
    %v1219 = vunpack.c.l.b16 %v138
    %v1220 = vunpack.c.l.b16 %v139
    %v1221 = vunpack.c.l.b16 %v140
    %v1222 = vunpack.c.l.b16 %v141
    %v1223 = vunpack.c.l.b16 %v142
    %v1224 = vunpack.c.l.b16 %v143
    %v1225 = vunpack.c.l.b16 %v144
    %v1226 = vunpack.c.l.b16 %v145
    %v1227 = vpack.c.b16 %v1212, %v1211
    %v1228 = vpack.c.b16 %v1214, %v1213
    %v1229 = vpack.c.b16 %v1216, %v1215
    %v1230 = vpack.c.b16 %v1218, %v1217
    %v1231 = vpack.c.b16 %v1220, %v1219
    %v1232 = vpack.c.b16 %v1222, %v1221
    %v1233 = vpack.c.b16 %v1224, %v1223
    %v1234 = vpack.c.b16 %v1226, %v1225
    %v1259 = vunpack.c.l.b16 %v1179
    %v1260 = vunpack.c.l.b16 %v1180
    %v1261 = vunpack.c.l.b16 %v1181
    %v1262 = vunpack.c.l.b16 %v1182
    %v1263 = vunpack.c.l.b16 %v1183
    %v1264 = vunpack.c.l.b16 %v1184
    %v1265 = vunpack.c.l.b16 %v1185
    %v1266 = vunpack.c.l.b16 %v1186
    %v1267 = vunpack.c.l.b16 %v1187
    %v1268 = vunpack.c.l.b16 %v1188
    %v1269 = vunpack.c.l.b16 %v1189
    %v1270 = vunpack.c.l.b16 %v1190
    %v1271 = vunpack.c.l.b16 %v1191
    %v1272 = vunpack.c.l.b16 %v1192
    %v1273 = vunpack.c.l.b16 %v1193
    %v1274 = vunpack.c.l.b16 %v1194
    %v1275 = vpack.c.b16 %v1260, %v1259
    %v1276 = vpack.c.b16 %v1262, %v1261
    %v1277 = vpack.c.b16 %v1264, %v1263
    %v1278 = vpack.c.b16 %v1266, %v1265
    %v1279 = vpack.c.b16 %v1268, %v1267
    %v1280 = vpack.c.b16 %v1270, %v1269
    %v1281 = vpack.c.b16 %v1272, %v1271
    %v1282 = vpack.c.b16 %v1274, %v1273
    %1291 = vmatpush.bf16.msra.mxu0 %v1282
    %1292 = vmatpush.bf16.msra.mxu0 %v1281
    %1293 = vmatpush.bf16.msra.mxu0 %v1280
    %1294 = vmatpush.bf16.msra.mxu0 %v1279
    %1295 = vmatpush.bf16.msra.mxu0 %v1278
    %1296 = vmatpush.bf16.msra.mxu0 %v1277
    %1297 = vmatpush.bf16.msra.mxu0 %v1276
    %1298 = vmatpush.bf16.msra.mxu0 %v1275
    %1299 = vmatmul.bf16.gmra.mxu0 %v1227
    %v1300 = vpop.f32.mrf.mxu0
    %v1301 = vadd.f32 0.0, %v1300
    %v1302 = vpop.f32.mrf.mxu0
    %v1303 = vadd.f32 0.0, %v1302
    %1304 = vmatmul.bf16.gmra.mxu0 %v1228
    %v1305 = vpop.f32.mrf.mxu0
    %v1306 = vadd.f32 0.0, %v1305
    %v1307 = vpop.f32.mrf.mxu0
    %v1308 = vadd.f32 0.0, %v1307
    %1309 = vmatmul.bf16.gmra.mxu0 %v1229
    %v1310 = vpop.f32.mrf.mxu0
    %v1311 = vadd.f32 0.0, %v1310
    %v1312 = vpop.f32.mrf.mxu0
    %v1313 = vadd.f32 0.0, %v1312
    %1314 = vmatmul.bf16.gmra.mxu0 %v1230
    %v1315 = vpop.f32.mrf.mxu0
    %v1316 = vadd.f32 0.0, %v1315
    %v1317 = vpop.f32.mrf.mxu0
    %v1318 = vadd.f32 0.0, %v1317
    %1319 = vmatmul.bf16.gmra.mxu0 %v1231
    %v1320 = vpop.f32.mrf.mxu0
    %v1321 = vadd.f32 0.0, %v1320
    %v1322 = vpop.f32.mrf.mxu0
    %v1323 = vadd.f32 0.0, %v1322
    %1324 = vmatmul.bf16.gmra.mxu0 %v1232
    %v1325 = vpop.f32.mrf.mxu0
    %v1326 = vadd.f32 0.0, %v1325
    %v1327 = vpop.f32.mrf.mxu0
    %v1328 = vadd.f32 0.0, %v1327
    %1329 = vmatmul.bf16.gmra.mxu0 %v1233
    %v1330 = vpop.f32.mrf.mxu0
    %v1331 = vadd.f32 0.0, %v1330
    %v1332 = vpop.f32.mrf.mxu0
    %v1333 = vadd.f32 0.0, %v1332
    %1334 = vmatmul.bf16.gmra.mxu0 %v1234
    %v1335 = vpop.f32.mrf.mxu0
    %v1336 = vadd.f32 0.0, %v1335
    %v1337 = vpop.f32.mrf.mxu0
    %v1338 = vadd.f32 0.0, %v1337
    %1339 = vdwg.mxu0
    %v1340 = vmul.f32 %v521, %v1301
    %v1341 = vmul.f32 %v522, %v1303
    %v1342 = vmul.f32 %v523, %v1306
    %v1343 = vmul.f32 %v524, %v1308
    %v1344 = vmul.f32 %v525, %v1311
    %v1345 = vmul.f32 %v526, %v1313
    %v1346 = vmul.f32 %v527, %v1316
    %v1347 = vmul.f32 %v528, %v1318
    %v1348 = vmul.f32 %v529, %v1321
    %v1349 = vmul.f32 %v530, %v1323
    %v1350 = vmul.f32 %v531, %v1326
    %v1351 = vmul.f32 %v532, %v1328
    %v1352 = vmul.f32 %v533, %v1331
    %v1353 = vmul.f32 %v534, %v1333
    %v1354 = vmul.f32 %v535, %v1336
    %v1355 = vmul.f32 %v536, %v1338
    %1356 = vadd.xlane.f32.xlu0 %v1340
    %v1357 = vpop.xlane.xlu0 %1356
    %1358 = vadd.xlane.f32.xlu0 %v1341
    %v1359 = vpop.xlane.xlu0 %1358
    %1360 = vadd.xlane.f32.xlu0 %v1342
    %v1361 = vpop.xlane.xlu0 %1360
    %1362 = vadd.xlane.f32.xlu0 %v1343
    %v1363 = vpop.xlane.xlu0 %1362
    %1364 = vadd.xlane.f32.xlu0 %v1344
    %v1365 = vpop.xlane.xlu0 %1364
    %1366 = vadd.xlane.f32.xlu0 %v1345
    %v1367 = vpop.xlane.xlu0 %1366
    %1368 = vadd.xlane.f32.xlu0 %v1346
    %v1369 = vpop.xlane.xlu0 %1368
    %1370 = vadd.xlane.f32.xlu0 %v1347
    %v1371 = vpop.xlane.xlu0 %1370
    %1372 = vadd.xlane.f32.xlu0 %v1348
    %v1373 = vpop.xlane.xlu0 %1372
    %1374 = vadd.xlane.f32.xlu0 %v1349
    %v1375 = vpop.xlane.xlu0 %1374
    %1376 = vadd.xlane.f32.xlu0 %v1350
    %v1377 = vpop.xlane.xlu0 %1376
    %1378 = vadd.xlane.f32.xlu0 %v1351
    %v1379 = vpop.xlane.xlu0 %1378
    %1380 = vadd.xlane.f32.xlu0 %v1352
    %v1381 = vpop.xlane.xlu0 %1380
    %1382 = vadd.xlane.f32.xlu0 %v1353
    %v1383 = vpop.xlane.xlu0 %1382
    %1384 = vadd.xlane.f32.xlu0 %v1354
    %v1385 = vpop.xlane.xlu0 %1384
    %1386 = vadd.xlane.f32.xlu0 %v1355
    %v1387 = vpop.xlane.xlu0 %1386
    %v1388 = vmul.f32 %v162, %v1131
    %v1389 = vmul.f32 %v163, %v1133
    %v1390 = vmul.f32 %v164, %v1135
    %v1391 = vmul.f32 %v165, %v1137
    %v1392 = vmul.f32 %v166, %v1139
    %v1393 = vmul.f32 %v167, %v1141
    %v1394 = vmul.f32 %v168, %v1143
    %v1395 = vmul.f32 %v169, %v1145
    %v1396 = vmul.f32 %v170, %v1147
    %v1397 = vmul.f32 %v171, %v1149
    %v1398 = vmul.f32 %v172, %v1151
    %v1399 = vmul.f32 %v173, %v1153
    %v1400 = vmul.f32 %v174, %v1155
    %v1401 = vmul.f32 %v175, %v1157
    %v1402 = vmul.f32 %v176, %v1159
    %v1403 = vmul.f32 %v177, %v1161
    %1420 = vrot.lane.b32.xlu0 %v1301, 96
    %v1421 = vpop.permute.xlu0 %1420
    %1422 = vrot.lane.b32.xlu0 %v1303, 96
    %v1423 = vpop.permute.xlu0 %1422
    %1424 = vrot.lane.b32.xlu0 %v1306, 96
    %v1425 = vpop.permute.xlu0 %1424
    %1426 = vrot.lane.b32.xlu0 %v1308, 96
    %v1427 = vpop.permute.xlu0 %1426
    %1428 = vrot.lane.b32.xlu0 %v1311, 96
    %v1429 = vpop.permute.xlu0 %1428
    %1430 = vrot.lane.b32.xlu0 %v1313, 96
    %v1431 = vpop.permute.xlu0 %1430
    %1432 = vrot.lane.b32.xlu0 %v1316, 96
    %v1433 = vpop.permute.xlu0 %1432
    %1434 = vrot.lane.b32.xlu0 %v1318, 96
    %v1435 = vpop.permute.xlu0 %1434
    %1436 = vrot.lane.b32.xlu0 %v1321, 96
    %v1437 = vpop.permute.xlu0 %1436
    %1438 = vrot.lane.b32.xlu0 %v1323, 96
    %v1439 = vpop.permute.xlu0 %1438
    %1440 = vrot.lane.b32.xlu0 %v1326, 96
    %v1441 = vpop.permute.xlu0 %1440
    %1442 = vrot.lane.b32.xlu0 %v1328, 96
    %v1443 = vpop.permute.xlu0 %1442
    %1444 = vrot.lane.b32.xlu0 %v1331, 96
    %v1445 = vpop.permute.xlu0 %1444
    %1446 = vrot.lane.b32.xlu0 %v1333, 96
    %v1447 = vpop.permute.xlu0 %1446
    %1448 = vrot.lane.b32.xlu0 %v1336, 96
    %v1449 = vpop.permute.xlu0 %1448
    %1450 = vrot.lane.b32.xlu0 %v1338, 96
    %v1451 = vpop.permute.xlu0 %1450
    %v1468 = vadd.f32 %v1388, %v1421
    %v1469 = vadd.f32 %v1389, %v1423
    %v1470 = vadd.f32 %v1390, %v1425
    %v1471 = vadd.f32 %v1391, %v1427
    %v1472 = vadd.f32 %v1392, %v1429
    %v1473 = vadd.f32 %v1393, %v1431
    %v1474 = vadd.f32 %v1394, %v1433
    %v1475 = vadd.f32 %v1395, %v1435
    %v1476 = vadd.f32 %v1396, %v1437
    %v1477 = vadd.f32 %v1397, %v1439
    %v1478 = vadd.f32 %v1398, %v1441
    %v1479 = vadd.f32 %v1399, %v1443
    %v1480 = vadd.f32 %v1400, %v1445
    %v1481 = vadd.f32 %v1401, %v1447
    %v1482 = vadd.f32 %v1402, %v1449
    %v1483 = vadd.f32 %v1403, %v1451
    %v1484 = vmul.f32 %v1357, 2.0
    %v1485 = vmul.f32 %v1359, 2.0
    %v1486 = vmul.f32 %v1361, 2.0
    %v1487 = vmul.f32 %v1363, 2.0
    %v1488 = vmul.f32 %v1365, 2.0
    %v1489 = vmul.f32 %v1367, 2.0
    %v1490 = vmul.f32 %v1369, 2.0
    %v1491 = vmul.f32 %v1371, 2.0
    %v1492 = vmul.f32 %v1373, 2.0
    %v1493 = vmul.f32 %v1375, 2.0
    %v1494 = vmul.f32 %v1377, 2.0
    %v1495 = vmul.f32 %v1379, 2.0
    %v1496 = vmul.f32 %v1381, 2.0
    %v1497 = vmul.f32 %v1383, 2.0
    %v1498 = vmul.f32 %v1385, 2.0
    %v1499 = vmul.f32 %v1387, 2.0
    %v1500 = vsub.f32 %v1468, %v1484
    %v1501 = vsub.f32 %v1469, %v1485
    %v1502 = vsub.f32 %v1470, %v1486
    %v1503 = vsub.f32 %v1471, %v1487
    %v1504 = vsub.f32 %v1472, %v1488
    %v1505 = vsub.f32 %v1473, %v1489
    %v1506 = vsub.f32 %v1474, %v1490
    %v1507 = vsub.f32 %v1475, %v1491
    %v1508 = vsub.f32 %v1476, %v1492
    %v1509 = vsub.f32 %v1477, %v1493
    %v1510 = vsub.f32 %v1478, %v1494
    %v1511 = vsub.f32 %v1479, %v1495
    %v1512 = vsub.f32 %v1480, %v1496
    %v1513 = vsub.f32 %v1481, %v1497
    %v1514 = vsub.f32 %v1482, %v1498
    %v1515 = vsub.f32 %v1483, %v1499
    %v1516 = vmax.f32 %v1500, 0.0
    %v1517 = vmax.f32 %v1501, 0.0
    %v1518 = vmax.f32 %v1502, 0.0
    %v1519 = vmax.f32 %v1503, 0.0
    %v1520 = vmax.f32 %v1504, 0.0
    %v1521 = vmax.f32 %v1505, 0.0
    %v1522 = vmax.f32 %v1506, 0.0
    %v1523 = vmax.f32 %v1507, 0.0
    %v1524 = vmax.f32 %v1508, 0.0
    %v1525 = vmax.f32 %v1509, 0.0
    %v1526 = vmax.f32 %v1510, 0.0
    %v1527 = vmax.f32 %v1511, 0.0
    %v1528 = vmax.f32 %v1512, 0.0
    %v1529 = vmax.f32 %v1513, 0.0
    %v1530 = vmax.f32 %v1514, 0.0
    %v1531 = vmax.f32 %v1515, 0.0
    %v1532 = vmul.f32 %v1516, %v570
    %v1533 = vmul.f32 %v1517, %v585
    %v1534 = vmul.f32 %v1518, %v600
    %v1535 = vmul.f32 %v1519, %v615
    %v1536 = vmul.f32 %v1520, %v630
    %v1537 = vmul.f32 %v1521, %v645
    %v1538 = vmul.f32 %v1522, %v660
    %v1539 = vmul.f32 %v1523, %v675
    %v1540 = vmul.f32 %v1524, %v690
    %v1541 = vmul.f32 %v1525, %v705
    %v1542 = vmul.f32 %v1526, %v720
    %v1543 = vmul.f32 %v1527, %v735
    %v1544 = vmul.f32 %v1528, %v750
    %v1545 = vmul.f32 %v1529, %v765
    %v1546 = vmul.f32 %v1530, %v780
    %v1547 = vmul.f32 %v1531, %v795
    %v1548 = vtanh.pop %v1532
    %v1549 = vtanh.pop %v1533
    %v1550 = vtanh.pop %v1534
    %v1551 = vtanh.pop %v1535
    %v1552 = vtanh.pop %v1536
    %v1553 = vtanh.pop %v1537
    %v1554 = vtanh.pop %v1538
    %v1555 = vtanh.pop %v1539
    %v1556 = vtanh.pop %v1540
    %v1557 = vtanh.pop %v1541
    %v1558 = vtanh.pop %v1542
    %v1559 = vtanh.pop %v1543
    %v1560 = vtanh.pop %v1544
    %v1561 = vtanh.pop %v1545
    %v1562 = vtanh.pop %v1546
    %v1563 = vtanh.pop %v1547
    %v1564 = vadd.f32 %v521, %v522
    %v1565 = vadd.f32 %v1564, %v523
    %v1566 = vadd.f32 %v1565, %v524
    %v1567 = vadd.f32 %v1566, %v525
    %v1568 = vadd.f32 %v1567, %v526
    %v1569 = vadd.f32 %v1568, %v527
    %v1570 = vadd.f32 %v1569, %v528
    %v1571 = vadd.f32 %v1570, %v529
    %v1572 = vadd.f32 %v1571, %v530
    %v1573 = vadd.f32 %v1572, %v531
    %v1574 = vadd.f32 %v1573, %v532
    %v1575 = vadd.f32 %v1574, %v533
    %v1576 = vadd.f32 %v1575, %v534
    %v1577 = vadd.f32 %v1576, %v535
    %v1578 = vadd.f32 %v1577, %v536
    %v1579 = vrot.slane %v1578, 4
    %v1580 = vadd.f32 %v1578, %v1579
    %v1581 = vrot.slane %v1580, 2
    %v1582 = vadd.f32 %v1580, %v1581
    %v1583 = vrot.slane %v1582, 1
    %v1584 = vadd.f32 %v1582, %v1583
    %v1585 = vmul.f32 %v1584, 0.015625
    %v1586 = vsub.f32 %v521, %v1585
    %v1587 = vsub.f32 %v522, %v1585
    %v1588 = vsub.f32 %v523, %v1585
    %v1589 = vsub.f32 %v524, %v1585
    %v1590 = vsub.f32 %v525, %v1585
    %v1591 = vsub.f32 %v526, %v1585
    %v1592 = vsub.f32 %v527, %v1585
    %v1593 = vsub.f32 %v528, %v1585
    %v1594 = vsub.f32 %v529, %v1585
    %v1595 = vsub.f32 %v530, %v1585
    %v1596 = vsub.f32 %v531, %v1585
    %v1597 = vsub.f32 %v532, %v1585
    %v1598 = vsub.f32 %v533, %v1585
    %v1599 = vsub.f32 %v534, %v1585
    %v1600 = vsub.f32 %v535, %v1585
    %v1601 = vsub.f32 %v536, %v1585
    %v1602 = vand.u32 2147483647, %v1586
    %v1603 = vand.u32 2147483647, %v1587
    %v1604 = vand.u32 2147483647, %v1588
    %v1605 = vand.u32 2147483647, %v1589
    %v1606 = vand.u32 2147483647, %v1590
    %v1607 = vand.u32 2147483647, %v1591
    %v1608 = vand.u32 2147483647, %v1592
    %v1609 = vand.u32 2147483647, %v1593
    %v1610 = vand.u32 2147483647, %v1594
    %v1611 = vand.u32 2147483647, %v1595
    %v1612 = vand.u32 2147483647, %v1596
    %v1613 = vand.u32 2147483647, %v1597
    %v1614 = vand.u32 2147483647, %v1598
    %v1615 = vand.u32 2147483647, %v1599
    %v1616 = vand.u32 2147483647, %v1600
    %v1617 = vand.u32 2147483647, %v1601
    %v1618 = vmul.f32 %v1602, %v1602
    %v1619 = vmul.f32 %v1603, %v1603
    %v1620 = vmul.f32 %v1604, %v1604
    %v1621 = vmul.f32 %v1605, %v1605
    %v1622 = vmul.f32 %v1606, %v1606
    %v1623 = vmul.f32 %v1607, %v1607
    %v1624 = vmul.f32 %v1608, %v1608
    %v1625 = vmul.f32 %v1609, %v1609
    %v1626 = vmul.f32 %v1610, %v1610
    %v1627 = vmul.f32 %v1611, %v1611
    %v1628 = vmul.f32 %v1612, %v1612
    %v1629 = vmul.f32 %v1613, %v1613
    %v1630 = vmul.f32 %v1614, %v1614
    %v1631 = vmul.f32 %v1615, %v1615
    %v1632 = vmul.f32 %v1616, %v1616
    %v1633 = vmul.f32 %v1617, %v1617
    %v1634 = vrsqrt.pop %v1602
    %v1635 = vmul.f32 %v1634, %v1602
    %v1636 = vmul.f32 %v1635, %v1634
    %v1637 = vmul.f32 0.5, %v1636
    %v1638 = vsub.f32 1.5, %v1637
    %v1639 = vmul.f32 %v1634, %v1638
    %v1640 = vmul.f32 %v1602, %v1639
    %vm1641 = vcmp.eq.f32.partialorder %v1602, inf
    %v1642 = vsel %vm1641, %v1602, %v1640
    %vm1643 = vcmp.eq.f32.partialorder %v1602, 0.0
    %v1644 = vand.u32 %v1602, 2147483648
    %v1645 = vsel %vm1643, %v1644, %v1642
    %v1646 = vrsqrt.pop %v1603
    %v1647 = vmul.f32 %v1646, %v1603
    %v1648 = vmul.f32 %v1647, %v1646
    %v1649 = vmul.f32 0.5, %v1648
    %v1650 = vsub.f32 1.5, %v1649
    %v1651 = vmul.f32 %v1646, %v1650
    %v1652 = vmul.f32 %v1603, %v1651
    %vm1653 = vcmp.eq.f32.partialorder %v1603, inf
    %v1654 = vsel %vm1653, %v1603, %v1652
    %vm1655 = vcmp.eq.f32.partialorder %v1603, 0.0
    %v1656 = vand.u32 %v1603, 2147483648
    %v1657 = vsel %vm1655, %v1656, %v1654
    %v1658 = vrsqrt.pop %v1604
    %v1659 = vmul.f32 %v1658, %v1604
    %v1660 = vmul.f32 %v1659, %v1658
    %v1661 = vmul.f32 0.5, %v1660
    %v1662 = vsub.f32 1.5, %v1661
    %v1663 = vmul.f32 %v1658, %v1662
    %v1664 = vmul.f32 %v1604, %v1663
    %vm1665 = vcmp.eq.f32.partialorder %v1604, inf
    %v1666 = vsel %vm1665, %v1604, %v1664
    %vm1667 = vcmp.eq.f32.partialorder %v1604, 0.0
    %v1668 = vand.u32 %v1604, 2147483648
    %v1669 = vsel %vm1667, %v1668, %v1666
    %v1670 = vrsqrt.pop %v1605
    %v1671 = vmul.f32 %v1670, %v1605
    %v1672 = vmul.f32 %v1671, %v1670
    %v1673 = vmul.f32 0.5, %v1672
    %v1674 = vsub.f32 1.5, %v1673
    %v1675 = vmul.f32 %v1670, %v1674
    %v1676 = vmul.f32 %v1605, %v1675
    %vm1677 = vcmp.eq.f32.partialorder %v1605, inf
    %v1678 = vsel %vm1677, %v1605, %v1676
    %vm1679 = vcmp.eq.f32.partialorder %v1605, 0.0
    %v1680 = vand.u32 %v1605, 2147483648
    %v1681 = vsel %vm1679, %v1680, %v1678
    %v1682 = vrsqrt.pop %v1606
    %v1683 = vmul.f32 %v1682, %v1606
    %v1684 = vmul.f32 %v1683, %v1682
    %v1685 = vmul.f32 0.5, %v1684
    %v1686 = vsub.f32 1.5, %v1685
    %v1687 = vmul.f32 %v1682, %v1686
    %v1688 = vmul.f32 %v1606, %v1687
    %vm1689 = vcmp.eq.f32.partialorder %v1606, inf
    %v1690 = vsel %vm1689, %v1606, %v1688
    %vm1691 = vcmp.eq.f32.partialorder %v1606, 0.0
    %v1692 = vand.u32 %v1606, 2147483648
    %v1693 = vsel %vm1691, %v1692, %v1690
    %v1694 = vrsqrt.pop %v1607
    %v1695 = vmul.f32 %v1694, %v1607
    %v1696 = vmul.f32 %v1695, %v1694
    %v1697 = vmul.f32 0.5, %v1696
    %v1698 = vsub.f32 1.5, %v1697
    %v1699 = vmul.f32 %v1694, %v1698
    %v1700 = vmul.f32 %v1607, %v1699
    %vm1701 = vcmp.eq.f32.partialorder %v1607, inf
    %v1702 = vsel %vm1701, %v1607, %v1700
    %vm1703 = vcmp.eq.f32.partialorder %v1607, 0.0
    %v1704 = vand.u32 %v1607, 2147483648
    %v1705 = vsel %vm1703, %v1704, %v1702
    %v1706 = vrsqrt.pop %v1608
    %v1707 = vmul.f32 %v1706, %v1608
    %v1708 = vmul.f32 %v1707, %v1706
    %v1709 = vmul.f32 0.5, %v1708
    %v1710 = vsub.f32 1.5, %v1709
    %v1711 = vmul.f32 %v1706, %v1710
    %v1712 = vmul.f32 %v1608, %v1711
    %vm1713 = vcmp.eq.f32.partialorder %v1608, inf
    %v1714 = vsel %vm1713, %v1608, %v1712
    %vm1715 = vcmp.eq.f32.partialorder %v1608, 0.0
    %v1716 = vand.u32 %v1608, 2147483648
    %v1717 = vsel %vm1715, %v1716, %v1714
    %v1718 = vrsqrt.pop %v1609
    %v1719 = vmul.f32 %v1718, %v1609
    %v1720 = vmul.f32 %v1719, %v1718
    %v1721 = vmul.f32 0.5, %v1720
    %v1722 = vsub.f32 1.5, %v1721
    %v1723 = vmul.f32 %v1718, %v1722
    %v1724 = vmul.f32 %v1609, %v1723
    %vm1725 = vcmp.eq.f32.partialorder %v1609, inf
    %v1726 = vsel %vm1725, %v1609, %v1724
    %vm1727 = vcmp.eq.f32.partialorder %v1609, 0.0
    %v1728 = vand.u32 %v1609, 2147483648
    %v1729 = vsel %vm1727, %v1728, %v1726
    %v1730 = vrsqrt.pop %v1610
    %v1731 = vmul.f32 %v1730, %v1610
    %v1732 = vmul.f32 %v1731, %v1730
    %v1733 = vmul.f32 0.5, %v1732
    %v1734 = vsub.f32 1.5, %v1733
    %v1735 = vmul.f32 %v1730, %v1734
    %v1736 = vmul.f32 %v1610, %v1735
    %vm1737 = vcmp.eq.f32.partialorder %v1610, inf
    %v1738 = vsel %vm1737, %v1610, %v1736
    %vm1739 = vcmp.eq.f32.partialorder %v1610, 0.0
    %v1740 = vand.u32 %v1610, 2147483648
    %v1741 = vsel %vm1739, %v1740, %v1738
    %v1742 = vrsqrt.pop %v1611
    %v1743 = vmul.f32 %v1742, %v1611
    %v1744 = vmul.f32 %v1743, %v1742
    %v1745 = vmul.f32 0.5, %v1744
    %v1746 = vsub.f32 1.5, %v1745
    %v1747 = vmul.f32 %v1742, %v1746
    %v1748 = vmul.f32 %v1611, %v1747
    %vm1749 = vcmp.eq.f32.partialorder %v1611, inf
    %v1750 = vsel %vm1749, %v1611, %v1748
    %vm1751 = vcmp.eq.f32.partialorder %v1611, 0.0
    %v1752 = vand.u32 %v1611, 2147483648
    %v1753 = vsel %vm1751, %v1752, %v1750
    %v1754 = vrsqrt.pop %v1612
    %v1755 = vmul.f32 %v1754, %v1612
    %v1756 = vmul.f32 %v1755, %v1754
    %v1757 = vmul.f32 0.5, %v1756
    %v1758 = vsub.f32 1.5, %v1757
    %v1759 = vmul.f32 %v1754, %v1758
    %v1760 = vmul.f32 %v1612, %v1759
    %vm1761 = vcmp.eq.f32.partialorder %v1612, inf
    %v1762 = vsel %vm1761, %v1612, %v1760
    %vm1763 = vcmp.eq.f32.partialorder %v1612, 0.0
    %v1764 = vand.u32 %v1612, 2147483648
    %v1765 = vsel %vm1763, %v1764, %v1762
    %v1766 = vrsqrt.pop %v1613
    %v1767 = vmul.f32 %v1766, %v1613
    %v1768 = vmul.f32 %v1767, %v1766
    %v1769 = vmul.f32 0.5, %v1768
    %v1770 = vsub.f32 1.5, %v1769
    %v1771 = vmul.f32 %v1766, %v1770
    %v1772 = vmul.f32 %v1613, %v1771
    %vm1773 = vcmp.eq.f32.partialorder %v1613, inf
    %v1774 = vsel %vm1773, %v1613, %v1772
    %vm1775 = vcmp.eq.f32.partialorder %v1613, 0.0
    %v1776 = vand.u32 %v1613, 2147483648
    %v1777 = vsel %vm1775, %v1776, %v1774
    %v1778 = vrsqrt.pop %v1614
    %v1779 = vmul.f32 %v1778, %v1614
    %v1780 = vmul.f32 %v1779, %v1778
    %v1781 = vmul.f32 0.5, %v1780
    %v1782 = vsub.f32 1.5, %v1781
    %v1783 = vmul.f32 %v1778, %v1782
    %v1784 = vmul.f32 %v1614, %v1783
    %vm1785 = vcmp.eq.f32.partialorder %v1614, inf
    %v1786 = vsel %vm1785, %v1614, %v1784
    %vm1787 = vcmp.eq.f32.partialorder %v1614, 0.0
    %v1788 = vand.u32 %v1614, 2147483648
    %v1789 = vsel %vm1787, %v1788, %v1786
    %v1790 = vrsqrt.pop %v1615
    %v1791 = vmul.f32 %v1790, %v1615
    %v1792 = vmul.f32 %v1791, %v1790
    %v1793 = vmul.f32 0.5, %v1792
    %v1794 = vsub.f32 1.5, %v1793
    %v1795 = vmul.f32 %v1790, %v1794
    %v1796 = vmul.f32 %v1615, %v1795
    %vm1797 = vcmp.eq.f32.partialorder %v1615, inf
    %v1798 = vsel %vm1797, %v1615, %v1796
    %vm1799 = vcmp.eq.f32.partialorder %v1615, 0.0
    %v1800 = vand.u32 %v1615, 2147483648
    %v1801 = vsel %vm1799, %v1800, %v1798
    %v1802 = vrsqrt.pop %v1616
    %v1803 = vmul.f32 %v1802, %v1616
    %v1804 = vmul.f32 %v1803, %v1802
    %v1805 = vmul.f32 0.5, %v1804
    %v1806 = vsub.f32 1.5, %v1805
    %v1807 = vmul.f32 %v1802, %v1806
    %v1808 = vmul.f32 %v1616, %v1807
    %vm1809 = vcmp.eq.f32.partialorder %v1616, inf
    %v1810 = vsel %vm1809, %v1616, %v1808
    %vm1811 = vcmp.eq.f32.partialorder %v1616, 0.0
    %v1812 = vand.u32 %v1616, 2147483648
    %v1813 = vsel %vm1811, %v1812, %v1810
    %v1814 = vrsqrt.pop %v1617
    %v1815 = vmul.f32 %v1814, %v1617
    %v1816 = vmul.f32 %v1815, %v1814
    %v1817 = vmul.f32 0.5, %v1816
    %v1818 = vsub.f32 1.5, %v1817
    %v1819 = vmul.f32 %v1814, %v1818
    %v1820 = vmul.f32 %v1617, %v1819
    %vm1821 = vcmp.eq.f32.partialorder %v1617, inf
    %v1822 = vsel %vm1821, %v1617, %v1820
    %vm1823 = vcmp.eq.f32.partialorder %v1617, 0.0
    %v1824 = vand.u32 %v1617, 2147483648
    %v1825 = vsel %vm1823, %v1824, %v1822
    %v1826 = vmul.f32 %v1618, %v1645
    %v1827 = vmul.f32 %v1619, %v1657
    %v1828 = vmul.f32 %v1620, %v1669
    %v1829 = vmul.f32 %v1621, %v1681
    %v1830 = vmul.f32 %v1622, %v1693
    %v1831 = vmul.f32 %v1623, %v1705
    %v1832 = vmul.f32 %v1624, %v1717
    %v1833 = vmul.f32 %v1625, %v1729
    %v1834 = vmul.f32 %v1626, %v1741
    %v1835 = vmul.f32 %v1627, %v1753
    %v1836 = vmul.f32 %v1628, %v1765
    %v1837 = vmul.f32 %v1629, %v1777
    %v1838 = vmul.f32 %v1630, %v1789
    %v1839 = vmul.f32 %v1631, %v1801
    %v1840 = vmul.f32 %v1632, %v1813
    %v1841 = vmul.f32 %v1633, %v1825
    %1842 = vadd.xlane.f32.xlu0 %v1826
    %v1843 = vpop.xlane.xlu0 %1842
    %1844 = vadd.xlane.f32.xlu0 %v1827
    %v1845 = vpop.xlane.xlu0 %1844
    %1846 = vadd.xlane.f32.xlu0 %v1828
    %v1847 = vpop.xlane.xlu0 %1846
    %1848 = vadd.xlane.f32.xlu0 %v1829
    %v1849 = vpop.xlane.xlu0 %1848
    %1850 = vadd.xlane.f32.xlu0 %v1830
    %v1851 = vpop.xlane.xlu0 %1850
    %1852 = vadd.xlane.f32.xlu0 %v1831
    %v1853 = vpop.xlane.xlu0 %1852
    %1854 = vadd.xlane.f32.xlu0 %v1832
    %v1855 = vpop.xlane.xlu0 %1854
    %1856 = vadd.xlane.f32.xlu0 %v1833
    %v1857 = vpop.xlane.xlu0 %1856
    %1858 = vadd.xlane.f32.xlu0 %v1834
    %v1859 = vpop.xlane.xlu0 %1858
    %1860 = vadd.xlane.f32.xlu0 %v1835
    %v1861 = vpop.xlane.xlu0 %1860
    %1862 = vadd.xlane.f32.xlu0 %v1836
    %v1863 = vpop.xlane.xlu0 %1862
    %1864 = vadd.xlane.f32.xlu0 %v1837
    %v1865 = vpop.xlane.xlu0 %1864
    %1866 = vadd.xlane.f32.xlu0 %v1838
    %v1867 = vpop.xlane.xlu0 %1866
    %1868 = vadd.xlane.f32.xlu0 %v1839
    %v1869 = vpop.xlane.xlu0 %1868
    %1870 = vadd.xlane.f32.xlu0 %v1840
    %v1871 = vpop.xlane.xlu0 %1870
    %1872 = vadd.xlane.f32.xlu0 %v1841
    %v1873 = vpop.xlane.xlu0 %1872
    %v1874 = vtanh.pop %v1843
    %v1875 = vtanh.pop %v1845
    %v1876 = vtanh.pop %v1847
    %v1877 = vtanh.pop %v1849
    %v1878 = vtanh.pop %v1851
    %v1879 = vtanh.pop %v1853
    %v1880 = vtanh.pop %v1855
    %v1881 = vtanh.pop %v1857
    %v1882 = vtanh.pop %v1859
    %v1883 = vtanh.pop %v1861
    %v1884 = vtanh.pop %v1863
    %v1885 = vtanh.pop %v1865
    %v1886 = vtanh.pop %v1867
    %v1887 = vtanh.pop %v1869
    %v1888 = vtanh.pop %v1871
    %v1889 = vtanh.pop %v1873
    %v1890 = vsub.f32 1.0, %v1874
    %v1891 = vsub.f32 1.0, %v1875
    %v1892 = vsub.f32 1.0, %v1876
    %v1893 = vsub.f32 1.0, %v1877
    %v1894 = vsub.f32 1.0, %v1878
    %v1895 = vsub.f32 1.0, %v1879
    %v1896 = vsub.f32 1.0, %v1880
    %v1897 = vsub.f32 1.0, %v1881
    %v1898 = vsub.f32 1.0, %v1882
    %v1899 = vsub.f32 1.0, %v1883
    %v1900 = vsub.f32 1.0, %v1884
    %v1901 = vsub.f32 1.0, %v1885
    %v1902 = vsub.f32 1.0, %v1886
    %v1903 = vsub.f32 1.0, %v1887
    %v1904 = vsub.f32 1.0, %v1888
    %v1905 = vsub.f32 1.0, %v1889
    %v1906 = vadd.f32 %v1548, 1.0
    %v1907 = vadd.f32 %v1549, 1.0
    %v1908 = vadd.f32 %v1550, 1.0
    %v1909 = vadd.f32 %v1551, 1.0
    %v1910 = vadd.f32 %v1552, 1.0
    %v1911 = vadd.f32 %v1553, 1.0
    %v1912 = vadd.f32 %v1554, 1.0
    %v1913 = vadd.f32 %v1555, 1.0
    %v1914 = vadd.f32 %v1556, 1.0
    %v1915 = vadd.f32 %v1557, 1.0
    %v1916 = vadd.f32 %v1558, 1.0
    %v1917 = vadd.f32 %v1559, 1.0
    %v1918 = vadd.f32 %v1560, 1.0
    %v1919 = vadd.f32 %v1561, 1.0
    %v1920 = vadd.f32 %v1562, 1.0
    %v1921 = vadd.f32 %v1563, 1.0
    %v1922 = vadd.f32 %v1906, %v1890
    %v1923 = vadd.f32 %v1907, %v1891
    %v1924 = vadd.f32 %v1908, %v1892
    %v1925 = vadd.f32 %v1909, %v1893
    %v1926 = vadd.f32 %v1910, %v1894
    %v1927 = vadd.f32 %v1911, %v1895
    %v1928 = vadd.f32 %v1912, %v1896
    %v1929 = vadd.f32 %v1913, %v1897
    %v1930 = vadd.f32 %v1914, %v1898
    %v1931 = vadd.f32 %v1915, %v1899
    %v1932 = vadd.f32 %v1916, %v1900
    %v1933 = vadd.f32 %v1917, %v1901
    %v1934 = vadd.f32 %v1918, %v1902
    %v1935 = vadd.f32 %v1919, %v1903
    %v1936 = vadd.f32 %v1920, %v1904
    %v1937 = vadd.f32 %v1921, %v1905
    %v1938 = vrcp.pop %v1922
    %v1939 = vmul.f32 %v1922, %v1938
    %v1940 = vsub.f32 1.0, %v1939
    %v1941 = vmul.f32 %v1938, %v1940
    %v1942 = vadd.f32 %v1938, %v1941
    %vm1943 = vweird.f32 %v1922
    %vm1944 = vweird.f32 %v1938
    %vm1945 = vmor %vm1943, %vm1944
    %v1946 = vsel %vm1945, %v1938, %v1942
    %v1947 = vand.u32 2147483647, %v1922
    %vm1948 = vcmp.eq.f32.partialorder %v1947, 8.507059e+37
    %v1949 = vand.u32 %v1922, 2147483648
    %v1950 = vor.u32 1.1754944e-38, %v1949
    %v1951 = vsel %vm1948, %v1950, %v1946
    %v1952 = vmul.f32 1.0, %v1951
    %v1953 = vrcp.pop %v1923
    %v1954 = vmul.f32 %v1923, %v1953
    %v1955 = vsub.f32 1.0, %v1954
    %v1956 = vmul.f32 %v1953, %v1955
    %v1957 = vadd.f32 %v1953, %v1956
    %vm1958 = vweird.f32 %v1923
    %vm1959 = vweird.f32 %v1953
    %vm1960 = vmor %vm1958, %vm1959
    %v1961 = vsel %vm1960, %v1953, %v1957
    %v1962 = vand.u32 2147483647, %v1923
    %vm1963 = vcmp.eq.f32.partialorder %v1962, 8.507059e+37
    %v1964 = vand.u32 %v1923, 2147483648
    %v1965 = vor.u32 1.1754944e-38, %v1964
    %v1966 = vsel %vm1963, %v1965, %v1961
    %v1967 = vmul.f32 1.0, %v1966
    %v1968 = vrcp.pop %v1924
    %v1969 = vmul.f32 %v1924, %v1968
    %v1970 = vsub.f32 1.0, %v1969
    %v1971 = vmul.f32 %v1968, %v1970
    %v1972 = vadd.f32 %v1968, %v1971
    %vm1973 = vweird.f32 %v1924
    %vm1974 = vweird.f32 %v1968
    %vm1975 = vmor %vm1973, %vm1974
    %v1976 = vsel %vm1975, %v1968, %v1972
    %v1977 = vand.u32 2147483647, %v1924
    %vm1978 = vcmp.eq.f32.partialorder %v1977, 8.507059e+37
    %v1979 = vand.u32 %v1924, 2147483648
    %v1980 = vor.u32 1.1754944e-38, %v1979
    %v1981 = vsel %vm1978, %v1980, %v1976
    %v1982 = vmul.f32 1.0, %v1981
    %v1983 = vrcp.pop %v1925
    %v1984 = vmul.f32 %v1925, %v1983
    %v1985 = vsub.f32 1.0, %v1984
    %v1986 = vmul.f32 %v1983, %v1985
    %v1987 = vadd.f32 %v1983, %v1986
    %vm1988 = vweird.f32 %v1925
    %vm1989 = vweird.f32 %v1983
    %vm1990 = vmor %vm1988, %vm1989
    %v1991 = vsel %vm1990, %v1983, %v1987
    %v1992 = vand.u32 2147483647, %v1925
    %vm1993 = vcmp.eq.f32.partialorder %v1992, 8.507059e+37
    %v1994 = vand.u32 %v1925, 2147483648
    %v1995 = vor.u32 1.1754944e-38, %v1994
    %v1996 = vsel %vm1993, %v1995, %v1991
    %v1997 = vmul.f32 1.0, %v1996
    %v1998 = vrcp.pop %v1926
    %v1999 = vmul.f32 %v1926, %v1998
    %v2000 = vsub.f32 1.0, %v1999
    %v2001 = vmul.f32 %v1998, %v2000
    %v2002 = vadd.f32 %v1998, %v2001
    %vm2003 = vweird.f32 %v1926
    %vm2004 = vweird.f32 %v1998
    %vm2005 = vmor %vm2003, %vm2004
    %v2006 = vsel %vm2005, %v1998, %v2002
    %v2007 = vand.u32 2147483647, %v1926
    %vm2008 = vcmp.eq.f32.partialorder %v2007, 8.507059e+37
    %v2009 = vand.u32 %v1926, 2147483648
    %v2010 = vor.u32 1.1754944e-38, %v2009
    %v2011 = vsel %vm2008, %v2010, %v2006
    %v2012 = vmul.f32 1.0, %v2011
    %v2013 = vrcp.pop %v1927
    %v2014 = vmul.f32 %v1927, %v2013
    %v2015 = vsub.f32 1.0, %v2014
    %v2016 = vmul.f32 %v2013, %v2015
    %v2017 = vadd.f32 %v2013, %v2016
    %vm2018 = vweird.f32 %v1927
    %vm2019 = vweird.f32 %v2013
    %vm2020 = vmor %vm2018, %vm2019
    %v2021 = vsel %vm2020, %v2013, %v2017
    %v2022 = vand.u32 2147483647, %v1927
    %vm2023 = vcmp.eq.f32.partialorder %v2022, 8.507059e+37
    %v2024 = vand.u32 %v1927, 2147483648
    %v2025 = vor.u32 1.1754944e-38, %v2024
    %v2026 = vsel %vm2023, %v2025, %v2021
    %v2027 = vmul.f32 1.0, %v2026
    %v2028 = vrcp.pop %v1928
    %v2029 = vmul.f32 %v1928, %v2028
    %v2030 = vsub.f32 1.0, %v2029
    %v2031 = vmul.f32 %v2028, %v2030
    %v2032 = vadd.f32 %v2028, %v2031
    %vm2033 = vweird.f32 %v1928
    %vm2034 = vweird.f32 %v2028
    %vm2035 = vmor %vm2033, %vm2034
    %v2036 = vsel %vm2035, %v2028, %v2032
    %v2037 = vand.u32 2147483647, %v1928
    %vm2038 = vcmp.eq.f32.partialorder %v2037, 8.507059e+37
    %v2039 = vand.u32 %v1928, 2147483648
    %v2040 = vor.u32 1.1754944e-38, %v2039
    %v2041 = vsel %vm2038, %v2040, %v2036
    %v2042 = vmul.f32 1.0, %v2041
    %v2043 = vrcp.pop %v1929
    %v2044 = vmul.f32 %v1929, %v2043
    %v2045 = vsub.f32 1.0, %v2044
    %v2046 = vmul.f32 %v2043, %v2045
    %v2047 = vadd.f32 %v2043, %v2046
    %vm2048 = vweird.f32 %v1929
    %vm2049 = vweird.f32 %v2043
    %vm2050 = vmor %vm2048, %vm2049
    %v2051 = vsel %vm2050, %v2043, %v2047
    %v2052 = vand.u32 2147483647, %v1929
    %vm2053 = vcmp.eq.f32.partialorder %v2052, 8.507059e+37
    %v2054 = vand.u32 %v1929, 2147483648
    %v2055 = vor.u32 1.1754944e-38, %v2054
    %v2056 = vsel %vm2053, %v2055, %v2051
    %v2057 = vmul.f32 1.0, %v2056
    %v2058 = vrcp.pop %v1930
    %v2059 = vmul.f32 %v1930, %v2058
    %v2060 = vsub.f32 1.0, %v2059
    %v2061 = vmul.f32 %v2058, %v2060
    %v2062 = vadd.f32 %v2058, %v2061
    %vm2063 = vweird.f32 %v1930
    %vm2064 = vweird.f32 %v2058
    %vm2065 = vmor %vm2063, %vm2064
    %v2066 = vsel %vm2065, %v2058, %v2062
    %v2067 = vand.u32 2147483647, %v1930
    %vm2068 = vcmp.eq.f32.partialorder %v2067, 8.507059e+37
    %v2069 = vand.u32 %v1930, 2147483648
    %v2070 = vor.u32 1.1754944e-38, %v2069
    %v2071 = vsel %vm2068, %v2070, %v2066
    %v2072 = vmul.f32 1.0, %v2071
    %v2073 = vrcp.pop %v1931
    %v2074 = vmul.f32 %v1931, %v2073
    %v2075 = vsub.f32 1.0, %v2074
    %v2076 = vmul.f32 %v2073, %v2075
    %v2077 = vadd.f32 %v2073, %v2076
    %vm2078 = vweird.f32 %v1931
    %vm2079 = vweird.f32 %v2073
    %vm2080 = vmor %vm2078, %vm2079
    %v2081 = vsel %vm2080, %v2073, %v2077
    %v2082 = vand.u32 2147483647, %v1931
    %vm2083 = vcmp.eq.f32.partialorder %v2082, 8.507059e+37
    %v2084 = vand.u32 %v1931, 2147483648
    %v2085 = vor.u32 1.1754944e-38, %v2084
    %v2086 = vsel %vm2083, %v2085, %v2081
    %v2087 = vmul.f32 1.0, %v2086
    %v2088 = vrcp.pop %v1932
    %v2089 = vmul.f32 %v1932, %v2088
    %v2090 = vsub.f32 1.0, %v2089
    %v2091 = vmul.f32 %v2088, %v2090
    %v2092 = vadd.f32 %v2088, %v2091
    %vm2093 = vweird.f32 %v1932
    %vm2094 = vweird.f32 %v2088
    %vm2095 = vmor %vm2093, %vm2094
    %v2096 = vsel %vm2095, %v2088, %v2092
    %v2097 = vand.u32 2147483647, %v1932
    %vm2098 = vcmp.eq.f32.partialorder %v2097, 8.507059e+37
    %v2099 = vand.u32 %v1932, 2147483648
    %v2100 = vor.u32 1.1754944e-38, %v2099
    %v2101 = vsel %vm2098, %v2100, %v2096
    %v2102 = vmul.f32 1.0, %v2101
    %v2103 = vrcp.pop %v1933
    %v2104 = vmul.f32 %v1933, %v2103
    %v2105 = vsub.f32 1.0, %v2104
    %v2106 = vmul.f32 %v2103, %v2105
    %v2107 = vadd.f32 %v2103, %v2106
    %vm2108 = vweird.f32 %v1933
    %vm2109 = vweird.f32 %v2103
    %vm2110 = vmor %vm2108, %vm2109
    %v2111 = vsel %vm2110, %v2103, %v2107
    %v2112 = vand.u32 2147483647, %v1933
    %vm2113 = vcmp.eq.f32.partialorder %v2112, 8.507059e+37
    %v2114 = vand.u32 %v1933, 2147483648
    %v2115 = vor.u32 1.1754944e-38, %v2114
    %v2116 = vsel %vm2113, %v2115, %v2111
    %v2117 = vmul.f32 1.0, %v2116
    %v2118 = vrcp.pop %v1934
    %v2119 = vmul.f32 %v1934, %v2118
    %v2120 = vsub.f32 1.0, %v2119
    %v2121 = vmul.f32 %v2118, %v2120
    %v2122 = vadd.f32 %v2118, %v2121
    %vm2123 = vweird.f32 %v1934
    %vm2124 = vweird.f32 %v2118
    %vm2125 = vmor %vm2123, %vm2124
    %v2126 = vsel %vm2125, %v2118, %v2122
    %v2127 = vand.u32 2147483647, %v1934
    %vm2128 = vcmp.eq.f32.partialorder %v2127, 8.507059e+37
    %v2129 = vand.u32 %v1934, 2147483648
    %v2130 = vor.u32 1.1754944e-38, %v2129
    %v2131 = vsel %vm2128, %v2130, %v2126
    %v2132 = vmul.f32 1.0, %v2131
    %v2133 = vrcp.pop %v1935
    %v2134 = vmul.f32 %v1935, %v2133
    %v2135 = vsub.f32 1.0, %v2134
    %v2136 = vmul.f32 %v2133, %v2135
    %v2137 = vadd.f32 %v2133, %v2136
    %vm2138 = vweird.f32 %v1935
    %vm2139 = vweird.f32 %v2133
    %vm2140 = vmor %vm2138, %vm2139
    %v2141 = vsel %vm2140, %v2133, %v2137
    %v2142 = vand.u32 2147483647, %v1935
    %vm2143 = vcmp.eq.f32.partialorder %v2142, 8.507059e+37
    %v2144 = vand.u32 %v1935, 2147483648
    %v2145 = vor.u32 1.1754944e-38, %v2144
    %v2146 = vsel %vm2143, %v2145, %v2141
    %v2147 = vmul.f32 1.0, %v2146
    %v2148 = vrcp.pop %v1936
    %v2149 = vmul.f32 %v1936, %v2148
    %v2150 = vsub.f32 1.0, %v2149
    %v2151 = vmul.f32 %v2148, %v2150
    %v2152 = vadd.f32 %v2148, %v2151
    %vm2153 = vweird.f32 %v1936
    %vm2154 = vweird.f32 %v2148
    %vm2155 = vmor %vm2153, %vm2154
    %v2156 = vsel %vm2155, %v2148, %v2152
    %v2157 = vand.u32 2147483647, %v1936
    %vm2158 = vcmp.eq.f32.partialorder %v2157, 8.507059e+37
    %v2159 = vand.u32 %v1936, 2147483648
    %v2160 = vor.u32 1.1754944e-38, %v2159
    %v2161 = vsel %vm2158, %v2160, %v2156
    %v2162 = vmul.f32 1.0, %v2161
    %v2163 = vrcp.pop %v1937
    %v2164 = vmul.f32 %v1937, %v2163
    %v2165 = vsub.f32 1.0, %v2164
    %v2166 = vmul.f32 %v2163, %v2165
    %v2167 = vadd.f32 %v2163, %v2166
    %vm2168 = vweird.f32 %v1937
    %vm2169 = vweird.f32 %v2163
    %vm2170 = vmor %vm2168, %vm2169
    %v2171 = vsel %vm2170, %v2163, %v2167
    %v2172 = vand.u32 2147483647, %v1937
    %vm2173 = vcmp.eq.f32.partialorder %v2172, 8.507059e+37
    %v2174 = vand.u32 %v1937, 2147483648
    %v2175 = vor.u32 1.1754944e-38, %v2174
    %v2176 = vsel %vm2173, %v2175, %v2171
    %v2177 = vmul.f32 1.0, %v2176
    %2179 = vset.pattern.permute.xlu0 0
    %2180 = vperm.xlu0 %2179, %v1548
    %v2181 = vpop.permute.xlu0 %2180
    %2184 = vset.pattern.permute.xlu0 0
    %2185 = vperm.xlu0 %2184, %v1549
    %v2186 = vpop.permute.xlu0 %2185
    %2189 = vset.pattern.permute.xlu0 0
    %2190 = vperm.xlu0 %2189, %v1550
    %v2191 = vpop.permute.xlu0 %2190
    %2194 = vset.pattern.permute.xlu0 0
    %2195 = vperm.xlu0 %2194, %v1551
    %v2196 = vpop.permute.xlu0 %2195
    %2199 = vset.pattern.permute.xlu0 0
    %2200 = vperm.xlu0 %2199, %v1552
    %v2201 = vpop.permute.xlu0 %2200
    %2204 = vset.pattern.permute.xlu0 0
    %2205 = vperm.xlu0 %2204, %v1553
    %v2206 = vpop.permute.xlu0 %2205
    %2209 = vset.pattern.permute.xlu0 0
    %2210 = vperm.xlu0 %2209, %v1554
    %v2211 = vpop.permute.xlu0 %2210
    %2214 = vset.pattern.permute.xlu0 0
    %2215 = vperm.xlu0 %2214, %v1555
    %v2216 = vpop.permute.xlu0 %2215
    %2219 = vset.pattern.permute.xlu0 0
    %2220 = vperm.xlu0 %2219, %v1556
    %v2221 = vpop.permute.xlu0 %2220
    %2224 = vset.pattern.permute.xlu0 0
    %2225 = vperm.xlu0 %2224, %v1557
    %v2226 = vpop.permute.xlu0 %2225
    %2229 = vset.pattern.permute.xlu0 0
    %2230 = vperm.xlu0 %2229, %v1558
    %v2231 = vpop.permute.xlu0 %2230
    %2234 = vset.pattern.permute.xlu0 0
    %2235 = vperm.xlu0 %2234, %v1559
    %v2236 = vpop.permute.xlu0 %2235
    %2239 = vset.pattern.permute.xlu0 0
    %2240 = vperm.xlu0 %2239, %v1560
    %v2241 = vpop.permute.xlu0 %2240
    %2244 = vset.pattern.permute.xlu0 0
    %2245 = vperm.xlu0 %2244, %v1561
    %v2246 = vpop.permute.xlu0 %2245
    %2249 = vset.pattern.permute.xlu0 0
    %2250 = vperm.xlu0 %2249, %v1562
    %v2251 = vpop.permute.xlu0 %2250
    %2254 = vset.pattern.permute.xlu0 0
    %2255 = vperm.xlu0 %2254, %v1563
    %v2256 = vpop.permute.xlu0 %2255
    %v2258 = vmul.f32 %v2181, %v1098
    %v2259 = vmul.f32 %v2186, %v1099
    %v2260 = vmul.f32 %v2191, %v1100
    %v2261 = vmul.f32 %v2196, %v1101
    %v2262 = vmul.f32 %v2201, %v1102
    %v2263 = vmul.f32 %v2206, %v1103
    %v2264 = vmul.f32 %v2211, %v1104
    %v2265 = vmul.f32 %v2216, %v1105
    %v2266 = vmul.f32 %v2221, %v1106
    %v2267 = vmul.f32 %v2226, %v1107
    %v2268 = vmul.f32 %v2231, %v1108
    %v2269 = vmul.f32 %v2236, %v1109
    %v2270 = vmul.f32 %v2241, %v1110
    %v2271 = vmul.f32 %v2246, %v1111
    %v2272 = vmul.f32 %v2251, %v1112
    %v2273 = vmul.f32 %v2256, %v1113
    %v2274 = vadd.f32 %v521, %v2258
    %v2275 = vadd.f32 %v522, %v2259
    %v2276 = vadd.f32 %v523, %v2260
    %v2277 = vadd.f32 %v524, %v2261
    %v2278 = vadd.f32 %v525, %v2262
    %v2279 = vadd.f32 %v526, %v2263
    %v2280 = vadd.f32 %v527, %v2264
    %v2281 = vadd.f32 %v528, %v2265
    %v2282 = vadd.f32 %v529, %v2266
    %v2283 = vadd.f32 %v530, %v2267
    %v2284 = vadd.f32 %v531, %v2268
    %v2285 = vadd.f32 %v532, %v2269
    %v2286 = vadd.f32 %v533, %v2270
    %v2287 = vadd.f32 %v534, %v2271
    %v2288 = vadd.f32 %v535, %v2272
    %v2289 = vadd.f32 %v536, %v2273
    %v2290 = vmul.f32 %v1890, %v381
    %v2291 = vmul.f32 %v1891, %v383
    %v2292 = vmul.f32 %v1892, %v386
    %v2293 = vmul.f32 %v1893, %v388
    %v2294 = vmul.f32 %v1894, %v391
    %v2295 = vmul.f32 %v1895, %v393
    %v2296 = vmul.f32 %v1896, %v396
    %v2297 = vmul.f32 %v1897, %v398
    %v2298 = vmul.f32 %v1898, %v401
    %v2299 = vmul.f32 %v1899, %v403
    %v2300 = vmul.f32 %v1900, %v406
    %v2301 = vmul.f32 %v1901, %v408
    %v2302 = vmul.f32 %v1902, %v411
    %v2303 = vmul.f32 %v1903, %v413
    %v2304 = vmul.f32 %v1904, %v416
    %v2305 = vmul.f32 %v1905, %v418
    %v2306 = vadd.f32 %v2274, %v2290
    %v2307 = vadd.f32 %v2275, %v2291
    %v2308 = vadd.f32 %v2276, %v2292
    %v2309 = vadd.f32 %v2277, %v2293
    %v2310 = vadd.f32 %v2278, %v2294
    %v2311 = vadd.f32 %v2279, %v2295
    %v2312 = vadd.f32 %v2280, %v2296
    %v2313 = vadd.f32 %v2281, %v2297
    %v2314 = vadd.f32 %v2282, %v2298
    %v2315 = vadd.f32 %v2283, %v2299
    %v2316 = vadd.f32 %v2284, %v2300
    %v2317 = vadd.f32 %v2285, %v2301
    %v2318 = vadd.f32 %v2286, %v2302
    %v2319 = vadd.f32 %v2287, %v2303
    %v2320 = vadd.f32 %v2288, %v2304
    %v2321 = vadd.f32 %v2289, %v2305
    %2323 = vset.pattern.permute.xlu0 0
    %2324 = vperm.xlu0 %2323, %v1952
    %v2325 = vpop.permute.xlu0 %2324
    %2328 = vset.pattern.permute.xlu0 0
    %2329 = vperm.xlu0 %2328, %v1967
    %v2330 = vpop.permute.xlu0 %2329
    %2333 = vset.pattern.permute.xlu0 0
    %2334 = vperm.xlu0 %2333, %v1982
    %v2335 = vpop.permute.xlu0 %2334
    %2338 = vset.pattern.permute.xlu0 0
    %2339 = vperm.xlu0 %2338, %v1997
    %v2340 = vpop.permute.xlu0 %2339
    %2343 = vset.pattern.permute.xlu0 0
    %2344 = vperm.xlu0 %2343, %v2012
    %v2345 = vpop.permute.xlu0 %2344
    %2348 = vset.pattern.permute.xlu0 0
    %2349 = vperm.xlu0 %2348, %v2027
    %v2350 = vpop.permute.xlu0 %2349
    %2353 = vset.pattern.permute.xlu0 0
    %2354 = vperm.xlu0 %2353, %v2042
    %v2355 = vpop.permute.xlu0 %2354
    %2358 = vset.pattern.permute.xlu0 0
    %2359 = vperm.xlu0 %2358, %v2057
    %v2360 = vpop.permute.xlu0 %2359
    %2363 = vset.pattern.permute.xlu0 0
    %2364 = vperm.xlu0 %2363, %v2072
    %v2365 = vpop.permute.xlu0 %2364
    %2368 = vset.pattern.permute.xlu0 0
    %2369 = vperm.xlu0 %2368, %v2087
    %v2370 = vpop.permute.xlu0 %2369
    %2373 = vset.pattern.permute.xlu0 0
    %2374 = vperm.xlu0 %2373, %v2102
    %v2375 = vpop.permute.xlu0 %2374
    %2378 = vset.pattern.permute.xlu0 0
    %2379 = vperm.xlu0 %2378, %v2117
    %v2380 = vpop.permute.xlu0 %2379
    %2383 = vset.pattern.permute.xlu0 0
    %2384 = vperm.xlu0 %2383, %v2132
    %v2385 = vpop.permute.xlu0 %2384
    %2388 = vset.pattern.permute.xlu0 0
    %2389 = vperm.xlu0 %2388, %v2147
    %v2390 = vpop.permute.xlu0 %2389
    %2393 = vset.pattern.permute.xlu0 0
    %2394 = vperm.xlu0 %2393, %v2162
    %v2395 = vpop.permute.xlu0 %2394
    %2398 = vset.pattern.permute.xlu0 0
    %2399 = vperm.xlu0 %2398, %v2177
    %v2400 = vpop.permute.xlu0 %2399
    %v2402 = vmul.f32 %v2306, %v2325
    %v2403 = vmul.f32 %v2307, %v2330
    %v2404 = vmul.f32 %v2308, %v2335
    %v2405 = vmul.f32 %v2309, %v2340
    %v2406 = vmul.f32 %v2310, %v2345
    %v2407 = vmul.f32 %v2311, %v2350
    %v2408 = vmul.f32 %v2312, %v2355
    %v2409 = vmul.f32 %v2313, %v2360
    %v2410 = vmul.f32 %v2314, %v2365
    %v2411 = vmul.f32 %v2315, %v2370
    %v2412 = vmul.f32 %v2316, %v2375
    %v2413 = vmul.f32 %v2317, %v2380
    %v2414 = vmul.f32 %v2318, %v2385
    %v2415 = vmul.f32 %v2319, %v2390
    %v2416 = vmul.f32 %v2320, %v2395
    %v2417 = vmul.f32 %v2321, %v2400
    %v2418 = vpack.c.bf16 %v2402, %v2402
    %v2419 = vpack.c.bf16 %v2403, %v2403
    %v2420 = vpack.c.bf16 %v2404, %v2404
    %v2421 = vpack.c.bf16 %v2405, %v2405
    %v2422 = vpack.c.bf16 %v2406, %v2406
    %v2423 = vpack.c.bf16 %v2407, %v2407
    %v2424 = vpack.c.bf16 %v2408, %v2408
    %v2425 = vpack.c.bf16 %v2409, %v2409
    %v2426 = vpack.c.bf16 %v2410, %v2410
    %v2427 = vpack.c.bf16 %v2411, %v2411
    %v2428 = vpack.c.bf16 %v2412, %v2412
    %v2429 = vpack.c.bf16 %v2413, %v2413
    %v2430 = vpack.c.bf16 %v2414, %v2414
    %v2431 = vpack.c.bf16 %v2415, %v2415
    %v2432 = vpack.c.bf16 %v2416, %v2416
    %v2433 = vpack.c.bf16 %v2417, %v2417
    %v2450 = vunpack.c.l.b16 %v2418
    %v2451 = vunpack.c.l.b16 %v2419
    %v2452 = vunpack.c.l.b16 %v2420
    %v2453 = vunpack.c.l.b16 %v2421
    %v2454 = vunpack.c.l.b16 %v2422
    %v2455 = vunpack.c.l.b16 %v2423
    %v2456 = vunpack.c.l.b16 %v2424
    %v2457 = vunpack.c.l.b16 %v2425
    %v2458 = vunpack.c.l.b16 %v2426
    %v2459 = vunpack.c.l.b16 %v2427
    %v2460 = vunpack.c.l.b16 %v2428
    %v2461 = vunpack.c.l.b16 %v2429
    %v2462 = vunpack.c.l.b16 %v2430
    %v2463 = vunpack.c.l.b16 %v2431
    %v2464 = vunpack.c.l.b16 %v2432
    %v2465 = vunpack.c.l.b16 %v2433
    %v2466 = vpack.c.b16 %v2451, %v2450
    %v2467 = vpack.c.b16 %v2453, %v2452
    %v2468 = vpack.c.b16 %v2455, %v2454
    %v2469 = vpack.c.b16 %v2457, %v2456
    %v2470 = vpack.c.b16 %v2459, %v2458
    %v2471 = vpack.c.b16 %v2461, %v2460
    %v2472 = vpack.c.b16 %v2463, %v2462
    %v2473 = vpack.c.b16 %v2465, %v2464
    %2482 = vmatpush.bf16.msra.mxu0 %v915
    %2483 = vmatpush.bf16.msra.mxu0 %v914
    %2484 = vmatpush.bf16.msra.mxu0 %v913
    %2485 = vmatpush.bf16.msra.mxu0 %v912
    %2486 = vmatpush.bf16.msra.mxu0 %v911
    %2487 = vmatpush.bf16.msra.mxu0 %v910
    %2488 = vmatpush.bf16.msra.mxu0 %v909
    %2489 = vmatpush.bf16.msra.mxu0 %v908
    %2490 = vmatmul.bf16.gmra.mxu0 %v2466
    %v2491 = vpop.f32.mrf.mxu0
    %v2492 = vadd.f32 0.0, %v2491
    %v2493 = vpop.f32.mrf.mxu0
    %v2494 = vadd.f32 0.0, %v2493
    %2495 = vmatmul.bf16.gmra.mxu0 %v2467
    %v2496 = vpop.f32.mrf.mxu0
    %v2497 = vadd.f32 0.0, %v2496
    %v2498 = vpop.f32.mrf.mxu0
    %v2499 = vadd.f32 0.0, %v2498
    %2500 = vmatmul.bf16.gmra.mxu0 %v2468
    %v2501 = vpop.f32.mrf.mxu0
    %v2502 = vadd.f32 0.0, %v2501
    %v2503 = vpop.f32.mrf.mxu0
    %v2504 = vadd.f32 0.0, %v2503
    %2505 = vmatmul.bf16.gmra.mxu0 %v2469
    %v2506 = vpop.f32.mrf.mxu0
    %v2507 = vadd.f32 0.0, %v2506
    %v2508 = vpop.f32.mrf.mxu0
    %v2509 = vadd.f32 0.0, %v2508
    %2510 = vmatmul.bf16.gmra.mxu0 %v2470
    %v2511 = vpop.f32.mrf.mxu0
    %v2512 = vadd.f32 0.0, %v2511
    %v2513 = vpop.f32.mrf.mxu0
    %v2514 = vadd.f32 0.0, %v2513
    %2515 = vmatmul.bf16.gmra.mxu0 %v2471
    %v2516 = vpop.f32.mrf.mxu0
    %v2517 = vadd.f32 0.0, %v2516
    %v2518 = vpop.f32.mrf.mxu0
    %v2519 = vadd.f32 0.0, %v2518
    %2520 = vmatmul.bf16.gmra.mxu0 %v2472
    %v2521 = vpop.f32.mrf.mxu0
    %v2522 = vadd.f32 0.0, %v2521
    %v2523 = vpop.f32.mrf.mxu0
    %v2524 = vadd.f32 0.0, %v2523
    %2525 = vmatmul.bf16.gmra.mxu0 %v2473
    %v2526 = vpop.f32.mrf.mxu0
    %v2527 = vadd.f32 0.0, %v2526
    %v2528 = vpop.f32.mrf.mxu0
    %v2529 = vadd.f32 0.0, %v2528
    %2530 = vdwg.mxu0
    %v2531 = vpack.c.bf16 %v2494, %v2492
    %v2532 = vpack.c.bf16 %v2499, %v2497
    %v2533 = vpack.c.bf16 %v2504, %v2502
    %v2534 = vpack.c.bf16 %v2509, %v2507
    %v2535 = vpack.c.bf16 %v2514, %v2512
    %v2536 = vpack.c.bf16 %v2519, %v2517
    %v2537 = vpack.c.bf16 %v2524, %v2522
    %v2538 = vpack.c.bf16 %v2529, %v2527
    %2539 = vmatpush.bf16.msra.mxu0 %v2538
    %2540 = vmatpush.bf16.msra.mxu0 %v2537
    %2541 = vmatpush.bf16.msra.mxu0 %v2536
    %2542 = vmatpush.bf16.msra.mxu0 %v2535
    %2543 = vmatpush.bf16.msra.mxu0 %v2534
    %2544 = vmatpush.bf16.msra.mxu0 %v2533
    %2545 = vmatpush.bf16.msra.mxu0 %v2532
    %2546 = vmatpush.bf16.msra.mxu0 %v2531
    %2547 = vmatmul.bf16.gmra.mxu0 %v1017
    %v2548 = vpop.f32.mrf.mxu0
    %v2549 = vadd.f32 %v983, %v2548
    %v2550 = vpop.f32.mrf.mxu0
    %v2551 = vadd.f32 %v983, %v2550
    %2552 = vmatmul.bf16.gmra.mxu0 %v1018
    %v2553 = vpop.f32.mrf.mxu0
    %v2554 = vadd.f32 %v983, %v2553
    %v2555 = vpop.f32.mrf.mxu0
    %v2556 = vadd.f32 %v983, %v2555
    %2557 = vmatmul.bf16.gmra.mxu0 %v1019
    %v2558 = vpop.f32.mrf.mxu0
    %v2559 = vadd.f32 %v983, %v2558
    %v2560 = vpop.f32.mrf.mxu0
    %v2561 = vadd.f32 %v983, %v2560
    %2562 = vmatmul.bf16.gmra.mxu0 %v1020
    %v2563 = vpop.f32.mrf.mxu0
    %v2564 = vadd.f32 %v983, %v2563
    %v2565 = vpop.f32.mrf.mxu0
    %v2566 = vadd.f32 %v983, %v2565
    %2567 = vmatmul.bf16.gmra.mxu0 %v1021
    %v2568 = vpop.f32.mrf.mxu0
    %v2569 = vadd.f32 %v983, %v2568
    %v2570 = vpop.f32.mrf.mxu0
    %v2571 = vadd.f32 %v983, %v2570
    %2572 = vmatmul.bf16.gmra.mxu0 %v1022
    %v2573 = vpop.f32.mrf.mxu0
    %v2574 = vadd.f32 %v983, %v2573
    %v2575 = vpop.f32.mrf.mxu0
    %v2576 = vadd.f32 %v983, %v2575
    %2577 = vmatmul.bf16.gmra.mxu0 %v1023
    %v2578 = vpop.f32.mrf.mxu0
    %v2579 = vadd.f32 %v983, %v2578
    %v2580 = vpop.f32.mrf.mxu0
    %v2581 = vadd.f32 %v983, %v2580
    %2582 = vmatmul.bf16.gmra.mxu0 %v1024
    %v2583 = vpop.f32.mrf.mxu0
    %v2584 = vadd.f32 %v983, %v2583
    %v2585 = vpop.f32.mrf.mxu0
    %v2586 = vadd.f32 %v983, %v2585
    %2587 = vdwg.mxu0
    %v2588 = vmax.f32 %v2549, 0.0
    %v2589 = vmax.f32 %v2551, 0.0
    %v2590 = vmax.f32 %v2554, 0.0
    %v2591 = vmax.f32 %v2556, 0.0
    %v2592 = vmax.f32 %v2559, 0.0
    %v2593 = vmax.f32 %v2561, 0.0
    %v2594 = vmax.f32 %v2564, 0.0
    %v2595 = vmax.f32 %v2566, 0.0
    %v2596 = vmax.f32 %v2569, 0.0
    %v2597 = vmax.f32 %v2571, 0.0
    %v2598 = vmax.f32 %v2574, 0.0
    %v2599 = vmax.f32 %v2576, 0.0
    %v2600 = vmax.f32 %v2579, 0.0
    %v2601 = vmax.f32 %v2581, 0.0
    %v2602 = vmax.f32 %v2584, 0.0
    %v2603 = vmax.f32 %v2586, 0.0
    %v2604 = vmul.f32 %v2588, %v505
    %v2605 = vmul.f32 %v2589, %v506
    %v2606 = vmul.f32 %v2590, %v507
    %v2607 = vmul.f32 %v2591, %v508
    %v2608 = vmul.f32 %v2592, %v509
    %v2609 = vmul.f32 %v2593, %v510
    %v2610 = vmul.f32 %v2594, %v511
    %v2611 = vmul.f32 %v2595, %v512
    %v2612 = vmul.f32 %v2596, %v513
    %v2613 = vmul.f32 %v2597, %v514
    %v2614 = vmul.f32 %v2598, %v515
    %v2615 = vmul.f32 %v2599, %v516
    %v2616 = vmul.f32 %v2600, %v517
    %v2617 = vmul.f32 %v2601, %v518
    %v2618 = vmul.f32 %v2602, %v519
    %v2619 = vmul.f32 %v2603, %v520
    %v2620 = vmul.f32 %v2402, %v2402
    %v2621 = vmul.f32 %v2403, %v2403
    %v2622 = vmul.f32 %v2404, %v2404
    %v2623 = vmul.f32 %v2405, %v2405
    %v2624 = vmul.f32 %v2406, %v2406
    %v2625 = vmul.f32 %v2407, %v2407
    %v2626 = vmul.f32 %v2408, %v2408
    %v2627 = vmul.f32 %v2409, %v2409
    %v2628 = vmul.f32 %v2410, %v2410
    %v2629 = vmul.f32 %v2411, %v2411
    %v2630 = vmul.f32 %v2412, %v2412
    %v2631 = vmul.f32 %v2413, %v2413
    %v2632 = vmul.f32 %v2414, %v2414
    %v2633 = vmul.f32 %v2415, %v2415
    %v2634 = vmul.f32 %v2416, %v2416
    %v2635 = vmul.f32 %v2417, %v2417
    %2636 = vadd.xlane.f32.xlu0 %v2620
    %v2637 = vpop.xlane.xlu0 %2636
    %2638 = vadd.xlane.f32.xlu0 %v2621
    %v2639 = vpop.xlane.xlu0 %2638
    %2640 = vadd.xlane.f32.xlu0 %v2622
    %v2641 = vpop.xlane.xlu0 %2640
    %2642 = vadd.xlane.f32.xlu0 %v2623
    %v2643 = vpop.xlane.xlu0 %2642
    %2644 = vadd.xlane.f32.xlu0 %v2624
    %v2645 = vpop.xlane.xlu0 %2644
    %2646 = vadd.xlane.f32.xlu0 %v2625
    %v2647 = vpop.xlane.xlu0 %2646
    %2648 = vadd.xlane.f32.xlu0 %v2626
    %v2649 = vpop.xlane.xlu0 %2648
    %2650 = vadd.xlane.f32.xlu0 %v2627
    %v2651 = vpop.xlane.xlu0 %2650
    %2652 = vadd.xlane.f32.xlu0 %v2628
    %v2653 = vpop.xlane.xlu0 %2652
    %2654 = vadd.xlane.f32.xlu0 %v2629
    %v2655 = vpop.xlane.xlu0 %2654
    %2656 = vadd.xlane.f32.xlu0 %v2630
    %v2657 = vpop.xlane.xlu0 %2656
    %2658 = vadd.xlane.f32.xlu0 %v2631
    %v2659 = vpop.xlane.xlu0 %2658
    %2660 = vadd.xlane.f32.xlu0 %v2632
    %v2661 = vpop.xlane.xlu0 %2660
    %2662 = vadd.xlane.f32.xlu0 %v2633
    %v2663 = vpop.xlane.xlu0 %2662
    %2664 = vadd.xlane.f32.xlu0 %v2634
    %v2665 = vpop.xlane.xlu0 %2664
    %2666 = vadd.xlane.f32.xlu0 %v2635
    %v2667 = vpop.xlane.xlu0 %2666
    %v2668 = vpack.c.bf16 %v2637, %v2637
    %v2669 = vpack.c.bf16 %v2639, %v2639
    %v2670 = vpack.c.bf16 %v2641, %v2641
    %v2671 = vpack.c.bf16 %v2643, %v2643
    %v2672 = vpack.c.bf16 %v2645, %v2645
    %v2673 = vpack.c.bf16 %v2647, %v2647
    %v2674 = vpack.c.bf16 %v2649, %v2649
    %v2675 = vpack.c.bf16 %v2651, %v2651
    %v2676 = vpack.c.bf16 %v2653, %v2653
    %v2677 = vpack.c.bf16 %v2655, %v2655
    %v2678 = vpack.c.bf16 %v2657, %v2657
    %v2679 = vpack.c.bf16 %v2659, %v2659
    %v2680 = vpack.c.bf16 %v2661, %v2661
    %v2681 = vpack.c.bf16 %v2663, %v2663
    %v2682 = vpack.c.bf16 %v2665, %v2665
    %v2683 = vpack.c.bf16 %v2667, %v2667
    %v2684 = vsel %vm1178, %v2668, %v2418
    %v2685 = vsel %vm1178, %v2669, %v2419
    %v2686 = vsel %vm1178, %v2670, %v2420
    %v2687 = vsel %vm1178, %v2671, %v2421
    %v2688 = vsel %vm1178, %v2672, %v2422
    %v2689 = vsel %vm1178, %v2673, %v2423
    %v2690 = vsel %vm1178, %v2674, %v2424
    %v2691 = vsel %vm1178, %v2675, %v2425
    %v2692 = vsel %vm1178, %v2676, %v2426
    %v2693 = vsel %vm1178, %v2677, %v2427
    %v2694 = vsel %vm1178, %v2678, %v2428
    %v2695 = vsel %vm1178, %v2679, %v2429
    %v2696 = vsel %vm1178, %v2680, %v2430
    %v2697 = vsel %vm1178, %v2681, %v2431
    %v2698 = vsel %vm1178, %v2682, %v2432
    %v2699 = vsel %vm1178, %v2683, %v2433
    %v2716 = vunpack.c.l.b16 %v2684
    %v2717 = vunpack.c.l.b16 %v2685
    %v2718 = vunpack.c.l.b16 %v2686
    %v2719 = vunpack.c.l.b16 %v2687
    %v2720 = vunpack.c.l.b16 %v2688
    %v2721 = vunpack.c.l.b16 %v2689
    %v2722 = vunpack.c.l.b16 %v2690
    %v2723 = vunpack.c.l.b16 %v2691
    %v2724 = vunpack.c.l.b16 %v2692
    %v2725 = vunpack.c.l.b16 %v2693
    %v2726 = vunpack.c.l.b16 %v2694
    %v2727 = vunpack.c.l.b16 %v2695
    %v2728 = vunpack.c.l.b16 %v2696
    %v2729 = vunpack.c.l.b16 %v2697
    %v2730 = vunpack.c.l.b16 %v2698
    %v2731 = vunpack.c.l.b16 %v2699
    %v2732 = vpack.c.b16 %v2717, %v2716
    %v2733 = vpack.c.b16 %v2719, %v2718
    %v2734 = vpack.c.b16 %v2721, %v2720
    %v2735 = vpack.c.b16 %v2723, %v2722
    %v2736 = vpack.c.b16 %v2725, %v2724
    %v2737 = vpack.c.b16 %v2727, %v2726
    %v2738 = vpack.c.b16 %v2729, %v2728
    %v2739 = vpack.c.b16 %v2731, %v2730
    %2748 = vmatpush.bf16.msra.mxu0 %v2739
    %2749 = vmatpush.bf16.msra.mxu0 %v2738
    %2750 = vmatpush.bf16.msra.mxu0 %v2737
    %2751 = vmatpush.bf16.msra.mxu0 %v2736
    %2752 = vmatpush.bf16.msra.mxu0 %v2735
    %2753 = vmatpush.bf16.msra.mxu0 %v2734
    %2754 = vmatpush.bf16.msra.mxu0 %v2733
    %2755 = vmatpush.bf16.msra.mxu0 %v2732
    %2756 = vmatmul.bf16.gmra.mxu0 %v1227
    %v2757 = vpop.f32.mrf.mxu0
    %v2758 = vadd.f32 0.0, %v2757
    %v2759 = vpop.f32.mrf.mxu0
    %v2760 = vadd.f32 0.0, %v2759
    %2761 = vmatmul.bf16.gmra.mxu0 %v1228
    %v2762 = vpop.f32.mrf.mxu0
    %v2763 = vadd.f32 0.0, %v2762
    %v2764 = vpop.f32.mrf.mxu0
    %v2765 = vadd.f32 0.0, %v2764
    %2766 = vmatmul.bf16.gmra.mxu0 %v1229
    %v2767 = vpop.f32.mrf.mxu0
    %v2768 = vadd.f32 0.0, %v2767
    %v2769 = vpop.f32.mrf.mxu0
    %v2770 = vadd.f32 0.0, %v2769
    %2771 = vmatmul.bf16.gmra.mxu0 %v1230
    %v2772 = vpop.f32.mrf.mxu0
    %v2773 = vadd.f32 0.0, %v2772
    %v2774 = vpop.f32.mrf.mxu0
    %v2775 = vadd.f32 0.0, %v2774
    %2776 = vmatmul.bf16.gmra.mxu0 %v1231
    %v2777 = vpop.f32.mrf.mxu0
    %v2778 = vadd.f32 0.0, %v2777
    %v2779 = vpop.f32.mrf.mxu0
    %v2780 = vadd.f32 0.0, %v2779
    %2781 = vmatmul.bf16.gmra.mxu0 %v1232
    %v2782 = vpop.f32.mrf.mxu0
    %v2783 = vadd.f32 0.0, %v2782
    %v2784 = vpop.f32.mrf.mxu0
    %v2785 = vadd.f32 0.0, %v2784
    %2786 = vmatmul.bf16.gmra.mxu0 %v1233
    %v2787 = vpop.f32.mrf.mxu0
    %v2788 = vadd.f32 0.0, %v2787
    %v2789 = vpop.f32.mrf.mxu0
    %v2790 = vadd.f32 0.0, %v2789
    %2791 = vmatmul.bf16.gmra.mxu0 %v1234
    %v2792 = vpop.f32.mrf.mxu0
    %v2793 = vadd.f32 0.0, %v2792
    %v2794 = vpop.f32.mrf.mxu0
    %v2795 = vadd.f32 0.0, %v2794
    %2796 = vdwg.mxu0
    %v2797 = vmul.f32 %v2402, %v2758
    %v2798 = vmul.f32 %v2403, %v2760
    %v2799 = vmul.f32 %v2404, %v2763
    %v2800 = vmul.f32 %v2405, %v2765
    %v2801 = vmul.f32 %v2406, %v2768
    %v2802 = vmul.f32 %v2407, %v2770
    %v2803 = vmul.f32 %v2408, %v2773
    %v2804 = vmul.f32 %v2409, %v2775
    %v2805 = vmul.f32 %v2410, %v2778
    %v2806 = vmul.f32 %v2411, %v2780
    %v2807 = vmul.f32 %v2412, %v2783
    %v2808 = vmul.f32 %v2413, %v2785
    %v2809 = vmul.f32 %v2414, %v2788
    %v2810 = vmul.f32 %v2415, %v2790
    %v2811 = vmul.f32 %v2416, %v2793
    %v2812 = vmul.f32 %v2417, %v2795
    %2813 = vadd.xlane.f32.xlu0 %v2797
    %v2814 = vpop.xlane.xlu0 %2813
    %2815 = vadd.xlane.f32.xlu0 %v2798
    %v2816 = vpop.xlane.xlu0 %2815
    %2817 = vadd.xlane.f32.xlu0 %v2799
    %v2818 = vpop.xlane.xlu0 %2817
    %2819 = vadd.xlane.f32.xlu0 %v2800
    %v2820 = vpop.xlane.xlu0 %2819
    %2821 = vadd.xlane.f32.xlu0 %v2801
    %v2822 = vpop.xlane.xlu0 %2821
    %2823 = vadd.xlane.f32.xlu0 %v2802
    %v2824 = vpop.xlane.xlu0 %2823
    %2825 = vadd.xlane.f32.xlu0 %v2803
    %v2826 = vpop.xlane.xlu0 %2825
    %2827 = vadd.xlane.f32.xlu0 %v2804
    %v2828 = vpop.xlane.xlu0 %2827
    %2829 = vadd.xlane.f32.xlu0 %v2805
    %v2830 = vpop.xlane.xlu0 %2829
    %2831 = vadd.xlane.f32.xlu0 %v2806
    %v2832 = vpop.xlane.xlu0 %2831
    %2833 = vadd.xlane.f32.xlu0 %v2807
    %v2834 = vpop.xlane.xlu0 %2833
    %2835 = vadd.xlane.f32.xlu0 %v2808
    %v2836 = vpop.xlane.xlu0 %2835
    %2837 = vadd.xlane.f32.xlu0 %v2809
    %v2838 = vpop.xlane.xlu0 %2837
    %2839 = vadd.xlane.f32.xlu0 %v2810
    %v2840 = vpop.xlane.xlu0 %2839
    %2841 = vadd.xlane.f32.xlu0 %v2811
    %v2842 = vpop.xlane.xlu0 %2841
    %2843 = vadd.xlane.f32.xlu0 %v2812
    %v2844 = vpop.xlane.xlu0 %2843
    %v2845 = vmul.f32 %v162, %v2637
    %v2846 = vmul.f32 %v163, %v2639
    %v2847 = vmul.f32 %v164, %v2641
    %v2848 = vmul.f32 %v165, %v2643
    %v2849 = vmul.f32 %v166, %v2645
    %v2850 = vmul.f32 %v167, %v2647
    %v2851 = vmul.f32 %v168, %v2649
    %v2852 = vmul.f32 %v169, %v2651
    %v2853 = vmul.f32 %v170, %v2653
    %v2854 = vmul.f32 %v171, %v2655
    %v2855 = vmul.f32 %v172, %v2657
    %v2856 = vmul.f32 %v173, %v2659
    %v2857 = vmul.f32 %v174, %v2661
    %v2858 = vmul.f32 %v175, %v2663
    %v2859 = vmul.f32 %v176, %v2665
    %v2860 = vmul.f32 %v177, %v2667
    %2877 = vrot.lane.b32.xlu0 %v2758, 96
    %v2878 = vpop.permute.xlu0 %2877
    %2879 = vrot.lane.b32.xlu0 %v2760, 96
    %v2880 = vpop.permute.xlu0 %2879
    %2881 = vrot.lane.b32.xlu0 %v2763, 96
    %v2882 = vpop.permute.xlu0 %2881
    %2883 = vrot.lane.b32.xlu0 %v2765, 96
    %v2884 = vpop.permute.xlu0 %2883
    %2885 = vrot.lane.b32.xlu0 %v2768, 96
    %v2886 = vpop.permute.xlu0 %2885
    %2887 = vrot.lane.b32.xlu0 %v2770, 96
    %v2888 = vpop.permute.xlu0 %2887
    %2889 = vrot.lane.b32.xlu0 %v2773, 96
    %v2890 = vpop.permute.xlu0 %2889
    %2891 = vrot.lane.b32.xlu0 %v2775, 96
    %v2892 = vpop.permute.xlu0 %2891
    %2893 = vrot.lane.b32.xlu0 %v2778, 96
    %v2894 = vpop.permute.xlu0 %2893
    %2895 = vrot.lane.b32.xlu0 %v2780, 96
    %v2896 = vpop.permute.xlu0 %2895
    %2897 = vrot.lane.b32.xlu0 %v2783, 96
    %v2898 = vpop.permute.xlu0 %2897
    %2899 = vrot.lane.b32.xlu0 %v2785, 96
    %v2900 = vpop.permute.xlu0 %2899
    %2901 = vrot.lane.b32.xlu0 %v2788, 96
    %v2902 = vpop.permute.xlu0 %2901
    %2903 = vrot.lane.b32.xlu0 %v2790, 96
    %v2904 = vpop.permute.xlu0 %2903
    %2905 = vrot.lane.b32.xlu0 %v2793, 96
    %v2906 = vpop.permute.xlu0 %2905
    %2907 = vrot.lane.b32.xlu0 %v2795, 96
    %v2908 = vpop.permute.xlu0 %2907
    %v2925 = vadd.f32 %v2845, %v2878
    %v2926 = vadd.f32 %v2846, %v2880
    %v2927 = vadd.f32 %v2847, %v2882
    %v2928 = vadd.f32 %v2848, %v2884
    %v2929 = vadd.f32 %v2849, %v2886
    %v2930 = vadd.f32 %v2850, %v2888
    %v2931 = vadd.f32 %v2851, %v2890
    %v2932 = vadd.f32 %v2852, %v2892
    %v2933 = vadd.f32 %v2853, %v2894
    %v2934 = vadd.f32 %v2854, %v2896
    %v2935 = vadd.f32 %v2855, %v2898
    %v2936 = vadd.f32 %v2856, %v2900
    %v2937 = vadd.f32 %v2857, %v2902
    %v2938 = vadd.f32 %v2858, %v2904
    %v2939 = vadd.f32 %v2859, %v2906
    %v2940 = vadd.f32 %v2860, %v2908
    %v2941 = vmul.f32 %v2814, 2.0
    %v2942 = vmul.f32 %v2816, 2.0
    %v2943 = vmul.f32 %v2818, 2.0
    %v2944 = vmul.f32 %v2820, 2.0
    %v2945 = vmul.f32 %v2822, 2.0
    %v2946 = vmul.f32 %v2824, 2.0
    %v2947 = vmul.f32 %v2826, 2.0
    %v2948 = vmul.f32 %v2828, 2.0
    %v2949 = vmul.f32 %v2830, 2.0
    %v2950 = vmul.f32 %v2832, 2.0
    %v2951 = vmul.f32 %v2834, 2.0
    %v2952 = vmul.f32 %v2836, 2.0
    %v2953 = vmul.f32 %v2838, 2.0
    %v2954 = vmul.f32 %v2840, 2.0
    %v2955 = vmul.f32 %v2842, 2.0
    %v2956 = vmul.f32 %v2844, 2.0
    %v2957 = vsub.f32 %v2925, %v2941
    %v2958 = vsub.f32 %v2926, %v2942
    %v2959 = vsub.f32 %v2927, %v2943
    %v2960 = vsub.f32 %v2928, %v2944
    %v2961 = vsub.f32 %v2929, %v2945
    %v2962 = vsub.f32 %v2930, %v2946
    %v2963 = vsub.f32 %v2931, %v2947
    %v2964 = vsub.f32 %v2932, %v2948
    %v2965 = vsub.f32 %v2933, %v2949
    %v2966 = vsub.f32 %v2934, %v2950
    %v2967 = vsub.f32 %v2935, %v2951
    %v2968 = vsub.f32 %v2936, %v2952
    %v2969 = vsub.f32 %v2937, %v2953
    %v2970 = vsub.f32 %v2938, %v2954
    %v2971 = vsub.f32 %v2939, %v2955
    %v2972 = vsub.f32 %v2940, %v2956
    %v2973 = vmax.f32 %v2957, 0.0
    %v2974 = vmax.f32 %v2958, 0.0
    %v2975 = vmax.f32 %v2959, 0.0
    %v2976 = vmax.f32 %v2960, 0.0
    %v2977 = vmax.f32 %v2961, 0.0
    %v2978 = vmax.f32 %v2962, 0.0
    %v2979 = vmax.f32 %v2963, 0.0
    %v2980 = vmax.f32 %v2964, 0.0
    %v2981 = vmax.f32 %v2965, 0.0
    %v2982 = vmax.f32 %v2966, 0.0
    %v2983 = vmax.f32 %v2967, 0.0
    %v2984 = vmax.f32 %v2968, 0.0
    %v2985 = vmax.f32 %v2969, 0.0
    %v2986 = vmax.f32 %v2970, 0.0
    %v2987 = vmax.f32 %v2971, 0.0
    %v2988 = vmax.f32 %v2972, 0.0
    %v2989 = vmul.f32 %v2973, %v570
    %v2990 = vmul.f32 %v2974, %v585
    %v2991 = vmul.f32 %v2975, %v600
    %v2992 = vmul.f32 %v2976, %v615
    %v2993 = vmul.f32 %v2977, %v630
    %v2994 = vmul.f32 %v2978, %v645
    %v2995 = vmul.f32 %v2979, %v660
    %v2996 = vmul.f32 %v2980, %v675
    %v2997 = vmul.f32 %v2981, %v690
    %v2998 = vmul.f32 %v2982, %v705
    %v2999 = vmul.f32 %v2983, %v720
    %v3000 = vmul.f32 %v2984, %v735
    %v3001 = vmul.f32 %v2985, %v750
    %v3002 = vmul.f32 %v2986, %v765
    %v3003 = vmul.f32 %v2987, %v780
    %v3004 = vmul.f32 %v2988, %v795
    %v3005 = vtanh.pop %v2989
    %v3006 = vtanh.pop %v2990
    %v3007 = vtanh.pop %v2991
    %v3008 = vtanh.pop %v2992
    %v3009 = vtanh.pop %v2993
    %v3010 = vtanh.pop %v2994
    %v3011 = vtanh.pop %v2995
    %v3012 = vtanh.pop %v2996
    %v3013 = vtanh.pop %v2997
    %v3014 = vtanh.pop %v2998
    %v3015 = vtanh.pop %v2999
    %v3016 = vtanh.pop %v3000
    %v3017 = vtanh.pop %v3001
    %v3018 = vtanh.pop %v3002
    %v3019 = vtanh.pop %v3003
    %v3020 = vtanh.pop %v3004
    %v3021 = vadd.f32 %v2402, %v2403
    %v3022 = vadd.f32 %v3021, %v2404
    %v3023 = vadd.f32 %v3022, %v2405
    %v3024 = vadd.f32 %v3023, %v2406
    %v3025 = vadd.f32 %v3024, %v2407
    %v3026 = vadd.f32 %v3025, %v2408
    %v3027 = vadd.f32 %v3026, %v2409
    %v3028 = vadd.f32 %v3027, %v2410
    %v3029 = vadd.f32 %v3028, %v2411
    %v3030 = vadd.f32 %v3029, %v2412
    %v3031 = vadd.f32 %v3030, %v2413
    %v3032 = vadd.f32 %v3031, %v2414
    %v3033 = vadd.f32 %v3032, %v2415
    %v3034 = vadd.f32 %v3033, %v2416
    %v3035 = vadd.f32 %v3034, %v2417
    %v3036 = vrot.slane %v3035, 4
    %v3037 = vadd.f32 %v3035, %v3036
    %v3038 = vrot.slane %v3037, 2
    %v3039 = vadd.f32 %v3037, %v3038
    %v3040 = vrot.slane %v3039, 1
    %v3041 = vadd.f32 %v3039, %v3040
    %v3042 = vmul.f32 %v3041, 0.015625
    %v3043 = vsub.f32 %v2402, %v3042
    %v3044 = vsub.f32 %v2403, %v3042
    %v3045 = vsub.f32 %v2404, %v3042
    %v3046 = vsub.f32 %v2405, %v3042
    %v3047 = vsub.f32 %v2406, %v3042
    %v3048 = vsub.f32 %v2407, %v3042
    %v3049 = vsub.f32 %v2408, %v3042
    %v3050 = vsub.f32 %v2409, %v3042
    %v3051 = vsub.f32 %v2410, %v3042
    %v3052 = vsub.f32 %v2411, %v3042
    %v3053 = vsub.f32 %v2412, %v3042
    %v3054 = vsub.f32 %v2413, %v3042
    %v3055 = vsub.f32 %v2414, %v3042
    %v3056 = vsub.f32 %v2415, %v3042
    %v3057 = vsub.f32 %v2416, %v3042
    %v3058 = vsub.f32 %v2417, %v3042
    %v3059 = vand.u32 2147483647, %v3043
    %v3060 = vand.u32 2147483647, %v3044
    %v3061 = vand.u32 2147483647, %v3045
    %v3062 = vand.u32 2147483647, %v3046
    %v3063 = vand.u32 2147483647, %v3047
    %v3064 = vand.u32 2147483647, %v3048
    %v3065 = vand.u32 2147483647, %v3049
    %v3066 = vand.u32 2147483647, %v3050
    %v3067 = vand.u32 2147483647, %v3051
    %v3068 = vand.u32 2147483647, %v3052
    %v3069 = vand.u32 2147483647, %v3053
    %v3070 = vand.u32 2147483647, %v3054
    %v3071 = vand.u32 2147483647, %v3055
    %v3072 = vand.u32 2147483647, %v3056
    %v3073 = vand.u32 2147483647, %v3057
    %v3074 = vand.u32 2147483647, %v3058
    %v3075 = vmul.f32 %v3059, %v3059
    %v3076 = vmul.f32 %v3060, %v3060
    %v3077 = vmul.f32 %v3061, %v3061
    %v3078 = vmul.f32 %v3062, %v3062
    %v3079 = vmul.f32 %v3063, %v3063
    %v3080 = vmul.f32 %v3064, %v3064
    %v3081 = vmul.f32 %v3065, %v3065
    %v3082 = vmul.f32 %v3066, %v3066
    %v3083 = vmul.f32 %v3067, %v3067
    %v3084 = vmul.f32 %v3068, %v3068
    %v3085 = vmul.f32 %v3069, %v3069
    %v3086 = vmul.f32 %v3070, %v3070
    %v3087 = vmul.f32 %v3071, %v3071
    %v3088 = vmul.f32 %v3072, %v3072
    %v3089 = vmul.f32 %v3073, %v3073
    %v3090 = vmul.f32 %v3074, %v3074
    %v3091 = vrsqrt.pop %v3059
    %v3092 = vmul.f32 %v3091, %v3059
    %v3093 = vmul.f32 %v3092, %v3091
    %v3094 = vmul.f32 0.5, %v3093
    %v3095 = vsub.f32 1.5, %v3094
    %v3096 = vmul.f32 %v3091, %v3095
    %v3097 = vmul.f32 %v3059, %v3096
    %vm3098 = vcmp.eq.f32.partialorder %v3059, inf
    %v3099 = vsel %vm3098, %v3059, %v3097
    %vm3100 = vcmp.eq.f32.partialorder %v3059, 0.0
    %v3101 = vand.u32 %v3059, 2147483648
    %v3102 = vsel %vm3100, %v3101, %v3099
    %v3103 = vrsqrt.pop %v3060
    %v3104 = vmul.f32 %v3103, %v3060
    %v3105 = vmul.f32 %v3104, %v3103
    %v3106 = vmul.f32 0.5, %v3105
    %v3107 = vsub.f32 1.5, %v3106
    %v3108 = vmul.f32 %v3103, %v3107
    %v3109 = vmul.f32 %v3060, %v3108
    %vm3110 = vcmp.eq.f32.partialorder %v3060, inf
    %v3111 = vsel %vm3110, %v3060, %v3109
    %vm3112 = vcmp.eq.f32.partialorder %v3060, 0.0
    %v3113 = vand.u32 %v3060, 2147483648
    %v3114 = vsel %vm3112, %v3113, %v3111
    %v3115 = vrsqrt.pop %v3061
    %v3116 = vmul.f32 %v3115, %v3061
    %v3117 = vmul.f32 %v3116, %v3115
    %v3118 = vmul.f32 0.5, %v3117
    %v3119 = vsub.f32 1.5, %v3118
    %v3120 = vmul.f32 %v3115, %v3119
    %v3121 = vmul.f32 %v3061, %v3120
    %vm3122 = vcmp.eq.f32.partialorder %v3061, inf
    %v3123 = vsel %vm3122, %v3061, %v3121
    %vm3124 = vcmp.eq.f32.partialorder %v3061, 0.0
    %v3125 = vand.u32 %v3061, 2147483648
    %v3126 = vsel %vm3124, %v3125, %v3123
    %v3127 = vrsqrt.pop %v3062
    %v3128 = vmul.f32 %v3127, %v3062
    %v3129 = vmul.f32 %v3128, %v3127
    %v3130 = vmul.f32 0.5, %v3129
    %v3131 = vsub.f32 1.5, %v3130
    %v3132 = vmul.f32 %v3127, %v3131
    %v3133 = vmul.f32 %v3062, %v3132
    %vm3134 = vcmp.eq.f32.partialorder %v3062, inf
    %v3135 = vsel %vm3134, %v3062, %v3133
    %vm3136 = vcmp.eq.f32.partialorder %v3062, 0.0
    %v3137 = vand.u32 %v3062, 2147483648
    %v3138 = vsel %vm3136, %v3137, %v3135
    %v3139 = vrsqrt.pop %v3063
    %v3140 = vmul.f32 %v3139, %v3063
    %v3141 = vmul.f32 %v3140, %v3139
    %v3142 = vmul.f32 0.5, %v3141
    %v3143 = vsub.f32 1.5, %v3142
    %v3144 = vmul.f32 %v3139, %v3143
    %v3145 = vmul.f32 %v3063, %v3144
    %vm3146 = vcmp.eq.f32.partialorder %v3063, inf
    %v3147 = vsel %vm3146, %v3063, %v3145
    %vm3148 = vcmp.eq.f32.partialorder %v3063, 0.0
    %v3149 = vand.u32 %v3063, 2147483648
    %v3150 = vsel %vm3148, %v3149, %v3147
    %v3151 = vrsqrt.pop %v3064
    %v3152 = vmul.f32 %v3151, %v3064
    %v3153 = vmul.f32 %v3152, %v3151
    %v3154 = vmul.f32 0.5, %v3153
    %v3155 = vsub.f32 1.5, %v3154
    %v3156 = vmul.f32 %v3151, %v3155
    %v3157 = vmul.f32 %v3064, %v3156
    %vm3158 = vcmp.eq.f32.partialorder %v3064, inf
    %v3159 = vsel %vm3158, %v3064, %v3157
    %vm3160 = vcmp.eq.f32.partialorder %v3064, 0.0
    %v3161 = vand.u32 %v3064, 2147483648
    %v3162 = vsel %vm3160, %v3161, %v3159
    %v3163 = vrsqrt.pop %v3065
    %v3164 = vmul.f32 %v3163, %v3065
    %v3165 = vmul.f32 %v3164, %v3163
    %v3166 = vmul.f32 0.5, %v3165
    %v3167 = vsub.f32 1.5, %v3166
    %v3168 = vmul.f32 %v3163, %v3167
    %v3169 = vmul.f32 %v3065, %v3168
    %vm3170 = vcmp.eq.f32.partialorder %v3065, inf
    %v3171 = vsel %vm3170, %v3065, %v3169
    %vm3172 = vcmp.eq.f32.partialorder %v3065, 0.0
    %v3173 = vand.u32 %v3065, 2147483648
    %v3174 = vsel %vm3172, %v3173, %v3171
    %v3175 = vrsqrt.pop %v3066
    %v3176 = vmul.f32 %v3175, %v3066
    %v3177 = vmul.f32 %v3176, %v3175
    %v3178 = vmul.f32 0.5, %v3177
    %v3179 = vsub.f32 1.5, %v3178
    %v3180 = vmul.f32 %v3175, %v3179
    %v3181 = vmul.f32 %v3066, %v3180
    %vm3182 = vcmp.eq.f32.partialorder %v3066, inf
    %v3183 = vsel %vm3182, %v3066, %v3181
    %vm3184 = vcmp.eq.f32.partialorder %v3066, 0.0
    %v3185 = vand.u32 %v3066, 2147483648
    %v3186 = vsel %vm3184, %v3185, %v3183
    %v3187 = vrsqrt.pop %v3067
    %v3188 = vmul.f32 %v3187, %v3067
    %v3189 = vmul.f32 %v3188, %v3187
    %v3190 = vmul.f32 0.5, %v3189
    %v3191 = vsub.f32 1.5, %v3190
    %v3192 = vmul.f32 %v3187, %v3191
    %v3193 = vmul.f32 %v3067, %v3192
    %vm3194 = vcmp.eq.f32.partialorder %v3067, inf
    %v3195 = vsel %vm3194, %v3067, %v3193
    %vm3196 = vcmp.eq.f32.partialorder %v3067, 0.0
    %v3197 = vand.u32 %v3067, 2147483648
    %v3198 = vsel %vm3196, %v3197, %v3195
    %v3199 = vrsqrt.pop %v3068
    %v3200 = vmul.f32 %v3199, %v3068
    %v3201 = vmul.f32 %v3200, %v3199
    %v3202 = vmul.f32 0.5, %v3201
    %v3203 = vsub.f32 1.5, %v3202
    %v3204 = vmul.f32 %v3199, %v3203
    %v3205 = vmul.f32 %v3068, %v3204
    %vm3206 = vcmp.eq.f32.partialorder %v3068, inf
    %v3207 = vsel %vm3206, %v3068, %v3205
    %vm3208 = vcmp.eq.f32.partialorder %v3068, 0.0
    %v3209 = vand.u32 %v3068, 2147483648
    %v3210 = vsel %vm3208, %v3209, %v3207
    %v3211 = vrsqrt.pop %v3069
    %v3212 = vmul.f32 %v3211, %v3069
    %v3213 = vmul.f32 %v3212, %v3211
    %v3214 = vmul.f32 0.5, %v3213
    %v3215 = vsub.f32 1.5, %v3214
    %v3216 = vmul.f32 %v3211, %v3215
    %v3217 = vmul.f32 %v3069, %v3216
    %vm3218 = vcmp.eq.f32.partialorder %v3069, inf
    %v3219 = vsel %vm3218, %v3069, %v3217
    %vm3220 = vcmp.eq.f32.partialorder %v3069, 0.0
    %v3221 = vand.u32 %v3069, 2147483648
    %v3222 = vsel %vm3220, %v3221, %v3219
    %v3223 = vrsqrt.pop %v3070
    %v3224 = vmul.f32 %v3223, %v3070
    %v3225 = vmul.f32 %v3224, %v3223
    %v3226 = vmul.f32 0.5, %v3225
    %v3227 = vsub.f32 1.5, %v3226
    %v3228 = vmul.f32 %v3223, %v3227
    %v3229 = vmul.f32 %v3070, %v3228
    %vm3230 = vcmp.eq.f32.partialorder %v3070, inf
    %v3231 = vsel %vm3230, %v3070, %v3229
    %vm3232 = vcmp.eq.f32.partialorder %v3070, 0.0
    %v3233 = vand.u32 %v3070, 2147483648
    %v3234 = vsel %vm3232, %v3233, %v3231
    %v3235 = vrsqrt.pop %v3071
    %v3236 = vmul.f32 %v3235, %v3071
    %v3237 = vmul.f32 %v3236, %v3235
    %v3238 = vmul.f32 0.5, %v3237
    %v3239 = vsub.f32 1.5, %v3238
    %v3240 = vmul.f32 %v3235, %v3239
    %v3241 = vmul.f32 %v3071, %v3240
    %vm3242 = vcmp.eq.f32.partialorder %v3071, inf
    %v3243 = vsel %vm3242, %v3071, %v3241
    %vm3244 = vcmp.eq.f32.partialorder %v3071, 0.0
    %v3245 = vand.u32 %v3071, 2147483648
    %v3246 = vsel %vm3244, %v3245, %v3243
    %v3247 = vrsqrt.pop %v3072
    %v3248 = vmul.f32 %v3247, %v3072
    %v3249 = vmul.f32 %v3248, %v3247
    %v3250 = vmul.f32 0.5, %v3249
    %v3251 = vsub.f32 1.5, %v3250
    %v3252 = vmul.f32 %v3247, %v3251
    %v3253 = vmul.f32 %v3072, %v3252
    %vm3254 = vcmp.eq.f32.partialorder %v3072, inf
    %v3255 = vsel %vm3254, %v3072, %v3253
    %vm3256 = vcmp.eq.f32.partialorder %v3072, 0.0
    %v3257 = vand.u32 %v3072, 2147483648
    %v3258 = vsel %vm3256, %v3257, %v3255
    %v3259 = vrsqrt.pop %v3073
    %v3260 = vmul.f32 %v3259, %v3073
    %v3261 = vmul.f32 %v3260, %v3259
    %v3262 = vmul.f32 0.5, %v3261
    %v3263 = vsub.f32 1.5, %v3262
    %v3264 = vmul.f32 %v3259, %v3263
    %v3265 = vmul.f32 %v3073, %v3264
    %vm3266 = vcmp.eq.f32.partialorder %v3073, inf
    %v3267 = vsel %vm3266, %v3073, %v3265
    %vm3268 = vcmp.eq.f32.partialorder %v3073, 0.0
    %v3269 = vand.u32 %v3073, 2147483648
    %v3270 = vsel %vm3268, %v3269, %v3267
    %v3271 = vrsqrt.pop %v3074
    %v3272 = vmul.f32 %v3271, %v3074
    %v3273 = vmul.f32 %v3272, %v3271
    %v3274 = vmul.f32 0.5, %v3273
    %v3275 = vsub.f32 1.5, %v3274
    %v3276 = vmul.f32 %v3271, %v3275
    %v3277 = vmul.f32 %v3074, %v3276
    %vm3278 = vcmp.eq.f32.partialorder %v3074, inf
    %v3279 = vsel %vm3278, %v3074, %v3277
    %vm3280 = vcmp.eq.f32.partialorder %v3074, 0.0
    %v3281 = vand.u32 %v3074, 2147483648
    %v3282 = vsel %vm3280, %v3281, %v3279
    %v3283 = vmul.f32 %v3075, %v3102
    %v3284 = vmul.f32 %v3076, %v3114
    %v3285 = vmul.f32 %v3077, %v3126
    %v3286 = vmul.f32 %v3078, %v3138
    %v3287 = vmul.f32 %v3079, %v3150
    %v3288 = vmul.f32 %v3080, %v3162
    %v3289 = vmul.f32 %v3081, %v3174
    %v3290 = vmul.f32 %v3082, %v3186
    %v3291 = vmul.f32 %v3083, %v3198
    %v3292 = vmul.f32 %v3084, %v3210
    %v3293 = vmul.f32 %v3085, %v3222
    %v3294 = vmul.f32 %v3086, %v3234
    %v3295 = vmul.f32 %v3087, %v3246
    %v3296 = vmul.f32 %v3088, %v3258
    %v3297 = vmul.f32 %v3089, %v3270
    %v3298 = vmul.f32 %v3090, %v3282
    %3299 = vadd.xlane.f32.xlu0 %v3283
    %v3300 = vpop.xlane.xlu0 %3299
    %3301 = vadd.xlane.f32.xlu0 %v3284
    %v3302 = vpop.xlane.xlu0 %3301
    %3303 = vadd.xlane.f32.xlu0 %v3285
    %v3304 = vpop.xlane.xlu0 %3303
    %3305 = vadd.xlane.f32.xlu0 %v3286
    %v3306 = vpop.xlane.xlu0 %3305
    %3307 = vadd.xlane.f32.xlu0 %v3287
    %v3308 = vpop.xlane.xlu0 %3307
    %3309 = vadd.xlane.f32.xlu0 %v3288
    %v3310 = vpop.xlane.xlu0 %3309
    %3311 = vadd.xlane.f32.xlu0 %v3289
    %v3312 = vpop.xlane.xlu0 %3311
    %3313 = vadd.xlane.f32.xlu0 %v3290
    %v3314 = vpop.xlane.xlu0 %3313
    %3315 = vadd.xlane.f32.xlu0 %v3291
    %v3316 = vpop.xlane.xlu0 %3315
    %3317 = vadd.xlane.f32.xlu0 %v3292
    %v3318 = vpop.xlane.xlu0 %3317
    %3319 = vadd.xlane.f32.xlu0 %v3293
    %v3320 = vpop.xlane.xlu0 %3319
    %3321 = vadd.xlane.f32.xlu0 %v3294
    %v3322 = vpop.xlane.xlu0 %3321
    %3323 = vadd.xlane.f32.xlu0 %v3295
    %v3324 = vpop.xlane.xlu0 %3323
    %3325 = vadd.xlane.f32.xlu0 %v3296
    %v3326 = vpop.xlane.xlu0 %3325
    %3327 = vadd.xlane.f32.xlu0 %v3297
    %v3328 = vpop.xlane.xlu0 %3327
    %3329 = vadd.xlane.f32.xlu0 %v3298
    %v3330 = vpop.xlane.xlu0 %3329
    %v3331 = vtanh.pop %v3300
    %v3332 = vtanh.pop %v3302
    %v3333 = vtanh.pop %v3304
    %v3334 = vtanh.pop %v3306
    %v3335 = vtanh.pop %v3308
    %v3336 = vtanh.pop %v3310
    %v3337 = vtanh.pop %v3312
    %v3338 = vtanh.pop %v3314
    %v3339 = vtanh.pop %v3316
    %v3340 = vtanh.pop %v3318
    %v3341 = vtanh.pop %v3320
    %v3342 = vtanh.pop %v3322
    %v3343 = vtanh.pop %v3324
    %v3344 = vtanh.pop %v3326
    %v3345 = vtanh.pop %v3328
    %v3346 = vtanh.pop %v3330
    %v3347 = vsub.f32 1.0, %v3331
    %v3348 = vsub.f32 1.0, %v3332
    %v3349 = vsub.f32 1.0, %v3333
    %v3350 = vsub.f32 1.0, %v3334
    %v3351 = vsub.f32 1.0, %v3335
    %v3352 = vsub.f32 1.0, %v3336
    %v3353 = vsub.f32 1.0, %v3337
    %v3354 = vsub.f32 1.0, %v3338
    %v3355 = vsub.f32 1.0, %v3339
    %v3356 = vsub.f32 1.0, %v3340
    %v3357 = vsub.f32 1.0, %v3341
    %v3358 = vsub.f32 1.0, %v3342
    %v3359 = vsub.f32 1.0, %v3343
    %v3360 = vsub.f32 1.0, %v3344
    %v3361 = vsub.f32 1.0, %v3345
    %v3362 = vsub.f32 1.0, %v3346
    %v3363 = vadd.f32 %v3005, 1.0
    %v3364 = vadd.f32 %v3006, 1.0
    %v3365 = vadd.f32 %v3007, 1.0
    %v3366 = vadd.f32 %v3008, 1.0
    %v3367 = vadd.f32 %v3009, 1.0
    %v3368 = vadd.f32 %v3010, 1.0
    %v3369 = vadd.f32 %v3011, 1.0
    %v3370 = vadd.f32 %v3012, 1.0
    %v3371 = vadd.f32 %v3013, 1.0
    %v3372 = vadd.f32 %v3014, 1.0
    %v3373 = vadd.f32 %v3015, 1.0
    %v3374 = vadd.f32 %v3016, 1.0
    %v3375 = vadd.f32 %v3017, 1.0
    %v3376 = vadd.f32 %v3018, 1.0
    %v3377 = vadd.f32 %v3019, 1.0
    %v3378 = vadd.f32 %v3020, 1.0
    %v3379 = vadd.f32 %v3363, %v3347
    %v3380 = vadd.f32 %v3364, %v3348
    %v3381 = vadd.f32 %v3365, %v3349
    %v3382 = vadd.f32 %v3366, %v3350
    %v3383 = vadd.f32 %v3367, %v3351
    %v3384 = vadd.f32 %v3368, %v3352
    %v3385 = vadd.f32 %v3369, %v3353
    %v3386 = vadd.f32 %v3370, %v3354
    %v3387 = vadd.f32 %v3371, %v3355
    %v3388 = vadd.f32 %v3372, %v3356
    %v3389 = vadd.f32 %v3373, %v3357
    %v3390 = vadd.f32 %v3374, %v3358
    %v3391 = vadd.f32 %v3375, %v3359
    %v3392 = vadd.f32 %v3376, %v3360
    %v3393 = vadd.f32 %v3377, %v3361
    %v3394 = vadd.f32 %v3378, %v3362
    %v3395 = vrcp.pop %v3379
    %v3396 = vmul.f32 %v3379, %v3395
    %v3397 = vsub.f32 1.0, %v3396
    %v3398 = vmul.f32 %v3395, %v3397
    %v3399 = vadd.f32 %v3395, %v3398
    %vm3400 = vweird.f32 %v3379
    %vm3401 = vweird.f32 %v3395
    %vm3402 = vmor %vm3400, %vm3401
    %v3403 = vsel %vm3402, %v3395, %v3399
    %v3404 = vand.u32 2147483647, %v3379
    %vm3405 = vcmp.eq.f32.partialorder %v3404, 8.507059e+37
    %v3406 = vand.u32 %v3379, 2147483648
    %v3407 = vor.u32 1.1754944e-38, %v3406
    %v3408 = vsel %vm3405, %v3407, %v3403
    %v3409 = vmul.f32 1.0, %v3408
    %v3410 = vrcp.pop %v3380
    %v3411 = vmul.f32 %v3380, %v3410
    %v3412 = vsub.f32 1.0, %v3411
    %v3413 = vmul.f32 %v3410, %v3412
    %v3414 = vadd.f32 %v3410, %v3413
    %vm3415 = vweird.f32 %v3380
    %vm3416 = vweird.f32 %v3410
    %vm3417 = vmor %vm3415, %vm3416
    %v3418 = vsel %vm3417, %v3410, %v3414
    %v3419 = vand.u32 2147483647, %v3380
    %vm3420 = vcmp.eq.f32.partialorder %v3419, 8.507059e+37
    %v3421 = vand.u32 %v3380, 2147483648
    %v3422 = vor.u32 1.1754944e-38, %v3421
    %v3423 = vsel %vm3420, %v3422, %v3418
    %v3424 = vmul.f32 1.0, %v3423
    %v3425 = vrcp.pop %v3381
    %v3426 = vmul.f32 %v3381, %v3425
    %v3427 = vsub.f32 1.0, %v3426
    %v3428 = vmul.f32 %v3425, %v3427
    %v3429 = vadd.f32 %v3425, %v3428
    %vm3430 = vweird.f32 %v3381
    %vm3431 = vweird.f32 %v3425
    %vm3432 = vmor %vm3430, %vm3431
    %v3433 = vsel %vm3432, %v3425, %v3429
    %v3434 = vand.u32 2147483647, %v3381
    %vm3435 = vcmp.eq.f32.partialorder %v3434, 8.507059e+37
    %v3436 = vand.u32 %v3381, 2147483648
    %v3437 = vor.u32 1.1754944e-38, %v3436
    %v3438 = vsel %vm3435, %v3437, %v3433
    %v3439 = vmul.f32 1.0, %v3438
    %v3440 = vrcp.pop %v3382
    %v3441 = vmul.f32 %v3382, %v3440
    %v3442 = vsub.f32 1.0, %v3441
    %v3443 = vmul.f32 %v3440, %v3442
    %v3444 = vadd.f32 %v3440, %v3443
    %vm3445 = vweird.f32 %v3382
    %vm3446 = vweird.f32 %v3440
    %vm3447 = vmor %vm3445, %vm3446
    %v3448 = vsel %vm3447, %v3440, %v3444
    %v3449 = vand.u32 2147483647, %v3382
    %vm3450 = vcmp.eq.f32.partialorder %v3449, 8.507059e+37
    %v3451 = vand.u32 %v3382, 2147483648
    %v3452 = vor.u32 1.1754944e-38, %v3451
    %v3453 = vsel %vm3450, %v3452, %v3448
    %v3454 = vmul.f32 1.0, %v3453
    %v3455 = vrcp.pop %v3383
    %v3456 = vmul.f32 %v3383, %v3455
    %v3457 = vsub.f32 1.0, %v3456
    %v3458 = vmul.f32 %v3455, %v3457
    %v3459 = vadd.f32 %v3455, %v3458
    %vm3460 = vweird.f32 %v3383
    %vm3461 = vweird.f32 %v3455
    %vm3462 = vmor %vm3460, %vm3461
    %v3463 = vsel %vm3462, %v3455, %v3459
    %v3464 = vand.u32 2147483647, %v3383
    %vm3465 = vcmp.eq.f32.partialorder %v3464, 8.507059e+37
    %v3466 = vand.u32 %v3383, 2147483648
    %v3467 = vor.u32 1.1754944e-38, %v3466
    %v3468 = vsel %vm3465, %v3467, %v3463
    %v3469 = vmul.f32 1.0, %v3468
    %v3470 = vrcp.pop %v3384
    %v3471 = vmul.f32 %v3384, %v3470
    %v3472 = vsub.f32 1.0, %v3471
    %v3473 = vmul.f32 %v3470, %v3472
    %v3474 = vadd.f32 %v3470, %v3473
    %vm3475 = vweird.f32 %v3384
    %vm3476 = vweird.f32 %v3470
    %vm3477 = vmor %vm3475, %vm3476
    %v3478 = vsel %vm3477, %v3470, %v3474
    %v3479 = vand.u32 2147483647, %v3384
    %vm3480 = vcmp.eq.f32.partialorder %v3479, 8.507059e+37
    %v3481 = vand.u32 %v3384, 2147483648
    %v3482 = vor.u32 1.1754944e-38, %v3481
    %v3483 = vsel %vm3480, %v3482, %v3478
    %v3484 = vmul.f32 1.0, %v3483
    %v3485 = vrcp.pop %v3385
    %v3486 = vmul.f32 %v3385, %v3485
    %v3487 = vsub.f32 1.0, %v3486
    %v3488 = vmul.f32 %v3485, %v3487
    %v3489 = vadd.f32 %v3485, %v3488
    %vm3490 = vweird.f32 %v3385
    %vm3491 = vweird.f32 %v3485
    %vm3492 = vmor %vm3490, %vm3491
    %v3493 = vsel %vm3492, %v3485, %v3489
    %v3494 = vand.u32 2147483647, %v3385
    %vm3495 = vcmp.eq.f32.partialorder %v3494, 8.507059e+37
    %v3496 = vand.u32 %v3385, 2147483648
    %v3497 = vor.u32 1.1754944e-38, %v3496
    %v3498 = vsel %vm3495, %v3497, %v3493
    %v3499 = vmul.f32 1.0, %v3498
    %v3500 = vrcp.pop %v3386
    %v3501 = vmul.f32 %v3386, %v3500
    %v3502 = vsub.f32 1.0, %v3501
    %v3503 = vmul.f32 %v3500, %v3502
    %v3504 = vadd.f32 %v3500, %v3503
    %vm3505 = vweird.f32 %v3386
    %vm3506 = vweird.f32 %v3500
    %vm3507 = vmor %vm3505, %vm3506
    %v3508 = vsel %vm3507, %v3500, %v3504
    %v3509 = vand.u32 2147483647, %v3386
    %vm3510 = vcmp.eq.f32.partialorder %v3509, 8.507059e+37
    %v3511 = vand.u32 %v3386, 2147483648
    %v3512 = vor.u32 1.1754944e-38, %v3511
    %v3513 = vsel %vm3510, %v3512, %v3508
    %v3514 = vmul.f32 1.0, %v3513
    %v3515 = vrcp.pop %v3387
    %v3516 = vmul.f32 %v3387, %v3515
    %v3517 = vsub.f32 1.0, %v3516
    %v3518 = vmul.f32 %v3515, %v3517
    %v3519 = vadd.f32 %v3515, %v3518
    %vm3520 = vweird.f32 %v3387
    %vm3521 = vweird.f32 %v3515
    %vm3522 = vmor %vm3520, %vm3521
    %v3523 = vsel %vm3522, %v3515, %v3519
    %v3524 = vand.u32 2147483647, %v3387
    %vm3525 = vcmp.eq.f32.partialorder %v3524, 8.507059e+37
    %v3526 = vand.u32 %v3387, 2147483648
    %v3527 = vor.u32 1.1754944e-38, %v3526
    %v3528 = vsel %vm3525, %v3527, %v3523
    %v3529 = vmul.f32 1.0, %v3528
    %v3530 = vrcp.pop %v3388
    %v3531 = vmul.f32 %v3388, %v3530
    %v3532 = vsub.f32 1.0, %v3531
    %v3533 = vmul.f32 %v3530, %v3532
    %v3534 = vadd.f32 %v3530, %v3533
    %vm3535 = vweird.f32 %v3388
    %vm3536 = vweird.f32 %v3530
    %vm3537 = vmor %vm3535, %vm3536
    %v3538 = vsel %vm3537, %v3530, %v3534
    %v3539 = vand.u32 2147483647, %v3388
    %vm3540 = vcmp.eq.f32.partialorder %v3539, 8.507059e+37
    %v3541 = vand.u32 %v3388, 2147483648
    %v3542 = vor.u32 1.1754944e-38, %v3541
    %v3543 = vsel %vm3540, %v3542, %v3538
    %v3544 = vmul.f32 1.0, %v3543
    %v3545 = vrcp.pop %v3389
    %v3546 = vmul.f32 %v3389, %v3545
    %v3547 = vsub.f32 1.0, %v3546
    %v3548 = vmul.f32 %v3545, %v3547
    %v3549 = vadd.f32 %v3545, %v3548
    %vm3550 = vweird.f32 %v3389
    %vm3551 = vweird.f32 %v3545
    %vm3552 = vmor %vm3550, %vm3551
    %v3553 = vsel %vm3552, %v3545, %v3549
    %v3554 = vand.u32 2147483647, %v3389
    %vm3555 = vcmp.eq.f32.partialorder %v3554, 8.507059e+37
    %v3556 = vand.u32 %v3389, 2147483648
    %v3557 = vor.u32 1.1754944e-38, %v3556
    %v3558 = vsel %vm3555, %v3557, %v3553
    %v3559 = vmul.f32 1.0, %v3558
    %v3560 = vrcp.pop %v3390
    %v3561 = vmul.f32 %v3390, %v3560
    %v3562 = vsub.f32 1.0, %v3561
    %v3563 = vmul.f32 %v3560, %v3562
    %v3564 = vadd.f32 %v3560, %v3563
    %vm3565 = vweird.f32 %v3390
    %vm3566 = vweird.f32 %v3560
    %vm3567 = vmor %vm3565, %vm3566
    %v3568 = vsel %vm3567, %v3560, %v3564
    %v3569 = vand.u32 2147483647, %v3390
    %vm3570 = vcmp.eq.f32.partialorder %v3569, 8.507059e+37
    %v3571 = vand.u32 %v3390, 2147483648
    %v3572 = vor.u32 1.1754944e-38, %v3571
    %v3573 = vsel %vm3570, %v3572, %v3568
    %v3574 = vmul.f32 1.0, %v3573
    %v3575 = vrcp.pop %v3391
    %v3576 = vmul.f32 %v3391, %v3575
    %v3577 = vsub.f32 1.0, %v3576
    %v3578 = vmul.f32 %v3575, %v3577
    %v3579 = vadd.f32 %v3575, %v3578
    %vm3580 = vweird.f32 %v3391
    %vm3581 = vweird.f32 %v3575
    %vm3582 = vmor %vm3580, %vm3581
    %v3583 = vsel %vm3582, %v3575, %v3579
    %v3584 = vand.u32 2147483647, %v3391
    %vm3585 = vcmp.eq.f32.partialorder %v3584, 8.507059e+37
    %v3586 = vand.u32 %v3391, 2147483648
    %v3587 = vor.u32 1.1754944e-38, %v3586
    %v3588 = vsel %vm3585, %v3587, %v3583
    %v3589 = vmul.f32 1.0, %v3588
    %v3590 = vrcp.pop %v3392
    %v3591 = vmul.f32 %v3392, %v3590
    %v3592 = vsub.f32 1.0, %v3591
    %v3593 = vmul.f32 %v3590, %v3592
    %v3594 = vadd.f32 %v3590, %v3593
    %vm3595 = vweird.f32 %v3392
    %vm3596 = vweird.f32 %v3590
    %vm3597 = vmor %vm3595, %vm3596
    %v3598 = vsel %vm3597, %v3590, %v3594
    %v3599 = vand.u32 2147483647, %v3392
    %vm3600 = vcmp.eq.f32.partialorder %v3599, 8.507059e+37
    %v3601 = vand.u32 %v3392, 2147483648
    %v3602 = vor.u32 1.1754944e-38, %v3601
    %v3603 = vsel %vm3600, %v3602, %v3598
    %v3604 = vmul.f32 1.0, %v3603
    %v3605 = vrcp.pop %v3393
    %v3606 = vmul.f32 %v3393, %v3605
    %v3607 = vsub.f32 1.0, %v3606
    %v3608 = vmul.f32 %v3605, %v3607
    %v3609 = vadd.f32 %v3605, %v3608
    %vm3610 = vweird.f32 %v3393
    %vm3611 = vweird.f32 %v3605
    %vm3612 = vmor %vm3610, %vm3611
    %v3613 = vsel %vm3612, %v3605, %v3609
    %v3614 = vand.u32 2147483647, %v3393
    %vm3615 = vcmp.eq.f32.partialorder %v3614, 8.507059e+37
    %v3616 = vand.u32 %v3393, 2147483648
    %v3617 = vor.u32 1.1754944e-38, %v3616
    %v3618 = vsel %vm3615, %v3617, %v3613
    %v3619 = vmul.f32 1.0, %v3618
    %v3620 = vrcp.pop %v3394
    %v3621 = vmul.f32 %v3394, %v3620
    %v3622 = vsub.f32 1.0, %v3621
    %v3623 = vmul.f32 %v3620, %v3622
    %v3624 = vadd.f32 %v3620, %v3623
    %vm3625 = vweird.f32 %v3394
    %vm3626 = vweird.f32 %v3620
    %vm3627 = vmor %vm3625, %vm3626
    %v3628 = vsel %vm3627, %v3620, %v3624
    %v3629 = vand.u32 2147483647, %v3394
    %vm3630 = vcmp.eq.f32.partialorder %v3629, 8.507059e+37
    %v3631 = vand.u32 %v3394, 2147483648
    %v3632 = vor.u32 1.1754944e-38, %v3631
    %v3633 = vsel %vm3630, %v3632, %v3628
    %v3634 = vmul.f32 1.0, %v3633
    %3636 = vset.pattern.permute.xlu0 0
    %3637 = vperm.xlu0 %3636, %v3005
    %v3638 = vpop.permute.xlu0 %3637
    %3641 = vset.pattern.permute.xlu0 0
    %3642 = vperm.xlu0 %3641, %v3006
    %v3643 = vpop.permute.xlu0 %3642
    %3646 = vset.pattern.permute.xlu0 0
    %3647 = vperm.xlu0 %3646, %v3007
    %v3648 = vpop.permute.xlu0 %3647
    %3651 = vset.pattern.permute.xlu0 0
    %3652 = vperm.xlu0 %3651, %v3008
    %v3653 = vpop.permute.xlu0 %3652
    %3656 = vset.pattern.permute.xlu0 0
    %3657 = vperm.xlu0 %3656, %v3009
    %v3658 = vpop.permute.xlu0 %3657
    %3661 = vset.pattern.permute.xlu0 0
    %3662 = vperm.xlu0 %3661, %v3010
    %v3663 = vpop.permute.xlu0 %3662
    %3666 = vset.pattern.permute.xlu0 0
    %3667 = vperm.xlu0 %3666, %v3011
    %v3668 = vpop.permute.xlu0 %3667
    %3671 = vset.pattern.permute.xlu0 0
    %3672 = vperm.xlu0 %3671, %v3012
    %v3673 = vpop.permute.xlu0 %3672
    %3676 = vset.pattern.permute.xlu0 0
    %3677 = vperm.xlu0 %3676, %v3013
    %v3678 = vpop.permute.xlu0 %3677
    %3681 = vset.pattern.permute.xlu0 0
    %3682 = vperm.xlu0 %3681, %v3014
    %v3683 = vpop.permute.xlu0 %3682
    %3686 = vset.pattern.permute.xlu0 0
    %3687 = vperm.xlu0 %3686, %v3015
    %v3688 = vpop.permute.xlu0 %3687
    %3691 = vset.pattern.permute.xlu0 0
    %3692 = vperm.xlu0 %3691, %v3016
    %v3693 = vpop.permute.xlu0 %3692
    %3696 = vset.pattern.permute.xlu0 0
    %3697 = vperm.xlu0 %3696, %v3017
    %v3698 = vpop.permute.xlu0 %3697
    %3701 = vset.pattern.permute.xlu0 0
    %3702 = vperm.xlu0 %3701, %v3018
    %v3703 = vpop.permute.xlu0 %3702
    %3706 = vset.pattern.permute.xlu0 0
    %3707 = vperm.xlu0 %3706, %v3019
    %v3708 = vpop.permute.xlu0 %3707
    %3711 = vset.pattern.permute.xlu0 0
    %3712 = vperm.xlu0 %3711, %v3020
    %v3713 = vpop.permute.xlu0 %3712
    %v3715 = vmul.f32 %v3638, %v2604
    %v3716 = vmul.f32 %v3643, %v2605
    %v3717 = vmul.f32 %v3648, %v2606
    %v3718 = vmul.f32 %v3653, %v2607
    %v3719 = vmul.f32 %v3658, %v2608
    %v3720 = vmul.f32 %v3663, %v2609
    %v3721 = vmul.f32 %v3668, %v2610
    %v3722 = vmul.f32 %v3673, %v2611
    %v3723 = vmul.f32 %v3678, %v2612
    %v3724 = vmul.f32 %v3683, %v2613
    %v3725 = vmul.f32 %v3688, %v2614
    %v3726 = vmul.f32 %v3693, %v2615
    %v3727 = vmul.f32 %v3698, %v2616
    %v3728 = vmul.f32 %v3703, %v2617
    %v3729 = vmul.f32 %v3708, %v2618
    %v3730 = vmul.f32 %v3713, %v2619
    %v3731 = vadd.f32 %v2402, %v3715
    %v3732 = vadd.f32 %v2403, %v3716
    %v3733 = vadd.f32 %v2404, %v3717
    %v3734 = vadd.f32 %v2405, %v3718
    %v3735 = vadd.f32 %v2406, %v3719
    %v3736 = vadd.f32 %v2407, %v3720
    %v3737 = vadd.f32 %v2408, %v3721
    %v3738 = vadd.f32 %v2409, %v3722
    %v3739 = vadd.f32 %v2410, %v3723
    %v3740 = vadd.f32 %v2411, %v3724
    %v3741 = vadd.f32 %v2412, %v3725
    %v3742 = vadd.f32 %v2413, %v3726
    %v3743 = vadd.f32 %v2414, %v3727
    %v3744 = vadd.f32 %v2415, %v3728
    %v3745 = vadd.f32 %v2416, %v3729
    %v3746 = vadd.f32 %v2417, %v3730
    %v3747 = vmul.f32 %v3347, %v381
    %v3748 = vmul.f32 %v3348, %v383
    %v3749 = vmul.f32 %v3349, %v386
    %v3750 = vmul.f32 %v3350, %v388
    %v3751 = vmul.f32 %v3351, %v391
    %v3752 = vmul.f32 %v3352, %v393
    %v3753 = vmul.f32 %v3353, %v396
    %v3754 = vmul.f32 %v3354, %v398
    %v3755 = vmul.f32 %v3355, %v401
    %v3756 = vmul.f32 %v3356, %v403
    %v3757 = vmul.f32 %v3357, %v406
    %v3758 = vmul.f32 %v3358, %v408
    %v3759 = vmul.f32 %v3359, %v411
    %v3760 = vmul.f32 %v3360, %v413
    %v3761 = vmul.f32 %v3361, %v416
    %v3762 = vmul.f32 %v3362, %v418
    %v3763 = vadd.f32 %v3731, %v3747
    %v3764 = vadd.f32 %v3732, %v3748
    %v3765 = vadd.f32 %v3733, %v3749
    %v3766 = vadd.f32 %v3734, %v3750
    %v3767 = vadd.f32 %v3735, %v3751
    %v3768 = vadd.f32 %v3736, %v3752
    %v3769 = vadd.f32 %v3737, %v3753
    %v3770 = vadd.f32 %v3738, %v3754
    %v3771 = vadd.f32 %v3739, %v3755
    %v3772 = vadd.f32 %v3740, %v3756
    %v3773 = vadd.f32 %v3741, %v3757
    %v3774 = vadd.f32 %v3742, %v3758
    %v3775 = vadd.f32 %v3743, %v3759
    %v3776 = vadd.f32 %v3744, %v3760
    %v3777 = vadd.f32 %v3745, %v3761
    %v3778 = vadd.f32 %v3746, %v3762
    %3780 = vset.pattern.permute.xlu0 0
    %3781 = vperm.xlu0 %3780, %v3409
    %v3782 = vpop.permute.xlu0 %3781
    %3785 = vset.pattern.permute.xlu0 0
    %3786 = vperm.xlu0 %3785, %v3424
    %v3787 = vpop.permute.xlu0 %3786
    %3790 = vset.pattern.permute.xlu0 0
    %3791 = vperm.xlu0 %3790, %v3439
    %v3792 = vpop.permute.xlu0 %3791
    %3795 = vset.pattern.permute.xlu0 0
    %3796 = vperm.xlu0 %3795, %v3454
    %v3797 = vpop.permute.xlu0 %3796
    %3800 = vset.pattern.permute.xlu0 0
    %3801 = vperm.xlu0 %3800, %v3469
    %v3802 = vpop.permute.xlu0 %3801
    %3805 = vset.pattern.permute.xlu0 0
    %3806 = vperm.xlu0 %3805, %v3484
    %v3807 = vpop.permute.xlu0 %3806
    %3810 = vset.pattern.permute.xlu0 0
    %3811 = vperm.xlu0 %3810, %v3499
    %v3812 = vpop.permute.xlu0 %3811
    %3815 = vset.pattern.permute.xlu0 0
    %3816 = vperm.xlu0 %3815, %v3514
    %v3817 = vpop.permute.xlu0 %3816
    %3820 = vset.pattern.permute.xlu0 0
    %3821 = vperm.xlu0 %3820, %v3529
    %v3822 = vpop.permute.xlu0 %3821
    %3825 = vset.pattern.permute.xlu0 0
    %3826 = vperm.xlu0 %3825, %v3544
    %v3827 = vpop.permute.xlu0 %3826
    %3830 = vset.pattern.permute.xlu0 0
    %3831 = vperm.xlu0 %3830, %v3559
    %v3832 = vpop.permute.xlu0 %3831
    %3835 = vset.pattern.permute.xlu0 0
    %3836 = vperm.xlu0 %3835, %v3574
    %v3837 = vpop.permute.xlu0 %3836
    %3840 = vset.pattern.permute.xlu0 0
    %3841 = vperm.xlu0 %3840, %v3589
    %v3842 = vpop.permute.xlu0 %3841
    %3845 = vset.pattern.permute.xlu0 0
    %3846 = vperm.xlu0 %3845, %v3604
    %v3847 = vpop.permute.xlu0 %3846
    %3850 = vset.pattern.permute.xlu0 0
    %3851 = vperm.xlu0 %3850, %v3619
    %v3852 = vpop.permute.xlu0 %3851
    %3855 = vset.pattern.permute.xlu0 0
    %3856 = vperm.xlu0 %3855, %v3634
    %v3857 = vpop.permute.xlu0 %3856
    %v3859 = vmul.f32 %v3763, %v3782
    %v3860 = vmul.f32 %v3764, %v3787
    %v3861 = vmul.f32 %v3765, %v3792
    %v3862 = vmul.f32 %v3766, %v3797
    %v3863 = vmul.f32 %v3767, %v3802
    %v3864 = vmul.f32 %v3768, %v3807
    %v3865 = vmul.f32 %v3769, %v3812
    %v3866 = vmul.f32 %v3770, %v3817
    %v3867 = vmul.f32 %v3771, %v3822
    %v3868 = vmul.f32 %v3772, %v3827
    %v3869 = vmul.f32 %v3773, %v3832
    %v3870 = vmul.f32 %v3774, %v3837
    %v3871 = vmul.f32 %v3775, %v3842
    %v3872 = vmul.f32 %v3776, %v3847
    %v3873 = vmul.f32 %v3777, %v3852
    %v3874 = vmul.f32 %v3778, %v3857
    %v3875 = vpack.c.bf16 %v3860, %v3859
    %v3876 = vpack.c.bf16 %v3862, %v3861
    %v3877 = vpack.c.bf16 %v3864, %v3863
    %v3878 = vpack.c.bf16 %v3866, %v3865
    %v3879 = vpack.c.bf16 %v3868, %v3867
    %v3880 = vpack.c.bf16 %v3870, %v3869
    %v3881 = vpack.c.bf16 %v3872, %v3871
    %v3882 = vpack.c.bf16 %v3874, %v3873
    %v3883 = vld [vmem:[#allocation10] sm:$0xf]
    %v3884 = vld [vmem:[#allocation10 + $0x4] sm:$0xf]
    %v3885 = vld [vmem:[#allocation10 + $0x8] sm:$0xf]
    %v3886 = vld [vmem:[#allocation10 + $0xc] sm:$0xf]
    %v3887 = vld [vmem:[#allocation10 + $0x10] sm:$0xf]
    %v3888 = vld [vmem:[#allocation10 + $0x14] sm:$0xf]
    %v3889 = vld [vmem:[#allocation10 + $0x18] sm:$0xf]
    %v3890 = vld [vmem:[#allocation10 + $0x1c] sm:$0xf]
    %v3891 = vld [vmem:[#allocation10 + $0x20] sm:$0xf]
    %v3892 = vld [vmem:[#allocation10 + $0x24] sm:$0xf]
    %v3893 = vld [vmem:[#allocation10 + $0x28] sm:$0xf]
    %v3894 = vld [vmem:[#allocation10 + $0x2c] sm:$0xf]
    %v3895 = vld [vmem:[#allocation10 + $0x30] sm:$0xf]
    %v3896 = vld [vmem:[#allocation10 + $0x34] sm:$0xf]
    %v3897 = vld [vmem:[#allocation10 + $0x38] sm:$0xf]
    %v3898 = vld [vmem:[#allocation10 + $0x3c] sm:$0xf]
    %v3899 = vld [vmem:[%s9] sm:$0x1]
    %v3901 = vperm.slane %v3899, 0
    %v3919 = vunpack.c.l.b16 %v3883
    %v3920 = vunpack.c.l.b16 %v3884
    %v3921 = vunpack.c.l.b16 %v3885
    %v3922 = vunpack.c.l.b16 %v3886
    %v3923 = vunpack.c.l.b16 %v3887
    %v3924 = vunpack.c.l.b16 %v3888
    %v3925 = vunpack.c.l.b16 %v3889
    %v3926 = vunpack.c.l.b16 %v3890
    %v3927 = vunpack.c.l.b16 %v3891
    %v3928 = vunpack.c.l.b16 %v3892
    %v3929 = vunpack.c.l.b16 %v3893
    %v3930 = vunpack.c.l.b16 %v3894
    %v3931 = vunpack.c.l.b16 %v3895
    %v3932 = vunpack.c.l.b16 %v3896
    %v3933 = vunpack.c.l.b16 %v3897
    %v3934 = vunpack.c.l.b16 %v3898
    %v3935 = vpack.c.b16 %v3920, %v3919
    %v3936 = vpack.c.b16 %v3922, %v3921
    %v3937 = vpack.c.b16 %v3924, %v3923
    %v3938 = vpack.c.b16 %v3926, %v3925
    %v3939 = vpack.c.b16 %v3928, %v3927
    %v3940 = vpack.c.b16 %v3930, %v3929
    %v3941 = vpack.c.b16 %v3932, %v3931
    %v3942 = vpack.c.b16 %v3934, %v3933
    %3951 = vmatpush.bf16.msra.mxu0 %v3942
    %3952 = vmatpush.bf16.msra.mxu0 %v3941
    %3953 = vmatpush.bf16.msra.mxu0 %v3940
    %3954 = vmatpush.bf16.msra.mxu0 %v3939
    %3955 = vmatpush.bf16.msra.mxu0 %v3938
    %3956 = vmatpush.bf16.msra.mxu0 %v3937
    %3957 = vmatpush.bf16.msra.mxu0 %v3936
    %3958 = vmatpush.bf16.msra.mxu0 %v3935
    %3959 = vmatmul.bf16.gmra.mxu0 %v3875
    %v3960 = vpop.f32.mrf.mxu0
    %v3961 = vadd.f32 %v3901, %v3960
    %v3962 = vpop.f32.mrf.mxu0
    %v3963 = vadd.f32 %v3901, %v3962
    %3964 = vmatmul.bf16.gmra.mxu0 %v3876
    %v3965 = vpop.f32.mrf.mxu0
    %v3966 = vadd.f32 %v3901, %v3965
    %v3967 = vpop.f32.mrf.mxu0
    %v3968 = vadd.f32 %v3901, %v3967
    %3969 = vmatmul.bf16.gmra.mxu0 %v3877
    %v3970 = vpop.f32.mrf.mxu0
    %v3971 = vadd.f32 %v3901, %v3970
    %v3972 = vpop.f32.mrf.mxu0
    %v3973 = vadd.f32 %v3901, %v3972
    %3974 = vmatmul.bf16.gmra.mxu0 %v3878
    %v3975 = vpop.f32.mrf.mxu0
    %v3976 = vadd.f32 %v3901, %v3975
    %v3977 = vpop.f32.mrf.mxu0
    %v3978 = vadd.f32 %v3901, %v3977
    %3979 = vmatmul.bf16.gmra.mxu0 %v3879
    %v3980 = vpop.f32.mrf.mxu0
    %v3981 = vadd.f32 %v3901, %v3980
    %v3982 = vpop.f32.mrf.mxu0
    %v3983 = vadd.f32 %v3901, %v3982
    %3984 = vmatmul.bf16.gmra.mxu0 %v3880
    %v3985 = vpop.f32.mrf.mxu0
    %v3986 = vadd.f32 %v3901, %v3985
    %v3987 = vpop.f32.mrf.mxu0
    %v3988 = vadd.f32 %v3901, %v3987
    %3989 = vmatmul.bf16.gmra.mxu0 %v3881
    %v3990 = vpop.f32.mrf.mxu0
    %v3991 = vadd.f32 %v3901, %v3990
    %v3992 = vpop.f32.mrf.mxu0
    %v3993 = vadd.f32 %v3901, %v3992
    %3994 = vmatmul.bf16.gmra.mxu0 %v3882
    %v3995 = vpop.f32.mrf.mxu0
    %v3996 = vadd.f32 %v3901, %v3995
    %v3997 = vpop.f32.mrf.mxu0
    %v3998 = vadd.f32 %v3901, %v3997
    %3999 = vdwg.mxu0
    %4000 = vst [vmem:[#allocation11] sm:$0xff] %v3961
    %4001 = vst [vmem:[#allocation11 + $0x8] sm:$0xff] %v3963
    %4002 = vst [vmem:[#allocation11 + $0x10] sm:$0xff] %v3966
    %4003 = vst [vmem:[#allocation11 + $0x18] sm:$0xff] %v3968
    %4004 = vst [vmem:[#allocation11 + $0x20] sm:$0xff] %v3971
    %4005 = vst [vmem:[#allocation11 + $0x28] sm:$0xff] %v3973
    %4006 = vst [vmem:[#allocation11 + $0x30] sm:$0xff] %v3976
    %4007 = vst [vmem:[#allocation11 + $0x38] sm:$0xff] %v3978
    %4008 = vst [vmem:[#allocation11 + $0x40] sm:$0xff] %v3981
    %4009 = vst [vmem:[#allocation11 + $0x48] sm:$0xff] %v3983
    %4010 = vst [vmem:[#allocation11 + $0x50] sm:$0xff] %v3986
    %4011 = vst [vmem:[#allocation11 + $0x58] sm:$0xff] %v3988
    %4012 = vst [vmem:[#allocation11 + $0x60] sm:$0xff] %v3991
    %4013 = vst [vmem:[#allocation11 + $0x68] sm:$0xff] %v3993
    %4014 = vst [vmem:[#allocation11 + $0x70] sm:$0xff] %v3996
    %4015 = vst [vmem:[#allocation11 + $0x78] sm:$0xff] %v3998
    // Predicated region
    $region62: #{tpu_custom_call.1} parent=1 // pred_check
      _
    $region63: #{tpu_custom_call.1} parent=1 // pred_check_branch
      %4017 = sbr.rel (0) target = $region65
    $region64: #{tpu_custom_call.1} parent=1 // pred_region
      %4019 = vsyncadd [#allocation4], 0
      %s4020 = sshll.u32 [#allocation11], 4
      %s4021 = int_to_ptr.vmem [resolvable:$true] %s4020
      %s4022 = sshll.u32 %s10, 4
      %s4023 = int_to_ptr.hbm [resolvable:$true] %s4022
      %4028 = dma.vmem_to_hbm [thread:$0]  %s4021, 2048, %s4023, [#allocation4], 128, 128, 8
    $region65: #{tpu_custom_call.1} parent=1 // pred_fallthru
      _
    // Predicated region
    $region66: #{tpu_custom_call.1} parent=1 // pred_check
      _
    $region67: #{tpu_custom_call.1} parent=1 // pred_check_branch
      %4030 = sbr.rel (0) target = $region69
    $region68: #{tpu_custom_call.1} parent=1 // pred_region
      %4032 = dma.done [#allocation4], 2048
    $region69: #{tpu_custom_call.1} parent=1 // pred_fallthru
      _
    %4033 = vsyncpa [#allocation3], 1
    %4034 = vsyncpa [#allocation6], 1
    %4035 = vsyncpa [#allocation9], 1
    %4036 = vsyncpa [#allocation4], 1

</llo_original>
